<compile_context>
chip_gen: v7x
topology: tpu7x:2x2x1
jax: 0.10.0
libtpu: 0.0.40
codegen_flags: <defaults>
</compile_context>

<pallas_src>
import functools

import numpy as np
import jax
import jax.numpy as jnp
from jax.experimental import pallas as pl
from jax.experimental.pallas import tpu as pltpu


# ----------------------------------------------------------------------------- kernel


def _fused_cnn_kernel(*refs, n_convs, has_out_conv, K, H, pad, row0, N):
    """refs = (x, (w_band_l, bias_l) * n_convs, [w_out], o, pad0_scratch, padf_scratch).

    x:        (N, H, W*Cin0)            channel-minor rows
    w_band_l: (K, W*Cin_l, W*Cout_l)    horizontal taps + W-padding folded in
    bias_l:   (1, W*Cout_l)             per-channel bias tiled W times
    w_out:    (W*F, W*Cin0)             block-diagonal 1x1-conv weight
    o:        (N*H, W*Cfinal)
    scratches: H-padded activations, interior rows start at 8-aligned `row0`.
    """
    it = iter(refs)
    x_ref = next(it)
    conv_refs = [(next(it), next(it)) for _ in range(n_convs)]
    wout_ref = next(it) if has_out_conv else None
    o_ref = next(it)
    pad0_ref = next(it)
    padf_ref = next(it)

    # Zero the H-halo scratches once; interiors are fully overwritten below,
    # so the halo rows stay zero for every layer.
    pad0_ref[...] = jnp.zeros(pad0_ref.shape, pad0_ref.dtype)
    padf_ref[...] = jnp.zeros(padf_ref.shape, padf_ref.dtype)

    # Layer-1 input -> 8-aligned interior rows of the H-padded scratch.
    pad0_ref[:, row0:row0 + H, :] = x_ref[...].astype(jnp.float32)

    cur_ref = pad0_ref
    y = None
    for li, (wb_ref, b_ref) in enumerate(conv_refs):
        acc = None
        for kh in range(K):
            r0 = row0 - pad + kh
            slab = cur_ref[:, r0:r0 + H, :]                    # (N, H, W*Cin)
            slab2d = slab.reshape(N * H, slab.shape[-1])       # collapse leading dims
            t = jnp.dot(slab2d, wb_ref[kh], preferred_element_type=jnp.float32)
            acc = t if acc is None else acc + t
        y = jnp.maximum(acc + b_ref[...], 0.0)                 # bias + ReLU, (N*H, W*F)
        if li + 1 < n_convs:
            # Re-embed into the H-padded scratch for the next layer (aligned store).
            padf_ref[:, row0:row0 + H, :] = y.reshape(N, H, y.shape[1])
            cur_ref = padf_ref

    if has_out_conv:
        out = jnp.dot(y, wout_ref[...], preferred_element_type=jnp.float32)
    else:
        out = y
    o_ref[...] = out.astype(o_ref.dtype)


# ------------------------------------------------------------------- parameter helpers


def _xavier_uniform(key, shape, fan_in, fan_out):
    bound = (6.0 / (fan_in + fan_out)) ** 0.5
    return jax.random.uniform(key, shape, jnp.float32, -bound, bound)


def init_params(key, in_chans, n_convs, n_filters, kernel_size, back_to_input):
    """Re-creates CNNRegularization._init_weights (xavier_uniform, bias=0.01), HWIO weights."""
    params = {"convs": [], "out_conv": None}
    curr = in_chans
    for _ in range(n_convs):
        key, sub = jax.random.split(key)
        w = _xavier_uniform(
            sub,
            (kernel_size, kernel_size, curr, n_filters),
            fan_in=curr * kernel_size * kernel_size,
            fan_out=n_filters * kernel_size * kernel_size,
        )
        b = jnp.full((n_filters,), 0.01, jnp.float32)
        params["convs"].append((w, b))
        curr = n_filters
    if back_to_input:
        key, sub = jax.random.split(key)
        params["out_conv"] = _xavier_uniform(
            sub, (1, 1, curr, in_chans), fan_in=curr, fan_out=in_chans
        )
    return params


def _band_weight(w_kkio, W, pad):
    """Fold horizontal taps + horizontal 'same' padding of a KxK conv into K banded
    matrices: band[kh, wi*Cin + c, wo*Cout + f] = w[kh, kw, c, f], wi = wo + kw - pad."""
    w = np.asarray(w_kkio, np.float32)  # (K, K, Cin, Cout)
    K = w.shape[0]
    Cin, Cout = w.shape[2], w.shape[3]
    band = np.zeros((K, W * Cin, W * Cout), np.float32)
    for kh in range(K):
        for kw in range(K):
            band[kh] += np.kron(np.eye(W, k=pad - kw, dtype=np.float32), w[kh, kw])
    return jnp.asarray(band)


def prepare_params(params, H, W, kernel_size):
    """One-time host-side repack of the HWIO conv weights into the fused-kernel form."""
    pad = (kernel_size - 1) // 2
    prepared = {"convs": [], "out_conv": None}
    for (w, b) in params["convs"]:
        wb = _band_weight(w, W, pad)                                    # (K, W*Cin, W*F)
        bt = jnp.asarray(np.tile(np.asarray(b, np.float32), W)[None, :])  # (1, W*F)
        prepared["convs"].append((wb, bt))
    if params["out_conv"] is not None:
        w_out = np.asarray(params["out_conv"], np.float32)[0, 0]        # (F, in_chans)
        prepared["out_conv"] = jnp.asarray(
            np.kron(np.eye(W, dtype=np.float32), w_out))                # (W*F, W*in_chans)
    return prepared


# --------------------------------------------------------------------------- forward


def cnn_regularization_forward(prepared, x_nchw, *, kernel_size=5):
    """Matches CNNRegularization.forward: NCHW in, NCHW out.  One fused pallas_call."""
    N, Cin0, H, W = x_nchw.shape
    K = kernel_size
    pad = (K - 1) // 2
    row0 = ((pad + 7) // 8) * 8              # 8-aligned interior row offset in scratch
    n_convs = len(prepared["convs"])
    assert n_convs >= 1
    F = prepared["convs"][-1][1].shape[1] // W
    has_out = prepared["out_conv"] is not None
    c_final = Cin0 if has_out else F

    # NCHW -> (N, H, W*Cin): channel-minor rows, the matmul-friendly layout.
    x_rows = jnp.transpose(x_nchw, (0, 2, 3, 1)).reshape(N, H, W * Cin0)

    inputs = [x_rows]
    in_specs = [pl.BlockSpec((N, H, W * Cin0), lambda i: (0, 0, 0))]
    for (wb, bt) in prepared["convs"]:
        inputs += [wb, bt]
        in_specs += [
            pl.BlockSpec(wb.shape, lambda i: (0, 0, 0)),
            pl.BlockSpec(bt.shape, lambda i: (0, 0)),
        ]
    if has_out:
        inputs.append(prepared["out_conv"])
        in_specs.append(pl.BlockSpec(prepared["out_conv"].shape, lambda i: (0, 0)))

    kernel = functools.partial(
        _fused_cnn_kernel,
        n_convs=n_convs, has_out_conv=has_out, K=K, H=H, pad=pad, row0=row0, N=N,
    )

    out2d = pl.pallas_call(
        kernel,
        out_shape=jax.ShapeDtypeStruct((N * H, W * c_final), jnp.float32),
        grid=(1,),
        in_specs=in_specs,
        out_specs=pl.BlockSpec((N * H, W * c_final), lambda i: (0, 0)),
        scratch_shapes=[
            pltpu.VMEM((N, row0 + H + pad, W * Cin0), jnp.float32),
            pltpu.VMEM((N, row0 + H + pad, W * F), jnp.float32),
        ],
        compiler_params=pltpu.CompilerParams(
            dimension_semantics=("arbitrary",),
            vmem_limit_bytes=48 * 1024 * 1024,
        ),
    )(*inputs)

    # (N*H, W*C) rows -> NCHW
    return jnp.transpose(out2d.reshape(N, H, W, c_final), (0, 3, 1, 2))


# ------------------------------------------------------------------------- reference


def _reference_forward(params, x_nchw):
    """Pure-JAX reference (lax.conv) for correctness checking."""
    x = jnp.transpose(x_nchw, (0, 2, 3, 1))
    dn = ("NHWC", "HWIO", "NHWC")
    for (w, b) in params["convs"]:
        x = jax.lax.conv_general_dilated(x, w, (1, 1), "SAME", dimension_numbers=dn)
        x = jax.nn.relu(x + b)
    if params["out_conv"] is not None:
        x = jax.lax.conv_general_dilated(
            x, params["out_conv"], (1, 1), "SAME", dimension_numbers=dn
        )
    return jnp.transpose(x, (0, 3, 1, 2))


if __name__ == "__main__":
    key = jax.random.PRNGKey(0)
    kp, kx = jax.random.split(key)

    in_chans, n_convs, n_filters, kernel_size = 1, 3, 16, 5
    back_to_input = True
    N, H, W = 2, 16, 16

    params = init_params(kp, in_chans, n_convs, n_filters, kernel_size, back_to_input)
    prepared = prepare_params(params, H, W, kernel_size)
    x = jax.random.normal(kx, (N, in_chans, H, W), jnp.float32)

    fwd = jax.jit(functools.partial(cnn_regularization_forward, kernel_size=kernel_size))
    out = jax.block_until_ready(fwd(prepared, x))
    ref = jax.block_until_ready(_reference_forward(params, x))

    assert out.shape == x.shape, (out.shape, x.shape)
    max_err = float(jnp.max(jnp.abs(out - ref)))
    assert jnp.allclose(out, ref, rtol=1e-3, atol=1e-3), max_err
    print("KERNEL_OK")
</pallas_src>

<mosaic_0001>
module attributes {stable_mosaic.version = 11 : i64} {
  func.func @_fused_cnn_kernel(%arg0: i32, %arg1: memref<2x16x16xf32, #tpu.memory_space<vmem>>, %arg2: memref<5x16x256xf32, #tpu.memory_space<vmem>>, %arg3: memref<1x256xf32, #tpu.memory_space<vmem>>, %arg4: memref<5x256x256xf32, #tpu.memory_space<vmem>>, %arg5: memref<1x256xf32, #tpu.memory_space<vmem>>, %arg6: memref<5x256x256xf32, #tpu.memory_space<vmem>>, %arg7: memref<1x256xf32, #tpu.memory_space<vmem>>, %arg8: memref<256x16xf32, #tpu.memory_space<vmem>>, %arg9: memref<32x16xf32, #tpu.memory_space<vmem>>, %arg10: memref<2x26x16xf32, #tpu.memory_space<vmem>>, %arg11: memref<2x26x256xf32, #tpu.memory_space<vmem>>) attributes {dimension_semantics = [#tpu.dimension_semantics<arbitrary>], iteration_bounds = array<i64: 1>, scalar_prefetch = 0 : i64, scratch_operands = 2 : i64, tpu.core_type = #tpu.core_type<tc>, window_params = [{pipeline_mode = #tpu.pipeline_mode<synchronous>, transform_indices = @transform_0, window_bounds = array<i64: 2, 16, 16>}, {pipeline_mode = #tpu.pipeline_mode<synchronous>, transform_indices = @transform_1, window_bounds = array<i64: 5, 16, 256>}, {pipeline_mode = #tpu.pipeline_mode<synchronous>, transform_indices = @transform_2, window_bounds = array<i64: 1, 256>}, {pipeline_mode = #tpu.pipeline_mode<synchronous>, transform_indices = @transform_3, window_bounds = array<i64: 5, 256, 256>}, {pipeline_mode = #tpu.pipeline_mode<synchronous>, transform_indices = @transform_4, window_bounds = array<i64: 1, 256>}, {pipeline_mode = #tpu.pipeline_mode<synchronous>, transform_indices = @transform_5, window_bounds = array<i64: 5, 256, 256>}, {pipeline_mode = #tpu.pipeline_mode<synchronous>, transform_indices = @transform_6, window_bounds = array<i64: 1, 256>}, {pipeline_mode = #tpu.pipeline_mode<synchronous>, transform_indices = @transform_7, window_bounds = array<i64: 256, 16>}, {pipeline_mode = #tpu.pipeline_mode<synchronous>, transform_indices = @transform_8, window_bounds = array<i64: 32, 16>}]} {
    %cst = arith.constant 0.000000e+00 : f32
    %0 = vector.broadcast %cst : f32 to vector<2x26x16xf32>
    %c0 = arith.constant 0 : index
    %c0_0 = arith.constant 0 : index
    %c0_1 = arith.constant 0 : index
    %1 = vector.load %arg10[%c0, %c0_0, %c0_1] : memref<2x26x16xf32, #tpu.memory_space<vmem>>, vector<2x26x16xf32>
    tpu.vector_store %arg10[%c0, %c0_0, %c0_1], %0 {strides = array<i32>} : memref<2x26x16xf32, #tpu.memory_space<vmem>>, vector<2x26x16xf32>,
    %cst_2 = arith.constant 0.000000e+00 : f32
    %2 = vector.broadcast %cst_2 : f32 to vector<2x26x256xf32>
    %c0_3 = arith.constant 0 : index
    %c0_4 = arith.constant 0 : index
    %c0_5 = arith.constant 0 : index
    %3 = vector.load %arg11[%c0_3, %c0_4, %c0_5] : memref<2x26x256xf32, #tpu.memory_space<vmem>>, vector<2x26x256xf32>
    tpu.vector_store %arg11[%c0_3, %c0_4, %c0_5], %2 {strides = array<i32>} : memref<2x26x256xf32, #tpu.memory_space<vmem>>, vector<2x26x256xf32>,
    %c0_6 = arith.constant 0 : index
    %c0_7 = arith.constant 0 : index
    %c0_8 = arith.constant 0 : index
    %4 = vector.load %arg1[%c0_6, %c0_7, %c0_8] : memref<2x16x16xf32, #tpu.memory_space<vmem>>, vector<2x16x16xf32>
    %c0_9 = arith.constant 0 : index
    %c8 = arith.constant 8 : index
    %c0_10 = arith.constant 0 : index
    %5 = vector.load %arg10[%c0_9, %c8, %c0_10] : memref<2x26x16xf32, #tpu.memory_space<vmem>>, vector<2x16x16xf32>
    tpu.vector_store %arg10[%c0_9, %c8, %c0_10], %4 {strides = array<i32>} : memref<2x26x16xf32, #tpu.memory_space<vmem>>, vector<2x16x16xf32>,
    %c0_11 = arith.constant 0 : index
    %c6 = arith.constant 6 : index
    %c0_12 = arith.constant 0 : index
    %6 = vector.load %arg10[%c0_11, %c6, %c0_12] : memref<2x26x16xf32, #tpu.memory_space<vmem>>, vector<2x16x16xf32>
    %7 = vector.shape_cast %6 : vector<2x16x16xf32> to vector<32x16xf32>
    %c0_13 = arith.constant 0 : index
    %c0_14 = arith.constant 0 : index
    %c0_15 = arith.constant 0 : index
    %8 = vector.load %arg2[%c0_13, %c0_14, %c0_15] : memref<5x16x256xf32, #tpu.memory_space<vmem>>, vector<1x16x256xf32>
    %9 = vector.shape_cast %8 : vector<1x16x256xf32> to vector<16x256xf32>
    %cst_16 = arith.constant dense<0.000000e+00> : vector<32x256xf32>
    %10 = tpu.matmul %7, %9, %cst_16 {dimension_numbers = #tpu.dot_dimension_numbers<[1], [0], [0], [1], [0, 0, 1, 1], [], []>} : vector<32x16xf32>, vector<16x256xf32>, vector<32x256xf32> -> vector<32x256xf32>
    %c0_17 = arith.constant 0 : index
    %c7 = arith.constant 7 : index
    %c0_18 = arith.constant 0 : index
    %11 = vector.load %arg10[%c0_17, %c7, %c0_18] : memref<2x26x16xf32, #tpu.memory_space<vmem>>, vector<2x16x16xf32>
    %12 = vector.shape_cast %11 : vector<2x16x16xf32> to vector<32x16xf32>
    %c1 = arith.constant 1 : index
    %c0_19 = arith.constant 0 : index
    %c0_20 = arith.constant 0 : index
    %13 = vector.load %arg2[%c1, %c0_19, %c0_20] : memref<5x16x256xf32, #tpu.memory_space<vmem>>, vector<1x16x256xf32>
    %14 = vector.shape_cast %13 : vector<1x16x256xf32> to vector<16x256xf32>
    %cst_21 = arith.constant dense<0.000000e+00> : vector<32x256xf32>
    %15 = tpu.matmul %12, %14, %cst_21 {dimension_numbers = #tpu.dot_dimension_numbers<[1], [0], [0], [1], [0, 0, 1, 1], [], []>} : vector<32x16xf32>, vector<16x256xf32>, vector<32x256xf32> -> vector<32x256xf32>
    %16 = arith.addf %10, %15 : vector<32x256xf32>
    %c0_22 = arith.constant 0 : index
    %c8_23 = arith.constant 8 : index
    %c0_24 = arith.constant 0 : index
    %17 = vector.load %arg10[%c0_22, %c8_23, %c0_24] : memref<2x26x16xf32, #tpu.memory_space<vmem>>, vector<2x16x16xf32>
    %18 = vector.shape_cast %17 : vector<2x16x16xf32> to vector<32x16xf32>
    %c2 = arith.constant 2 : index
    %c0_25 = arith.constant 0 : index
    %c0_26 = arith.constant 0 : index
    %19 = vector.load %arg2[%c2, %c0_25, %c0_26] : memref<5x16x256xf32, #tpu.memory_space<vmem>>, vector<1x16x256xf32>
    %20 = vector.shape_cast %19 : vector<1x16x256xf32> to vector<16x256xf32>
    %cst_27 = arith.constant dense<0.000000e+00> : vector<32x256xf32>
    %21 = tpu.matmul %18, %20, %cst_27 {dimension_numbers = #tpu.dot_dimension_numbers<[1], [0], [0], [1], [0, 0, 1, 1], [], []>} : vector<32x16xf32>, vector<16x256xf32>, vector<32x256xf32> -> vector<32x256xf32>
    %22 = arith.addf %16, %21 : vector<32x256xf32>
    %c0_28 = arith.constant 0 : index
    %c9 = arith.constant 9 : index
    %c0_29 = arith.constant 0 : index
    %23 = vector.load %arg10[%c0_28, %c9, %c0_29] : memref<2x26x16xf32, #tpu.memory_space<vmem>>, vector<2x16x16xf32>
    %24 = vector.shape_cast %23 : vector<2x16x16xf32> to vector<32x16xf32>
    %c3 = arith.constant 3 : index
    %c0_30 = arith.constant 0 : index
    %c0_31 = arith.constant 0 : index
    %25 = vector.load %arg2[%c3, %c0_30, %c0_31] : memref<5x16x256xf32, #tpu.memory_space<vmem>>, vector<1x16x256xf32>
    %26 = vector.shape_cast %25 : vector<1x16x256xf32> to vector<16x256xf32>
    %cst_32 = arith.constant dense<0.000000e+00> : vector<32x256xf32>
    %27 = tpu.matmul %24, %26, %cst_32 {dimension_numbers = #tpu.dot_dimension_numbers<[1], [0], [0], [1], [0, 0, 1, 1], [], []>} : vector<32x16xf32>, vector<16x256xf32>, vector<32x256xf32> -> vector<32x256xf32>
    %28 = arith.addf %22, %27 : vector<32x256xf32>
    %c0_33 = arith.constant 0 : index
    %c10 = arith.constant 10 : index
    %c0_34 = arith.constant 0 : index
    %29 = vector.load %arg10[%c0_33, %c10, %c0_34] : memref<2x26x16xf32, #tpu.memory_space<vmem>>, vector<2x16x16xf32>
    %30 = vector.shape_cast %29 : vector<2x16x16xf32> to vector<32x16xf32>
    %c4 = arith.constant 4 : index
    %c0_35 = arith.constant 0 : index
    %c0_36 = arith.constant 0 : index
    %31 = vector.load %arg2[%c4, %c0_35, %c0_36] : memref<5x16x256xf32, #tpu.memory_space<vmem>>, vector<1x16x256xf32>
    %32 = vector.shape_cast %31 : vector<1x16x256xf32> to vector<16x256xf32>
    %cst_37 = arith.constant dense<0.000000e+00> : vector<32x256xf32>
    %33 = tpu.matmul %30, %32, %cst_37 {dimension_numbers = #tpu.dot_dimension_numbers<[1], [0], [0], [1], [0, 0, 1, 1], [], []>} : vector<32x16xf32>, vector<16x256xf32>, vector<32x256xf32> -> vector<32x256xf32>
    %34 = arith.addf %28, %33 : vector<32x256xf32>
    %c0_38 = arith.constant 0 : index
    %c0_39 = arith.constant 0 : index
    %35 = vector.load %arg3[%c0_38, %c0_39] : memref<1x256xf32, #tpu.memory_space<vmem>>, vector<1x256xf32>
    %36 = vector.broadcast %35 : vector<1x256xf32> to vector<32x256xf32>
    %37 = arith.addf %34, %36 : vector<32x256xf32>
    %cst_40 = arith.constant 0.000000e+00 : f32
    %38 = vector.broadcast %cst_40 : f32 to vector<32x256xf32>
    %39 = arith.maximumf %37, %38 : vector<32x256xf32>
    %40 = vector.shape_cast %39 : vector<32x256xf32> to vector<2x16x256xf32>
    %c0_41 = arith.constant 0 : index
    %c8_42 = arith.constant 8 : index
    %c0_43 = arith.constant 0 : index
    %41 = vector.load %arg11[%c0_41, %c8_42, %c0_43] : memref<2x26x256xf32, #tpu.memory_space<vmem>>, vector<2x16x256xf32>
    tpu.vector_store %arg11[%c0_41, %c8_42, %c0_43], %40 {strides = array<i32>} : memref<2x26x256xf32, #tpu.memory_space<vmem>>, vector<2x16x256xf32>,
    %c0_44 = arith.constant 0 : index
    %c6_45 = arith.constant 6 : index
    %c0_46 = arith.constant 0 : index
    %42 = vector.load %arg11[%c0_44, %c6_45, %c0_46] : memref<2x26x256xf32, #tpu.memory_space<vmem>>, vector<2x16x256xf32>
    %43 = vector.shape_cast %42 : vector<2x16x256xf32> to vector<32x256xf32>
    %c0_47 = arith.constant 0 : index
    %c0_48 = arith.constant 0 : index
    %c0_49 = arith.constant 0 : index
    %44 = vector.load %arg4[%c0_47, %c0_48, %c0_49] : memref<5x256x256xf32, #tpu.memory_space<vmem>>, vector<1x256x256xf32>
    %45 = vector.shape_cast %44 : vector<1x256x256xf32> to vector<256x256xf32>
    %cst_50 = arith.constant dense<0.000000e+00> : vector<32x256xf32>
    %46 = tpu.matmul %43, %45, %cst_50 {dimension_numbers = #tpu.dot_dimension_numbers<[1], [0], [0], [1], [0, 0, 1, 1], [], []>} : vector<32x256xf32>, vector<256x256xf32>, vector<32x256xf32> -> vector<32x256xf32>
    %c0_51 = arith.constant 0 : index
    %c7_52 = arith.constant 7 : index
    %c0_53 = arith.constant 0 : index
    %47 = vector.load %arg11[%c0_51, %c7_52, %c0_53] : memref<2x26x256xf32, #tpu.memory_space<vmem>>, vector<2x16x256xf32>
    %48 = vector.shape_cast %47 : vector<2x16x256xf32> to vector<32x256xf32>
    %c1_54 = arith.constant 1 : index
    %c0_55 = arith.constant 0 : index
    %c0_56 = arith.constant 0 : index
    %49 = vector.load %arg4[%c1_54, %c0_55, %c0_56] : memref<5x256x256xf32, #tpu.memory_space<vmem>>, vector<1x256x256xf32>
    %50 = vector.shape_cast %49 : vector<1x256x256xf32> to vector<256x256xf32>
    %cst_57 = arith.constant dense<0.000000e+00> : vector<32x256xf32>
    %51 = tpu.matmul %48, %50, %cst_57 {dimension_numbers = #tpu.dot_dimension_numbers<[1], [0], [0], [1], [0, 0, 1, 1], [], []>} : vector<32x256xf32>, vector<256x256xf32>, vector<32x256xf32> -> vector<32x256xf32>
    %52 = arith.addf %46, %51 : vector<32x256xf32>
    %c0_58 = arith.constant 0 : index
    %c8_59 = arith.constant 8 : index
    %c0_60 = arith.constant 0 : index
    %53 = vector.load %arg11[%c0_58, %c8_59, %c0_60] : memref<2x26x256xf32, #tpu.memory_space<vmem>>, vector<2x16x256xf32>
    %54 = vector.shape_cast %53 : vector<2x16x256xf32> to vector<32x256xf32>
    %c2_61 = arith.constant 2 : index
    %c0_62 = arith.constant 0 : index
    %c0_63 = arith.constant 0 : index
    %55 = vector.load %arg4[%c2_61, %c0_62, %c0_63] : memref<5x256x256xf32, #tpu.memory_space<vmem>>, vector<1x256x256xf32>
    %56 = vector.shape_cast %55 : vector<1x256x256xf32> to vector<256x256xf32>
    %cst_64 = arith.constant dense<0.000000e+00> : vector<32x256xf32>
    %57 = tpu.matmul %54, %56, %cst_64 {dimension_numbers = #tpu.dot_dimension_numbers<[1], [0], [0], [1], [0, 0, 1, 1], [], []>} : vector<32x256xf32>, vector<256x256xf32>, vector<32x256xf32> -> vector<32x256xf32>
    %58 = arith.addf %52, %57 : vector<32x256xf32>
    %c0_65 = arith.constant 0 : index
    %c9_66 = arith.constant 9 : index
    %c0_67 = arith.constant 0 : index
    %59 = vector.load %arg11[%c0_65, %c9_66, %c0_67] : memref<2x26x256xf32, #tpu.memory_space<vmem>>, vector<2x16x256xf32>
    %60 = vector.shape_cast %59 : vector<2x16x256xf32> to vector<32x256xf32>
    %c3_68 = arith.constant 3 : index
    %c0_69 = arith.constant 0 : index
    %c0_70 = arith.constant 0 : index
    %61 = vector.load %arg4[%c3_68, %c0_69, %c0_70] : memref<5x256x256xf32, #tpu.memory_space<vmem>>, vector<1x256x256xf32>
    %62 = vector.shape_cast %61 : vector<1x256x256xf32> to vector<256x256xf32>
    %cst_71 = arith.constant dense<0.000000e+00> : vector<32x256xf32>
    %63 = tpu.matmul %60, %62, %cst_71 {dimension_numbers = #tpu.dot_dimension_numbers<[1], [0], [0], [1], [0, 0, 1, 1], [], []>} : vector<32x256xf32>, vector<256x256xf32>, vector<32x256xf32> -> vector<32x256xf32>
    %64 = arith.addf %58, %63 : vector<32x256xf32>
    %c0_72 = arith.constant 0 : index
    %c10_73 = arith.constant 10 : index
    %c0_74 = arith.constant 0 : index
    %65 = vector.load %arg11[%c0_72, %c10_73, %c0_74] : memref<2x26x256xf32, #tpu.memory_space<vmem>>, vector<2x16x256xf32>
    %66 = vector.shape_cast %65 : vector<2x16x256xf32> to vector<32x256xf32>
    %c4_75 = arith.constant 4 : index
    %c0_76 = arith.constant 0 : index
    %c0_77 = arith.constant 0 : index
    %67 = vector.load %arg4[%c4_75, %c0_76, %c0_77] : memref<5x256x256xf32, #tpu.memory_space<vmem>>, vector<1x256x256xf32>
    %68 = vector.shape_cast %67 : vector<1x256x256xf32> to vector<256x256xf32>
    %cst_78 = arith.constant dense<0.000000e+00> : vector<32x256xf32>
    %69 = tpu.matmul %66, %68, %cst_78 {dimension_numbers = #tpu.dot_dimension_numbers<[1], [0], [0], [1], [0, 0, 1, 1], [], []>} : vector<32x256xf32>, vector<256x256xf32>, vector<32x256xf32> -> vector<32x256xf32>
    %70 = arith.addf %64, %69 : vector<32x256xf32>
    %c0_79 = arith.constant 0 : index
    %c0_80 = arith.constant 0 : index
    %71 = vector.load %arg5[%c0_79, %c0_80] : memref<1x256xf32, #tpu.memory_space<vmem>>, vector<1x256xf32>
    %72 = vector.broadcast %71 : vector<1x256xf32> to vector<32x256xf32>
    %73 = arith.addf %70, %72 : vector<32x256xf32>
    %cst_81 = arith.constant 0.000000e+00 : f32
    %74 = vector.broadcast %cst_81 : f32 to vector<32x256xf32>
    %75 = arith.maximumf %73, %74 : vector<32x256xf32>
    %76 = vector.shape_cast %75 : vector<32x256xf32> to vector<2x16x256xf32>
    %c0_82 = arith.constant 0 : index
    %c8_83 = arith.constant 8 : index
    %c0_84 = arith.constant 0 : index
    %77 = vector.load %arg11[%c0_82, %c8_83, %c0_84] : memref<2x26x256xf32, #tpu.memory_space<vmem>>, vector<2x16x256xf32>
    tpu.vector_store %arg11[%c0_82, %c8_83, %c0_84], %76 {strides = array<i32>} : memref<2x26x256xf32, #tpu.memory_space<vmem>>, vector<2x16x256xf32>,
    %c0_85 = arith.constant 0 : index
    %c6_86 = arith.constant 6 : index
    %c0_87 = arith.constant 0 : index
    %78 = vector.load %arg11[%c0_85, %c6_86, %c0_87] : memref<2x26x256xf32, #tpu.memory_space<vmem>>, vector<2x16x256xf32>
    %79 = vector.shape_cast %78 : vector<2x16x256xf32> to vector<32x256xf32>
    %c0_88 = arith.constant 0 : index
    %c0_89 = arith.constant 0 : index
    %c0_90 = arith.constant 0 : index
    %80 = vector.load %arg6[%c0_88, %c0_89, %c0_90] : memref<5x256x256xf32, #tpu.memory_space<vmem>>, vector<1x256x256xf32>
    %81 = vector.shape_cast %80 : vector<1x256x256xf32> to vector<256x256xf32>
    %cst_91 = arith.constant dense<0.000000e+00> : vector<32x256xf32>
    %82 = tpu.matmul %79, %81, %cst_91 {dimension_numbers = #tpu.dot_dimension_numbers<[1], [0], [0], [1], [0, 0, 1, 1], [], []>} : vector<32x256xf32>, vector<256x256xf32>, vector<32x256xf32> -> vector<32x256xf32>
    %c0_92 = arith.constant 0 : index
    %c7_93 = arith.constant 7 : index
    %c0_94 = arith.constant 0 : index
    %83 = vector.load %arg11[%c0_92, %c7_93, %c0_94] : memref<2x26x256xf32, #tpu.memory_space<vmem>>, vector<2x16x256xf32>
    %84 = vector.shape_cast %83 : vector<2x16x256xf32> to vector<32x256xf32>
    %c1_95 = arith.constant 1 : index
    %c0_96 = arith.constant 0 : index
    %c0_97 = arith.constant 0 : index
    %85 = vector.load %arg6[%c1_95, %c0_96, %c0_97] : memref<5x256x256xf32, #tpu.memory_space<vmem>>, vector<1x256x256xf32>
    %86 = vector.shape_cast %85 : vector<1x256x256xf32> to vector<256x256xf32>
    %cst_98 = arith.constant dense<0.000000e+00> : vector<32x256xf32>
    %87 = tpu.matmul %84, %86, %cst_98 {dimension_numbers = #tpu.dot_dimension_numbers<[1], [0], [0], [1], [0, 0, 1, 1], [], []>} : vector<32x256xf32>, vector<256x256xf32>, vector<32x256xf32> -> vector<32x256xf32>
    %88 = arith.addf %82, %87 : vector<32x256xf32>
    %c0_99 = arith.constant 0 : index
    %c8_100 = arith.constant 8 : index
    %c0_101 = arith.constant 0 : index
    %89 = vector.load %arg11[%c0_99, %c8_100, %c0_101] : memref<2x26x256xf32, #tpu.memory_space<vmem>>, vector<2x16x256xf32>
    %90 = vector.shape_cast %89 : vector<2x16x256xf32> to vector<32x256xf32>
    %c2_102 = arith.constant 2 : index
    %c0_103 = arith.constant 0 : index
    %c0_104 = arith.constant 0 : index
    %91 = vector.load %arg6[%c2_102, %c0_103, %c0_104] : memref<5x256x256xf32, #tpu.memory_space<vmem>>, vector<1x256x256xf32>
    %92 = vector.shape_cast %91 : vector<1x256x256xf32> to vector<256x256xf32>
    %cst_105 = arith.constant dense<0.000000e+00> : vector<32x256xf32>
    %93 = tpu.matmul %90, %92, %cst_105 {dimension_numbers = #tpu.dot_dimension_numbers<[1], [0], [0], [1], [0, 0, 1, 1], [], []>} : vector<32x256xf32>, vector<256x256xf32>, vector<32x256xf32> -> vector<32x256xf32>
    %94 = arith.addf %88, %93 : vector<32x256xf32>
    %c0_106 = arith.constant 0 : index
    %c9_107 = arith.constant 9 : index
    %c0_108 = arith.constant 0 : index
    %95 = vector.load %arg11[%c0_106, %c9_107, %c0_108] : memref<2x26x256xf32, #tpu.memory_space<vmem>>, vector<2x16x256xf32>
    %96 = vector.shape_cast %95 : vector<2x16x256xf32> to vector<32x256xf32>
    %c3_109 = arith.constant 3 : index
    %c0_110 = arith.constant 0 : index
    %c0_111 = arith.constant 0 : index
    %97 = vector.load %arg6[%c3_109, %c0_110, %c0_111] : memref<5x256x256xf32, #tpu.memory_space<vmem>>, vector<1x256x256xf32>
    %98 = vector.shape_cast %97 : vector<1x256x256xf32> to vector<256x256xf32>
    %cst_112 = arith.constant dense<0.000000e+00> : vector<32x256xf32>
    %99 = tpu.matmul %96, %98, %cst_112 {dimension_numbers = #tpu.dot_dimension_numbers<[1], [0], [0], [1], [0, 0, 1, 1], [], []>} : vector<32x256xf32>, vector<256x256xf32>, vector<32x256xf32> -> vector<32x256xf32>
    %100 = arith.addf %94, %99 : vector<32x256xf32>
    %c0_113 = arith.constant 0 : index
    %c10_114 = arith.constant 10 : index
    %c0_115 = arith.constant 0 : index
    %101 = vector.load %arg11[%c0_113, %c10_114, %c0_115] : memref<2x26x256xf32, #tpu.memory_space<vmem>>, vector<2x16x256xf32>
    %102 = vector.shape_cast %101 : vector<2x16x256xf32> to vector<32x256xf32>
    %c4_116 = arith.constant 4 : index
    %c0_117 = arith.constant 0 : index
    %c0_118 = arith.constant 0 : index
    %103 = vector.load %arg6[%c4_116, %c0_117, %c0_118] : memref<5x256x256xf32, #tpu.memory_space<vmem>>, vector<1x256x256xf32>
    %104 = vector.shape_cast %103 : vector<1x256x256xf32> to vector<256x256xf32>
    %cst_119 = arith.constant dense<0.000000e+00> : vector<32x256xf32>
    %105 = tpu.matmul %102, %104, %cst_119 {dimension_numbers = #tpu.dot_dimension_numbers<[1], [0], [0], [1], [0, 0, 1, 1], [], []>} : vector<32x256xf32>, vector<256x256xf32>, vector<32x256xf32> -> vector<32x256xf32>
    %106 = arith.addf %100, %105 : vector<32x256xf32>
    %c0_120 = arith.constant 0 : index
    %c0_121 = arith.constant 0 : index
    %107 = vector.load %arg7[%c0_120, %c0_121] : memref<1x256xf32, #tpu.memory_space<vmem>>, vector<1x256xf32>
    %108 = vector.broadcast %107 : vector<1x256xf32> to vector<32x256xf32>
    %109 = arith.addf %106, %108 : vector<32x256xf32>
    %cst_122 = arith.constant 0.000000e+00 : f32
    %110 = vector.broadcast %cst_122 : f32 to vector<32x256xf32>
    %111 = arith.maximumf %109, %110 : vector<32x256xf32>
    %c0_123 = arith.constant 0 : index
    %c0_124 = arith.constant 0 : index
    %112 = vector.load %arg8[%c0_123, %c0_124] : memref<256x16xf32, #tpu.memory_space<vmem>>, vector<256x16xf32>
    %cst_125 = arith.constant dense<0.000000e+00> : vector<32x16xf32>
    %113 = tpu.matmul %111, %112, %cst_125 {dimension_numbers = #tpu.dot_dimension_numbers<[1], [0], [0], [1], [0, 0, 1, 1], [], []>} : vector<32x256xf32>, vector<256x16xf32>, vector<32x16xf32> -> vector<32x16xf32>
    %c0_126 = arith.constant 0 : index
    %c0_127 = arith.constant 0 : index
    %114 = vector.load %arg9[%c0_126, %c0_127] : memref<32x16xf32, #tpu.memory_space<vmem>>, vector<32x16xf32>
    tpu.vector_store %arg9[%c0_126, %c0_127], %113 {strides = array<i32>} : memref<32x16xf32, #tpu.memory_space<vmem>>, vector<32x16xf32>,
    return
  }
  func.func @transform_0(%arg0: i32) -> (i32, i32, i32) {
    %c0_i32 = arith.constant 0 : i32
    %c0_i32_0 = arith.constant 0 : i32
    %c0_i32_1 = arith.constant 0 : i32
    %c0_i32_2 = arith.constant 0 : i32
    return %c0_i32, %c0_i32_0, %c0_i32_1 : i32, i32, i32
  }
  func.func @transform_1(%arg0: i32) -> (i32, i32, i32) {
    %c0_i32 = arith.constant 0 : i32
    %c0_i32_0 = arith.constant 0 : i32
    %c0_i32_1 = arith.constant 0 : i32
    %c0_i32_2 = arith.constant 0 : i32
    return %c0_i32, %c0_i32_0, %c0_i32_1 : i32, i32, i32
  }
  func.func @transform_2(%arg0: i32) -> (i32, i32) {
    %c0_i32 = arith.constant 0 : i32
    %c0_i32_0 = arith.constant 0 : i32
    %c0_i32_1 = arith.constant 0 : i32
    return %c0_i32, %c0_i32_0 : i32, i32
  }
  func.func @transform_3(%arg0: i32) -> (i32, i32, i32) {
    %c0_i32 = arith.constant 0 : i32
    %c0_i32_0 = arith.constant 0 : i32
    %c0_i32_1 = arith.constant 0 : i32
    %c0_i32_2 = arith.constant 0 : i32
    return %c0_i32, %c0_i32_0, %c0_i32_1 : i32, i32, i32
  }
  func.func @transform_4(%arg0: i32) -> (i32, i32) {
    %c0_i32 = arith.constant 0 : i32
    %c0_i32_0 = arith.constant 0 : i32
    %c0_i32_1 = arith.constant 0 : i32
    return %c0_i32, %c0_i32_0 : i32, i32
  }
  func.func @transform_5(%arg0: i32) -> (i32, i32, i32) {
    %c0_i32 = arith.constant 0 : i32
    %c0_i32_0 = arith.constant 0 : i32
    %c0_i32_1 = arith.constant 0 : i32
    %c0_i32_2 = arith.constant 0 : i32
    return %c0_i32, %c0_i32_0, %c0_i32_1 : i32, i32, i32
  }
  func.func @transform_6(%arg0: i32) -> (i32, i32) {
    %c0_i32 = arith.constant 0 : i32
    %c0_i32_0 = arith.constant 0 : i32
    %c0_i32_1 = arith.constant 0 : i32
    return %c0_i32, %c0_i32_0 : i32, i32
  }
  func.func @transform_7(%arg0: i32) -> (i32, i32) {
    %c0_i32 = arith.constant 0 : i32
    %c0_i32_0 = arith.constant 0 : i32
    %c0_i32_1 = arith.constant 0 : i32
    return %c0_i32, %c0_i32_0 : i32, i32
  }
  func.func @transform_8(%arg0: i32) -> (i32, i32) {
    %c0_i32 = arith.constant 0 : i32
    %c0_i32_0 = arith.constant 0 : i32
    %c0_i32_1 = arith.constant 0 : i32
    return %c0_i32, %c0_i32_0 : i32, i32
  }
}

</mosaic_0001>

<llo_original>
// kernel: cnn_regularization_forward.1
$region0: #{cnn_regularization_forward.1}
  #allocation0 [shape = 'u32[]', space=smem, size = 0x4, offset = 0x4, fixed_abs, tag = 'smem constant byte address 0x4 - core index']
  #allocation1 [shape = 'u32[144,128]{1,0:T(1,128)}', space=vmem, size = 0x12000, scoped, tag = 'internal scratch']
  #allocation2 [shape = 'f32[2,26,16]{2,1,0:T(8,128)}', space=vmem, size = 0x8000, scoped, tag = 'scratch operand']
  #allocation3 [shape = 'f32[2,26,256]{2,1,0:T(8,128)}', space=vmem, size = 0x10000, scoped, tag = 'scratch operand']
  %s0 = inlined_call_operand.hbm [shape: f32[2,16,16], index: 0, kind: input, shape index: {}]
  %s1 = inlined_call_operand.hbm [shape: f32[5,16,256], index: 1, kind: input, shape index: {}]
  %s2 = inlined_call_operand.hbm [shape: f32[1,256], index: 2, kind: input, shape index: {}]
  %s3 = inlined_call_operand.hbm [shape: f32[5,256,256], index: 3, kind: input, shape index: {}]
  %s4 = inlined_call_operand.hbm [shape: f32[1,256], index: 4, kind: input, shape index: {}]
  %s5 = inlined_call_operand.hbm [shape: f32[5,256,256], index: 5, kind: input, shape index: {}]
  %s6 = inlined_call_operand.hbm [shape: f32[1,256], index: 6, kind: input, shape index: {}]
  %s7 = inlined_call_operand.vmem [shape: f32[256,16], index: 7, kind: input, shape index: {}]
  %s8 = inlined_call_operand.hbm [shape: f32[32,16], index: 8, kind: output, shape index: {}]
  %s9 = sld [smem:[#allocation0]]
  $region70: #{cnn_regularization_forward.1} parent=0
    _
  %s11 = ssub.s32 1, %s9
  %s12 = scalar_select 0, %s11, %s9
  $region1: #{cnn_regularization_forward.1} parent=0
    #allocation4 [shape = 'u8[16384]{0}', space=vmem, size = 0x4000, scoped, tag = 'input window, operand 0, single buffered']
    #allocation5 [shape = 's32[1]{0}', space=sflag, size = 0x4, scoped, tag = 'scoped memory for cnn_regularization_forward.1']
    #allocation6 [shape = 's32[1]{0}', space=sflag, size = 0x4, scoped, tag = 'scoped memory for cnn_regularization_forward.1']
    #allocation7 [shape = 'u8[81920]{0}', space=vmem, size = 0x14000, scoped, tag = 'input window, operand 1, single buffered']
    #allocation8 [shape = 's32[1]{0}', space=sflag, size = 0x4, scoped, tag = 'scoped memory for cnn_regularization_forward.1']
    #allocation9 [shape = 'u8[1024]{0}', space=vmem, size = 0x400, scoped, tag = 'input window, operand 2, single buffered']
    #allocation10 [shape = 'u8[1310720]{0}', space=vmem, size = 0x140000, scoped, tag = 'input window, operand 3, single buffered']
    #allocation11 [shape = 's32[1]{0}', space=sflag, size = 0x4, scoped, tag = 'scoped memory for cnn_regularization_forward.1']
    #allocation12 [shape = 'u8[1024]{0}', space=vmem, size = 0x400, scoped, tag = 'input window, operand 4, single buffered']
    #allocation13 [shape = 'u8[1310720]{0}', space=vmem, size = 0x140000, scoped, tag = 'input window, operand 5, single buffered']
    #allocation14 [shape = 's32[1]{0}', space=sflag, size = 0x4, scoped, tag = 'scoped memory for cnn_regularization_forward.1']
    #allocation15 [shape = 'u8[1024]{0}', space=vmem, size = 0x400, scoped, tag = 'input window, operand 6, single buffered']
    #allocation16 [shape = 'u8[16384]{0}', space=vmem, size = 0x4000, scoped, tag = 'output window, operand 0, single buffered']
    %13 = vsyncpa [#allocation5], 0
    %14 = vsyncpa [#allocation8], 0
    %15 = vsyncpa [#allocation11], 0
    %16 = vsyncpa [#allocation14], 0
    %17 = vsyncpa [#allocation6], 0
    // Predicated region
    $region2: #{cnn_regularization_forward.1} parent=1 // pred_check
      _
    $region3: #{cnn_regularization_forward.1} parent=1 // pred_check_branch
      %19 = sbr.rel (0) target = $region5
    $region4: #{cnn_regularization_forward.1} parent=1 // pred_region
      %s21 = ssub.s32 512, 512
      %22 = vsyncadd [#allocation5], %s21
      %s23 = sshll.u32 [#allocation4], 4
      %s24 = int_to_ptr.vmem [resolvable:$true] %s23
      %29 = dma.hbm_to_vmem [thread:$0]  %s0, 512, %s24, [#allocation5], 128, 128, 8
    $region5: #{cnn_regularization_forward.1} parent=1 // pred_fallthru
      _
    // Predicated region
    $region6: #{cnn_regularization_forward.1} parent=1 // pred_check
      _
    $region7: #{cnn_regularization_forward.1} parent=1 // pred_check_branch
      %31 = sbr.rel (0) target = $region9
    $region8: #{cnn_regularization_forward.1} parent=1 // pred_region
      %s33 = ssub.s32 2560, 2560
      %34 = vsyncadd [#allocation8], %s33
      %s35 = sshll.u32 [#allocation7], 4
      %s36 = int_to_ptr.vmem [resolvable:$true] %s35
      %41 = dma.hbm_to_vmem [thread:$0]  %s1, 2560, %s36, [#allocation8], 256, 256, 16
    $region9: #{cnn_regularization_forward.1} parent=1 // pred_fallthru
      _
    // Predicated region
    $region10: #{cnn_regularization_forward.1} parent=1 // pred_check
      _
    $region11: #{cnn_regularization_forward.1} parent=1 // pred_check_branch
      %43 = sbr.rel (0) target = $region13
    $region12: #{cnn_regularization_forward.1} parent=1 // pred_region
      %s45 = ssub.s32 32, 32
      %46 = vsyncadd [#allocation8], %s45
      %s48 = sshll.u32 [#allocation9], 4
      %s49 = int_to_ptr.vmem [resolvable:$true] %s48
      %51 = dma.hbm_to_vmem [thread:$0]  %s2, 32, %s49, [#allocation8]
    $region13: #{cnn_regularization_forward.1} parent=1 // pred_fallthru
      _
    // Predicated region
    $region14: #{cnn_regularization_forward.1} parent=1 // pred_check
      _
    $region15: #{cnn_regularization_forward.1} parent=1 // pred_check_branch
      %53 = sbr.rel (0) target = $region17
    $region16: #{cnn_regularization_forward.1} parent=1 // pred_region
      %s55 = ssub.s32 40960, 40960
      %56 = vsyncadd [#allocation11], %s55
      %s57 = sshll.u32 [#allocation10], 4
      %s58 = int_to_ptr.vmem [resolvable:$true] %s57
      %63 = dma.hbm_to_vmem [thread:$0]  %s3, 40960, %s58, [#allocation11], 256, 256, 16
    $region17: #{cnn_regularization_forward.1} parent=1 // pred_fallthru
      _
    // Predicated region
    $region18: #{cnn_regularization_forward.1} parent=1 // pred_check
      _
    $region19: #{cnn_regularization_forward.1} parent=1 // pred_check_branch
      %65 = sbr.rel (0) target = $region21
    $region20: #{cnn_regularization_forward.1} parent=1 // pred_region
      %s67 = ssub.s32 32, 32
      %68 = vsyncadd [#allocation11], %s67
      %s70 = sshll.u32 [#allocation12], 4
      %s71 = int_to_ptr.vmem [resolvable:$true] %s70
      %73 = dma.hbm_to_vmem [thread:$0]  %s4, 32, %s71, [#allocation11]
    $region21: #{cnn_regularization_forward.1} parent=1 // pred_fallthru
      _
    // Predicated region
    $region22: #{cnn_regularization_forward.1} parent=1 // pred_check
      _
    $region23: #{cnn_regularization_forward.1} parent=1 // pred_check_branch
      %75 = sbr.rel (0) target = $region25
    $region24: #{cnn_regularization_forward.1} parent=1 // pred_region
      %s77 = ssub.s32 40960, 40960
      %78 = vsyncadd [#allocation14], %s77
      %s79 = sshll.u32 [#allocation13], 4
      %s80 = int_to_ptr.vmem [resolvable:$true] %s79
      %85 = dma.hbm_to_vmem [thread:$0]  %s5, 40960, %s80, [#allocation14], 256, 256, 16
    $region25: #{cnn_regularization_forward.1} parent=1 // pred_fallthru
      _
    // Predicated region
    $region26: #{cnn_regularization_forward.1} parent=1 // pred_check
      _
    $region27: #{cnn_regularization_forward.1} parent=1 // pred_check_branch
      %87 = sbr.rel (0) target = $region29
    $region28: #{cnn_regularization_forward.1} parent=1 // pred_region
      %s89 = ssub.s32 32, 32
      %90 = vsyncadd [#allocation14], %s89
      %s92 = sshll.u32 [#allocation15], 4
      %s93 = int_to_ptr.vmem [resolvable:$true] %s92
      %95 = dma.hbm_to_vmem [thread:$0]  %s6, 32, %s93, [#allocation14]
    $region29: #{cnn_regularization_forward.1} parent=1 // pred_fallthru
      _
    // Predicated region
    $region30: #{cnn_regularization_forward.1} parent=1 // pred_check
      _
    $region31: #{cnn_regularization_forward.1} parent=1 // pred_check_branch
      %97 = sbr.rel (0) target = $region33
    $region32: #{cnn_regularization_forward.1} parent=1 // pred_region
      _
    $region33: #{cnn_regularization_forward.1} parent=1 // pred_fallthru
      _
    // Predicated region
    $region34: #{cnn_regularization_forward.1} parent=1 // pred_check
      _
    $region35: #{cnn_regularization_forward.1} parent=1 // pred_check_branch
      %99 = sbr.rel (0) target = $region37
    $region36: #{cnn_regularization_forward.1} parent=1 // pred_region
      %100 = dma.done [#allocation5], 512
    $region37: #{cnn_regularization_forward.1} parent=1 // pred_fallthru
      _
    // Predicated region
    $region38: #{cnn_regularization_forward.1} parent=1 // pred_check
      _
    $region39: #{cnn_regularization_forward.1} parent=1 // pred_check_branch
      %102 = sbr.rel (0) target = $region41
    $region40: #{cnn_regularization_forward.1} parent=1 // pred_region
      %103 = dma.done [#allocation8], 2560
    $region41: #{cnn_regularization_forward.1} parent=1 // pred_fallthru
      _
    // Predicated region
    $region42: #{cnn_regularization_forward.1} parent=1 // pred_check
      _
    $region43: #{cnn_regularization_forward.1} parent=1 // pred_check_branch
      %105 = sbr.rel (0) target = $region45
    $region44: #{cnn_regularization_forward.1} parent=1 // pred_region
      %106 = dma.done [#allocation8], 32
    $region45: #{cnn_regularization_forward.1} parent=1 // pred_fallthru
      _
    // Predicated region
    $region46: #{cnn_regularization_forward.1} parent=1 // pred_check
      _
    $region47: #{cnn_regularization_forward.1} parent=1 // pred_check_branch
      %108 = sbr.rel (0) target = $region49
    $region48: #{cnn_regularization_forward.1} parent=1 // pred_region
      %109 = dma.done [#allocation11], 40960
    $region49: #{cnn_regularization_forward.1} parent=1 // pred_fallthru
      _
    // Predicated region
    $region50: #{cnn_regularization_forward.1} parent=1 // pred_check
      _
    $region51: #{cnn_regularization_forward.1} parent=1 // pred_check_branch
      %111 = sbr.rel (0) target = $region53
    $region52: #{cnn_regularization_forward.1} parent=1 // pred_region
      %112 = dma.done [#allocation11], 32
    $region53: #{cnn_regularization_forward.1} parent=1 // pred_fallthru
      _
    // Predicated region
    $region54: #{cnn_regularization_forward.1} parent=1 // pred_check
      _
    $region55: #{cnn_regularization_forward.1} parent=1 // pred_check_branch
      %114 = sbr.rel (0) target = $region57
    $region56: #{cnn_regularization_forward.1} parent=1 // pred_region
      %115 = dma.done [#allocation14], 40960
    $region57: #{cnn_regularization_forward.1} parent=1 // pred_fallthru
      _
    // Predicated region
    $region58: #{cnn_regularization_forward.1} parent=1 // pred_check
      _
    $region59: #{cnn_regularization_forward.1} parent=1 // pred_check_branch
      %117 = sbr.rel (0) target = $region61
    $region60: #{cnn_regularization_forward.1} parent=1 // pred_region
      %118 = dma.done [#allocation14], 32
    $region61: #{cnn_regularization_forward.1} parent=1 // pred_fallthru
      _
    %vm119 = vcmask 130048
    %120 = vst.msk [vmem:[#allocation2] sm:$0xff] %vm119, 0.0
    %121 = vst.msk [vmem:[#allocation2 + $0x8] sm:$0xff] %vm119, 0.0
    %122 = vst.msk [vmem:[#allocation2 + $0x10] sm:$0xff] %vm119, 0.0
    %vm123 = vcmask 123904
    %124 = vst.msk [vmem:[#allocation2 + $0x18] sm:$0x3] %vm123, 0.0
    %125 = vst.msk [vmem:[#allocation2 + $0x20] sm:$0xff] %vm119, 0.0
    %126 = vst.msk [vmem:[#allocation2 + $0x28] sm:$0xff] %vm119, 0.0
    %127 = vst.msk [vmem:[#allocation2 + $0x30] sm:$0xff] %vm119, 0.0
    %128 = vst.msk [vmem:[#allocation2 + $0x38] sm:$0x3] %vm123, 0.0
    %129 = vst [vmem:[#allocation3] sm:$0xff] 0.0
    %130 = vst [vmem:[#allocation3 + $0x8] sm:$0xff] 0.0
    %131 = vst [vmem:[#allocation3 + $0x10] sm:$0xff] 0.0
    %132 = vst [vmem:[#allocation3 + $0x18] sm:$0xff] 0.0
    %133 = vst [vmem:[#allocation3 + $0x20] sm:$0xff] 0.0
    %134 = vst [vmem:[#allocation3 + $0x28] sm:$0xff] 0.0
    %135 = vst [vmem:[#allocation3 + $0x30] sm:$0x3] 0.0
    %136 = vst [vmem:[#allocation3 + $0x38] sm:$0x3] 0.0
    %137 = vst [vmem:[#allocation3 + $0x40] sm:$0xff] 0.0
    %138 = vst [vmem:[#allocation3 + $0x48] sm:$0xff] 0.0
    %139 = vst [vmem:[#allocation3 + $0x50] sm:$0xff] 0.0
    %140 = vst [vmem:[#allocation3 + $0x58] sm:$0xff] 0.0
    %141 = vst [vmem:[#allocation3 + $0x60] sm:$0xff] 0.0
    %142 = vst [vmem:[#allocation3 + $0x68] sm:$0xff] 0.0
    %143 = vst [vmem:[#allocation3 + $0x70] sm:$0x3] 0.0
    %144 = vst [vmem:[#allocation3 + $0x78] sm:$0x3] 0.0
    %v145 = vld [vmem:[#allocation4] sm:$0xff]
    %v146 = vld [vmem:[#allocation4 + $0x8] sm:$0xff]
    %v147 = vld [vmem:[#allocation4 + $0x10] sm:$0xff]
    %v148 = vld [vmem:[#allocation4 + $0x18] sm:$0xff]
    %149 = vst.msk [vmem:[#allocation2 + $0x8] sm:$0xff] %vm119, %v145
    %150 = vst.msk [vmem:[#allocation2 + $0x10] sm:$0xff] %vm119, %v146
    %151 = vst.msk [vmem:[#allocation2 + $0x28] sm:$0xff] %vm119, %v147
    %152 = vst.msk [vmem:[#allocation2 + $0x30] sm:$0xff] %vm119, %v148
    %v153 = vld [vmem:[#allocation2 + $0x6] sm:$0xff]
    %v154 = vld [vmem:[#allocation2 + $0xe] sm:$0xff]
    %v155 = vld [vmem:[#allocation2 + $0x26] sm:$0xff]
    %v156 = vld [vmem:[#allocation2 + $0x2e] sm:$0xff]
    %v157 = vld [vmem:[#allocation7] sm:$0xff]
    %v158 = vld [vmem:[#allocation7 + $0x8] sm:$0xff]
    %v159 = vld [vmem:[#allocation7 + $0x10] sm:$0xff]
    %v160 = vld [vmem:[#allocation7 + $0x18] sm:$0xff]
    %v161 = vld [vmem:[#allocation2 + $0x7] sm:$0xff]
    %v162 = vld [vmem:[#allocation2 + $0xf] sm:$0xff]
    %v163 = vld [vmem:[#allocation2 + $0x27] sm:$0xff]
    %v164 = vld [vmem:[#allocation2 + $0x2f] sm:$0xff]
    %s165 = scalar_lea.vmem [#allocation7], 32
    %v166 = vld [vmem:[%s165] sm:$0xff]
    %v167 = vld [vmem:[%s165 + $0x8] sm:$0xff]
    %v168 = vld [vmem:[%s165 + $0x10] sm:$0xff]
    %v169 = vld [vmem:[%s165 + $0x18] sm:$0xff]
    %v171 = vsel %vm119, %v161, 0
    %v174 = vsel %vm119, %v162, 0
    %v177 = vsel %vm119, %v163, 0
    %v180 = vsel %vm119, %v164, 0
    %182 = vmatprep.subr.mxu0 %v167
    %183 = vmatpush1.msra.mxu0 %v166
    %184 = vmatprep.subr.mxu0 %v169
    %185 = vmatpush1.msra.mxu0 %v168
    %186 = vmatprep.subr.mxu0 0.0
    %187 = vmatpush1.msra.mxu0 0.0
    %188 = vmatprep.subr.mxu0 0.0
    %189 = vmatpush1.msra.mxu0 0.0
    %190 = vmatprep.subr.mxu0 0.0
    %191 = vmatpush1.msra.mxu0 0.0
    %192 = vmatprep.subr.mxu0 0.0
    %193 = vmatpush1.msra.mxu0 0.0
    %194 = vmatprep.subr.mxu0 0.0
    %195 = vmatpush1.msra.mxu0 0.0
    %196 = vmatprep.subr.mxu0 0.0
    %197 = vmatpush1.msra.mxu0 0.0
    %198 = vmatprep.subr.mxu0 0.0
    %199 = vmatpush1.msra.mxu0 0.0
    %200 = vmatprep.subr.mxu0 0.0
    %201 = vmatpush1.msra.mxu0 0.0
    %202 = vmatprep.subr.mxu0 0.0
    %203 = vmatpush1.msra.mxu0 0.0
    %204 = vmatprep.subr.mxu0 0.0
    %205 = vmatpush1.msra.mxu0 0.0
    %206 = vmatprep.subr.mxu0 0.0
    %207 = vmatpush1.msra.mxu0 0.0
    %208 = vmatprep.subr.mxu0 0.0
    %209 = vmatpush1.msra.mxu0 0.0
    %210 = vmatprep.subr.mxu0 0.0
    %211 = vmatpush1.msra.mxu0 0.0
    %212 = vmatprep.subr.mxu0 0.0
    %213 = vmatpush1.msra.mxu0 0.0
    %214 = vmatprep.subr.mxu0 0.0
    %215 = vmatpush1.msra.mxu0 0.0
    %216 = vmatprep.subr.mxu0 0.0
    %217 = vmatpush1.msra.mxu0 0.0
    %218 = vmatprep.subr.mxu0 0.0
    %219 = vmatpush1.msra.mxu0 0.0
    %220 = vmatprep.subr.mxu0 0.0
    %221 = vmatpush1.msra.mxu0 0.0
    %222 = vmatprep.subr.mxu0 0.0
    %223 = vmatpush1.msra.mxu0 0.0
    %224 = vmatprep.subr.mxu0 0.0
    %225 = vmatpush1.msra.mxu0 0.0
    %226 = vmatprep.subr.mxu0 0.0
    %227 = vmatpush1.msra.mxu0 0.0
    %228 = vmatprep.subr.mxu0 0.0
    %229 = vmatpush1.msra.mxu0 0.0
    %230 = vmatprep.subr.mxu0 0.0
    %231 = vmatpush1.msra.mxu0 0.0
    %232 = vmatprep.subr.mxu0 0.0
    %233 = vmatpush1.msra.mxu0 0.0
    %234 = vmatprep.subr.mxu0 0.0
    %235 = vmatpush1.msra.mxu0 0.0
    %236 = vmatprep.subr.mxu0 0.0
    %237 = vmatpush1.msra.mxu0 0.0
    %238 = vmatprep.subr.mxu0 0.0
    %239 = vmatpush1.msra.mxu0 0.0
    %240 = vmatprep.subr.mxu0 0.0
    %241 = vmatpush1.msra.mxu0 0.0
    %242 = vmatprep.subr.mxu0 0.0
    %243 = vmatpush1.msra.mxu0 0.0
    %244 = vmatprep.subr.mxu0 0.0
    %245 = vmatpush1.msra.mxu0 0.0
    %246 = vmatprep.mubr.f32.mxu0 0.0
    %247 = vmatmul.mubr.f32.gmra.mrb[0].mxu0 %v171
    %v248 = vpop.f32.mrb[0].mxu0
    %v249 = vadd.f32 0.0, %v248
    %v250 = vpop.f32.mrb[0].mxu0
    %v251 = vadd.f32 0.0, %v250
    %252 = vmatprep.mubr.f32.mxu0 0.0
    %253 = vmatmul.mubr.f32.gmra.mrb[0].mxu0 %v174
    %v254 = vpop.f32.mrb[0].mxu0
    %v255 = vadd.f32 0.0, %v254
    %v256 = vpop.f32.mrb[0].mxu0
    %v257 = vadd.f32 0.0, %v256
    %258 = vmatprep.mubr.f32.mxu0 0.0
    %259 = vmatmul.mubr.f32.gmra.mrb[0].mxu0 %v177
    %v260 = vpop.f32.mrb[0].mxu0
    %v261 = vadd.f32 0.0, %v260
    %v262 = vpop.f32.mrb[0].mxu0
    %v263 = vadd.f32 0.0, %v262
    %264 = vmatprep.mubr.f32.mxu0 0.0
    %265 = vmatmul.mubr.f32.gmra.mrb[0].mxu0 %v180
    %v266 = vpop.f32.mrb[0].mxu0
    %v267 = vadd.f32 0.0, %v266
    %v268 = vpop.f32.mrb[0].mxu0
    %v269 = vadd.f32 0.0, %v268
    %270 = vdwg.mxu0
    %v272 = vsel %vm119, %v153, 0
    %v275 = vsel %vm119, %v154, 0
    %v278 = vsel %vm119, %v155, 0
    %v281 = vsel %vm119, %v156, 0
    %283 = vmatprep.subr.mxu0 %v158
    %284 = vmatpush1.msra.mxu0 %v157
    %285 = vmatprep.subr.mxu0 %v160
    %286 = vmatpush1.msra.mxu0 %v159
    %287 = vmatprep.subr.mxu0 0.0
    %288 = vmatpush1.msra.mxu0 0.0
    %289 = vmatprep.subr.mxu0 0.0
    %290 = vmatpush1.msra.mxu0 0.0
    %291 = vmatprep.subr.mxu0 0.0
    %292 = vmatpush1.msra.mxu0 0.0
    %293 = vmatprep.subr.mxu0 0.0
    %294 = vmatpush1.msra.mxu0 0.0
    %295 = vmatprep.subr.mxu0 0.0
    %296 = vmatpush1.msra.mxu0 0.0
    %297 = vmatprep.subr.mxu0 0.0
    %298 = vmatpush1.msra.mxu0 0.0
    %299 = vmatprep.subr.mxu0 0.0
    %300 = vmatpush1.msra.mxu0 0.0
    %301 = vmatprep.subr.mxu0 0.0
    %302 = vmatpush1.msra.mxu0 0.0
    %303 = vmatprep.subr.mxu0 0.0
    %304 = vmatpush1.msra.mxu0 0.0
    %305 = vmatprep.subr.mxu0 0.0
    %306 = vmatpush1.msra.mxu0 0.0
    %307 = vmatprep.subr.mxu0 0.0
    %308 = vmatpush1.msra.mxu0 0.0
    %309 = vmatprep.subr.mxu0 0.0
    %310 = vmatpush1.msra.mxu0 0.0
    %311 = vmatprep.subr.mxu0 0.0
    %312 = vmatpush1.msra.mxu0 0.0
    %313 = vmatprep.subr.mxu0 0.0
    %314 = vmatpush1.msra.mxu0 0.0
    %315 = vmatprep.subr.mxu0 0.0
    %316 = vmatpush1.msra.mxu0 0.0
    %317 = vmatprep.subr.mxu0 0.0
    %318 = vmatpush1.msra.mxu0 0.0
    %319 = vmatprep.subr.mxu0 0.0
    %320 = vmatpush1.msra.mxu0 0.0
    %321 = vmatprep.subr.mxu0 0.0
    %322 = vmatpush1.msra.mxu0 0.0
    %323 = vmatprep.subr.mxu0 0.0
    %324 = vmatpush1.msra.mxu0 0.0
    %325 = vmatprep.subr.mxu0 0.0
    %326 = vmatpush1.msra.mxu0 0.0
    %327 = vmatprep.subr.mxu0 0.0
    %328 = vmatpush1.msra.mxu0 0.0
    %329 = vmatprep.subr.mxu0 0.0
    %330 = vmatpush1.msra.mxu0 0.0
    %331 = vmatprep.subr.mxu0 0.0
    %332 = vmatpush1.msra.mxu0 0.0
    %333 = vmatprep.subr.mxu0 0.0
    %334 = vmatpush1.msra.mxu0 0.0
    %335 = vmatprep.subr.mxu0 0.0
    %336 = vmatpush1.msra.mxu0 0.0
    %337 = vmatprep.subr.mxu0 0.0
    %338 = vmatpush1.msra.mxu0 0.0
    %339 = vmatprep.subr.mxu0 0.0
    %340 = vmatpush1.msra.mxu0 0.0
    %341 = vmatprep.subr.mxu0 0.0
    %342 = vmatpush1.msra.mxu0 0.0
    %343 = vmatprep.subr.mxu0 0.0
    %344 = vmatpush1.msra.mxu0 0.0
    %345 = vmatprep.subr.mxu0 0.0
    %346 = vmatpush1.msra.mxu0 0.0
    %347 = vmatprep.mubr.f32.mxu0 0.0
    %348 = vmatmul.mubr.f32.gmra.mrb[0].mxu0 %v272
    %v349 = vpop.f32.mrb[0].mxu0
    %v350 = vadd.f32 %v249, %v349
    %v351 = vpop.f32.mrb[0].mxu0
    %v352 = vadd.f32 %v251, %v351
    %353 = vmatprep.mubr.f32.mxu0 0.0
    %354 = vmatmul.mubr.f32.gmra.mrb[0].mxu0 %v275
    %v355 = vpop.f32.mrb[0].mxu0
    %v356 = vadd.f32 %v255, %v355
    %v357 = vpop.f32.mrb[0].mxu0
    %v358 = vadd.f32 %v257, %v357
    %359 = vmatprep.mubr.f32.mxu0 0.0
    %360 = vmatmul.mubr.f32.gmra.mrb[0].mxu0 %v278
    %v361 = vpop.f32.mrb[0].mxu0
    %v362 = vadd.f32 %v261, %v361
    %v363 = vpop.f32.mrb[0].mxu0
    %v364 = vadd.f32 %v263, %v363
    %365 = vmatprep.mubr.f32.mxu0 0.0
    %366 = vmatmul.mubr.f32.gmra.mrb[0].mxu0 %v281
    %v367 = vpop.f32.mrb[0].mxu0
    %v368 = vadd.f32 %v267, %v367
    %v369 = vpop.f32.mrb[0].mxu0
    %v370 = vadd.f32 %v269, %v369
    %371 = vdwg.mxu0
    %v372 = vld [vmem:[#allocation2 + $0x8] sm:$0xff]
    %v373 = vld [vmem:[#allocation2 + $0x10] sm:$0xff]
    %v374 = vld [vmem:[#allocation2 + $0x28] sm:$0xff]
    %v375 = vld [vmem:[#allocation2 + $0x30] sm:$0xff]
    %s376 = scalar_lea.vmem [#allocation7], 64
    %v377 = vld [vmem:[%s376] sm:$0xff]
    %v378 = vld [vmem:[%s376 + $0x8] sm:$0xff]
    %v379 = vld [vmem:[%s376 + $0x10] sm:$0xff]
    %v380 = vld [vmem:[%s376 + $0x18] sm:$0xff]
    %v382 = vsel %vm119, %v372, 0
    %v385 = vsel %vm119, %v373, 0
    %v388 = vsel %vm119, %v374, 0
    %v391 = vsel %vm119, %v375, 0
    %393 = vmatprep.subr.mxu0 %v378
    %394 = vmatpush1.msra.mxu0 %v377
    %395 = vmatprep.subr.mxu0 %v380
    %396 = vmatpush1.msra.mxu0 %v379
    %397 = vmatprep.subr.mxu0 0.0
    %398 = vmatpush1.msra.mxu0 0.0
    %399 = vmatprep.subr.mxu0 0.0
    %400 = vmatpush1.msra.mxu0 0.0
    %401 = vmatprep.subr.mxu0 0.0
    %402 = vmatpush1.msra.mxu0 0.0
    %403 = vmatprep.subr.mxu0 0.0
    %404 = vmatpush1.msra.mxu0 0.0
    %405 = vmatprep.subr.mxu0 0.0
    %406 = vmatpush1.msra.mxu0 0.0
    %407 = vmatprep.subr.mxu0 0.0
    %408 = vmatpush1.msra.mxu0 0.0
    %409 = vmatprep.subr.mxu0 0.0
    %410 = vmatpush1.msra.mxu0 0.0
    %411 = vmatprep.subr.mxu0 0.0
    %412 = vmatpush1.msra.mxu0 0.0
    %413 = vmatprep.subr.mxu0 0.0
    %414 = vmatpush1.msra.mxu0 0.0
    %415 = vmatprep.subr.mxu0 0.0
    %416 = vmatpush1.msra.mxu0 0.0
    %417 = vmatprep.subr.mxu0 0.0
    %418 = vmatpush1.msra.mxu0 0.0
    %419 = vmatprep.subr.mxu0 0.0
    %420 = vmatpush1.msra.mxu0 0.0
    %421 = vmatprep.subr.mxu0 0.0
    %422 = vmatpush1.msra.mxu0 0.0
    %423 = vmatprep.subr.mxu0 0.0
    %424 = vmatpush1.msra.mxu0 0.0
    %425 = vmatprep.subr.mxu0 0.0
    %426 = vmatpush1.msra.mxu0 0.0
    %427 = vmatprep.subr.mxu0 0.0
    %428 = vmatpush1.msra.mxu0 0.0
    %429 = vmatprep.subr.mxu0 0.0
    %430 = vmatpush1.msra.mxu0 0.0
    %431 = vmatprep.subr.mxu0 0.0
    %432 = vmatpush1.msra.mxu0 0.0
    %433 = vmatprep.subr.mxu0 0.0
    %434 = vmatpush1.msra.mxu0 0.0
    %435 = vmatprep.subr.mxu0 0.0
    %436 = vmatpush1.msra.mxu0 0.0
    %437 = vmatprep.subr.mxu0 0.0
    %438 = vmatpush1.msra.mxu0 0.0
    %439 = vmatprep.subr.mxu0 0.0
    %440 = vmatpush1.msra.mxu0 0.0
    %441 = vmatprep.subr.mxu0 0.0
    %442 = vmatpush1.msra.mxu0 0.0
    %443 = vmatprep.subr.mxu0 0.0
    %444 = vmatpush1.msra.mxu0 0.0
    %445 = vmatprep.subr.mxu0 0.0
    %446 = vmatpush1.msra.mxu0 0.0
    %447 = vmatprep.subr.mxu0 0.0
    %448 = vmatpush1.msra.mxu0 0.0
    %449 = vmatprep.subr.mxu0 0.0
    %450 = vmatpush1.msra.mxu0 0.0
    %451 = vmatprep.subr.mxu0 0.0
    %452 = vmatpush1.msra.mxu0 0.0
    %453 = vmatprep.subr.mxu0 0.0
    %454 = vmatpush1.msra.mxu0 0.0
    %455 = vmatprep.subr.mxu0 0.0
    %456 = vmatpush1.msra.mxu0 0.0
    %457 = vmatprep.mubr.f32.mxu0 0.0
    %458 = vmatmul.mubr.f32.gmra.mrb[0].mxu0 %v382
    %v459 = vpop.f32.mrb[0].mxu0
    %v460 = vadd.f32 0.0, %v459
    %v461 = vpop.f32.mrb[0].mxu0
    %v462 = vadd.f32 0.0, %v461
    %463 = vmatprep.mubr.f32.mxu0 0.0
    %464 = vmatmul.mubr.f32.gmra.mrb[0].mxu0 %v385
    %v465 = vpop.f32.mrb[0].mxu0
    %v466 = vadd.f32 0.0, %v465
    %v467 = vpop.f32.mrb[0].mxu0
    %v468 = vadd.f32 0.0, %v467
    %469 = vmatprep.mubr.f32.mxu0 0.0
    %470 = vmatmul.mubr.f32.gmra.mrb[0].mxu0 %v388
    %v471 = vpop.f32.mrb[0].mxu0
    %v472 = vadd.f32 0.0, %v471
    %v473 = vpop.f32.mrb[0].mxu0
    %v474 = vadd.f32 0.0, %v473
    %475 = vmatprep.mubr.f32.mxu0 0.0
    %476 = vmatmul.mubr.f32.gmra.mrb[0].mxu0 %v391
    %v477 = vpop.f32.mrb[0].mxu0
    %v478 = vadd.f32 0.0, %v477
    %v479 = vpop.f32.mrb[0].mxu0
    %v480 = vadd.f32 0.0, %v479
    %481 = vdwg.mxu0
    %v482 = vadd.f32 %v350, %v460
    %v483 = vadd.f32 %v352, %v462
    %v484 = vadd.f32 %v356, %v466
    %v485 = vadd.f32 %v358, %v468
    %v486 = vadd.f32 %v362, %v472
    %v487 = vadd.f32 %v364, %v474
    %v488 = vadd.f32 %v368, %v478
    %v489 = vadd.f32 %v370, %v480
    %v490 = vld [vmem:[#allocation2 + $0x9] sm:$0xff]
    %v491 = vld [vmem:[#allocation2 + $0x11] sm:$0xff]
    %v492 = vld [vmem:[#allocation2 + $0x29] sm:$0xff]
    %v493 = vld [vmem:[#allocation2 + $0x31] sm:$0xff]
    %s494 = scalar_lea.vmem [#allocation7], 96
    %v495 = vld [vmem:[%s494] sm:$0xff]
    %v496 = vld [vmem:[%s494 + $0x8] sm:$0xff]
    %v497 = vld [vmem:[%s494 + $0x10] sm:$0xff]
    %v498 = vld [vmem:[%s494 + $0x18] sm:$0xff]
    %v500 = vsel %vm119, %v490, 0
    %v503 = vsel %vm119, %v491, 0
    %v506 = vsel %vm119, %v492, 0
    %v509 = vsel %vm119, %v493, 0
    %511 = vmatprep.subr.mxu0 %v496
    %512 = vmatpush1.msra.mxu0 %v495
    %513 = vmatprep.subr.mxu0 %v498
    %514 = vmatpush1.msra.mxu0 %v497
    %515 = vmatprep.subr.mxu0 0.0
    %516 = vmatpush1.msra.mxu0 0.0
    %517 = vmatprep.subr.mxu0 0.0
    %518 = vmatpush1.msra.mxu0 0.0
    %519 = vmatprep.subr.mxu0 0.0
    %520 = vmatpush1.msra.mxu0 0.0
    %521 = vmatprep.subr.mxu0 0.0
    %522 = vmatpush1.msra.mxu0 0.0
    %523 = vmatprep.subr.mxu0 0.0
    %524 = vmatpush1.msra.mxu0 0.0
    %525 = vmatprep.subr.mxu0 0.0
    %526 = vmatpush1.msra.mxu0 0.0
    %527 = vmatprep.subr.mxu0 0.0
    %528 = vmatpush1.msra.mxu0 0.0
    %529 = vmatprep.subr.mxu0 0.0
    %530 = vmatpush1.msra.mxu0 0.0
    %531 = vmatprep.subr.mxu0 0.0
    %532 = vmatpush1.msra.mxu0 0.0
    %533 = vmatprep.subr.mxu0 0.0
    %534 = vmatpush1.msra.mxu0 0.0
    %535 = vmatprep.subr.mxu0 0.0
    %536 = vmatpush1.msra.mxu0 0.0
    %537 = vmatprep.subr.mxu0 0.0
    %538 = vmatpush1.msra.mxu0 0.0
    %539 = vmatprep.subr.mxu0 0.0
    %540 = vmatpush1.msra.mxu0 0.0
    %541 = vmatprep.subr.mxu0 0.0
    %542 = vmatpush1.msra.mxu0 0.0
    %543 = vmatprep.subr.mxu0 0.0
    %544 = vmatpush1.msra.mxu0 0.0
    %545 = vmatprep.subr.mxu0 0.0
    %546 = vmatpush1.msra.mxu0 0.0
    %547 = vmatprep.subr.mxu0 0.0
    %548 = vmatpush1.msra.mxu0 0.0
    %549 = vmatprep.subr.mxu0 0.0
    %550 = vmatpush1.msra.mxu0 0.0
    %551 = vmatprep.subr.mxu0 0.0
    %552 = vmatpush1.msra.mxu0 0.0
    %553 = vmatprep.subr.mxu0 0.0
    %554 = vmatpush1.msra.mxu0 0.0
    %555 = vmatprep.subr.mxu0 0.0
    %556 = vmatpush1.msra.mxu0 0.0
    %557 = vmatprep.subr.mxu0 0.0
    %558 = vmatpush1.msra.mxu0 0.0
    %559 = vmatprep.subr.mxu0 0.0
    %560 = vmatpush1.msra.mxu0 0.0
    %561 = vmatprep.subr.mxu0 0.0
    %562 = vmatpush1.msra.mxu0 0.0
    %563 = vmatprep.subr.mxu0 0.0
    %564 = vmatpush1.msra.mxu0 0.0
    %565 = vmatprep.subr.mxu0 0.0
    %566 = vmatpush1.msra.mxu0 0.0
    %567 = vmatprep.subr.mxu0 0.0
    %568 = vmatpush1.msra.mxu0 0.0
    %569 = vmatprep.subr.mxu0 0.0
    %570 = vmatpush1.msra.mxu0 0.0
    %571 = vmatprep.subr.mxu0 0.0
    %572 = vmatpush1.msra.mxu0 0.0
    %573 = vmatprep.subr.mxu0 0.0
    %574 = vmatpush1.msra.mxu0 0.0
    %575 = vmatprep.mubr.f32.mxu0 0.0
    %576 = vmatmul.mubr.f32.gmra.mrb[0].mxu0 %v500
    %v577 = vpop.f32.mrb[0].mxu0
    %v578 = vadd.f32 0.0, %v577
    %v579 = vpop.f32.mrb[0].mxu0
    %v580 = vadd.f32 0.0, %v579
    %581 = vmatprep.mubr.f32.mxu0 0.0
    %582 = vmatmul.mubr.f32.gmra.mrb[0].mxu0 %v503
    %v583 = vpop.f32.mrb[0].mxu0
    %v584 = vadd.f32 0.0, %v583
    %v585 = vpop.f32.mrb[0].mxu0
    %v586 = vadd.f32 0.0, %v585
    %587 = vmatprep.mubr.f32.mxu0 0.0
    %588 = vmatmul.mubr.f32.gmra.mrb[0].mxu0 %v506
    %v589 = vpop.f32.mrb[0].mxu0
    %v590 = vadd.f32 0.0, %v589
    %v591 = vpop.f32.mrb[0].mxu0
    %v592 = vadd.f32 0.0, %v591
    %593 = vmatprep.mubr.f32.mxu0 0.0
    %594 = vmatmul.mubr.f32.gmra.mrb[0].mxu0 %v509
    %v595 = vpop.f32.mrb[0].mxu0
    %v596 = vadd.f32 0.0, %v595
    %v597 = vpop.f32.mrb[0].mxu0
    %v598 = vadd.f32 0.0, %v597
    %599 = vdwg.mxu0
    %v600 = vadd.f32 %v482, %v578
    %v601 = vadd.f32 %v483, %v580
    %v602 = vadd.f32 %v484, %v584
    %v603 = vadd.f32 %v485, %v586
    %v604 = vadd.f32 %v486, %v590
    %v605 = vadd.f32 %v487, %v592
    %v606 = vadd.f32 %v488, %v596
    %v607 = vadd.f32 %v489, %v598
    %v608 = vld [vmem:[#allocation2 + $0xa] sm:$0xff]
    %v609 = vld [vmem:[#allocation2 + $0x12] sm:$0xff]
    %v610 = vld [vmem:[#allocation2 + $0x2a] sm:$0xff]
    %v611 = vld [vmem:[#allocation2 + $0x32] sm:$0xff]
    %s612 = scalar_lea.vmem [#allocation7], 128
    %v613 = vld [vmem:[%s612] sm:$0xff]
    %v614 = vld [vmem:[%s612 + $0x8] sm:$0xff]
    %v615 = vld [vmem:[%s612 + $0x10] sm:$0xff]
    %v616 = vld [vmem:[%s612 + $0x18] sm:$0xff]
    %v618 = vsel %vm119, %v608, 0
    %v621 = vsel %vm119, %v609, 0
    %v624 = vsel %vm119, %v610, 0
    %v627 = vsel %vm119, %v611, 0
    %629 = vmatprep.subr.mxu0 %v614
    %630 = vmatpush1.msra.mxu0 %v613
    %631 = vmatprep.subr.mxu0 %v616
    %632 = vmatpush1.msra.mxu0 %v615
    %633 = vmatprep.subr.mxu0 0.0
    %634 = vmatpush1.msra.mxu0 0.0
    %635 = vmatprep.subr.mxu0 0.0
    %636 = vmatpush1.msra.mxu0 0.0
    %637 = vmatprep.subr.mxu0 0.0
    %638 = vmatpush1.msra.mxu0 0.0
    %639 = vmatprep.subr.mxu0 0.0
    %640 = vmatpush1.msra.mxu0 0.0
    %641 = vmatprep.subr.mxu0 0.0
    %642 = vmatpush1.msra.mxu0 0.0
    %643 = vmatprep.subr.mxu0 0.0
    %644 = vmatpush1.msra.mxu0 0.0
    %645 = vmatprep.subr.mxu0 0.0
    %646 = vmatpush1.msra.mxu0 0.0
    %647 = vmatprep.subr.mxu0 0.0
    %648 = vmatpush1.msra.mxu0 0.0
    %649 = vmatprep.subr.mxu0 0.0
    %650 = vmatpush1.msra.mxu0 0.0
    %651 = vmatprep.subr.mxu0 0.0
    %652 = vmatpush1.msra.mxu0 0.0
    %653 = vmatprep.subr.mxu0 0.0
    %654 = vmatpush1.msra.mxu0 0.0
    %655 = vmatprep.subr.mxu0 0.0
    %656 = vmatpush1.msra.mxu0 0.0
    %657 = vmatprep.subr.mxu0 0.0
    %658 = vmatpush1.msra.mxu0 0.0
    %659 = vmatprep.subr.mxu0 0.0
    %660 = vmatpush1.msra.mxu0 0.0
    %661 = vmatprep.subr.mxu0 0.0
    %662 = vmatpush1.msra.mxu0 0.0
    %663 = vmatprep.subr.mxu0 0.0
    %664 = vmatpush1.msra.mxu0 0.0
    %665 = vmatprep.subr.mxu0 0.0
    %666 = vmatpush1.msra.mxu0 0.0
    %667 = vmatprep.subr.mxu0 0.0
    %668 = vmatpush1.msra.mxu0 0.0
    %669 = vmatprep.subr.mxu0 0.0
    %670 = vmatpush1.msra.mxu0 0.0
    %671 = vmatprep.subr.mxu0 0.0
    %672 = vmatpush1.msra.mxu0 0.0
    %673 = vmatprep.subr.mxu0 0.0
    %674 = vmatpush1.msra.mxu0 0.0
    %675 = vmatprep.subr.mxu0 0.0
    %676 = vmatpush1.msra.mxu0 0.0
    %677 = vmatprep.subr.mxu0 0.0
    %678 = vmatpush1.msra.mxu0 0.0
    %679 = vmatprep.subr.mxu0 0.0
    %680 = vmatpush1.msra.mxu0 0.0
    %681 = vmatprep.subr.mxu0 0.0
    %682 = vmatpush1.msra.mxu0 0.0
    %683 = vmatprep.subr.mxu0 0.0
    %684 = vmatpush1.msra.mxu0 0.0
    %685 = vmatprep.subr.mxu0 0.0
    %686 = vmatpush1.msra.mxu0 0.0
    %687 = vmatprep.subr.mxu0 0.0
    %688 = vmatpush1.msra.mxu0 0.0
    %689 = vmatprep.subr.mxu0 0.0
    %690 = vmatpush1.msra.mxu0 0.0
    %691 = vmatprep.subr.mxu0 0.0
    %692 = vmatpush1.msra.mxu0 0.0
    %693 = vmatprep.mubr.f32.mxu0 0.0
    %694 = vmatmul.mubr.f32.gmra.mrb[0].mxu0 %v618
    %v695 = vpop.f32.mrb[0].mxu0
    %v696 = vadd.f32 0.0, %v695
    %v697 = vpop.f32.mrb[0].mxu0
    %v698 = vadd.f32 0.0, %v697
    %699 = vmatprep.mubr.f32.mxu0 0.0
    %700 = vmatmul.mubr.f32.gmra.mrb[0].mxu0 %v621
    %v701 = vpop.f32.mrb[0].mxu0
    %v702 = vadd.f32 0.0, %v701
    %v703 = vpop.f32.mrb[0].mxu0
    %v704 = vadd.f32 0.0, %v703
    %705 = vmatprep.mubr.f32.mxu0 0.0
    %706 = vmatmul.mubr.f32.gmra.mrb[0].mxu0 %v624
    %v707 = vpop.f32.mrb[0].mxu0
    %v708 = vadd.f32 0.0, %v707
    %v709 = vpop.f32.mrb[0].mxu0
    %v710 = vadd.f32 0.0, %v709
    %711 = vmatprep.mubr.f32.mxu0 0.0
    %712 = vmatmul.mubr.f32.gmra.mrb[0].mxu0 %v627
    %v713 = vpop.f32.mrb[0].mxu0
    %v714 = vadd.f32 0.0, %v713
    %v715 = vpop.f32.mrb[0].mxu0
    %v716 = vadd.f32 0.0, %v715
    %717 = vdwg.mxu0
    %v718 = vadd.f32 %v600, %v696
    %v719 = vadd.f32 %v601, %v698
    %v720 = vadd.f32 %v602, %v702
    %v721 = vadd.f32 %v603, %v704
    %v722 = vadd.f32 %v604, %v708
    %v723 = vadd.f32 %v605, %v710
    %v724 = vadd.f32 %v606, %v714
    %v725 = vadd.f32 %v607, %v716
    %v726 = vld [vmem:[#allocation9] sm:$0x3]
    %v728 = vlaneseq
    %v729 = vshrl.u32 %v728, 7
    %v730 = vsub.s32 0, %v729
    %v731 = vrot.slane %v726, %v730
    %v732 = vlaneseq
    %v733 = vshrl.u32 %v732, 7
    %v734 = vsub.s32 1, %v733
    %v735 = vrot.slane %v726, %v734
    %v738 = vadd.f32 %v718, %v731
    %v739 = vadd.f32 %v719, %v735
    %v740 = vadd.f32 %v720, %v731
    %v741 = vadd.f32 %v721, %v735
    %v742 = vadd.f32 %v722, %v731
    %v743 = vadd.f32 %v723, %v735
    %v744 = vadd.f32 %v724, %v731
    %v745 = vadd.f32 %v725, %v735
    %v746 = vmax.f32 %v738, 0.0
    %v747 = vmax.f32 %v739, 0.0
    %v748 = vmax.f32 %v740, 0.0
    %v749 = vmax.f32 %v741, 0.0
    %v750 = vmax.f32 %v742, 0.0
    %v751 = vmax.f32 %v743, 0.0
    %v752 = vmax.f32 %v744, 0.0
    %v753 = vmax.f32 %v745, 0.0
    %754 = vst [vmem:[#allocation3 + $0x10] sm:$0xff] %v746
    %755 = vst [vmem:[#allocation3 + $0x18] sm:$0xff] %v747
    %756 = vst [vmem:[#allocation3 + $0x20] sm:$0xff] %v748
    %757 = vst [vmem:[#allocation3 + $0x28] sm:$0xff] %v749
    %758 = vst [vmem:[#allocation3 + $0x50] sm:$0xff] %v750
    %759 = vst [vmem:[#allocation3 + $0x58] sm:$0xff] %v751
    %760 = vst [vmem:[#allocation3 + $0x60] sm:$0xff] %v752
    %761 = vst [vmem:[#allocation3 + $0x68] sm:$0xff] %v753
    %v762 = vld [vmem:[#allocation3] sm:$0xc0]
    %v763 = vld [vmem:[#allocation3 + $0x8] sm:$0xc0]
    %v764 = vld [vmem:[#allocation3 + $0x10] sm:$0xff]
    %v765 = vld [vmem:[#allocation3 + $0x18] sm:$0xff]
    %v766 = vld [vmem:[#allocation3 + $0x20] sm:$0x3f]
    %v767 = vld [vmem:[#allocation3 + $0x28] sm:$0x3f]
    %v768 = vld [vmem:[#allocation3 + $0x40] sm:$0xc0]
    %v769 = vld [vmem:[#allocation3 + $0x48] sm:$0xc0]
    %v770 = vld [vmem:[#allocation3 + $0x50] sm:$0xff]
    %v771 = vld [vmem:[#allocation3 + $0x58] sm:$0xff]
    %v772 = vld [vmem:[#allocation3 + $0x60] sm:$0x3f]
    %v773 = vld [vmem:[#allocation3 + $0x68] sm:$0x3f]
    %vm786 = vcmask 1041408
    %v787 = vrot.slane %v762, 6
    %v788 = vrot.slane %v764, 6
    %v789 = vsel %vm786, %v787, %v788
    %v790 = vrot.slane %v763, 6
    %v791 = vrot.slane %v765, 6
    %v792 = vsel %vm786, %v790, %v791
    %v793 = vrot.slane %v766, 6
    %v794 = vsel %vm786, %v788, %v793
    %v795 = vrot.slane %v767, 6
    %v796 = vsel %vm786, %v791, %v795
    %v797 = vrot.slane %v768, 6
    %v798 = vrot.slane %v770, 6
    %v799 = vsel %vm786, %v797, %v798
    %v800 = vrot.slane %v769, 6
    %v801 = vrot.slane %v771, 6
    %v802 = vsel %vm786, %v800, %v801
    %v803 = vrot.slane %v772, 6
    %v804 = vsel %vm786, %v798, %v803
    %v805 = vrot.slane %v773, 6
    %v806 = vsel %vm786, %v801, %v805
    %v815 = vld [vmem:[#allocation10] sm:$0xff]
    %v816 = vld [vmem:[#allocation10 + $0x8] sm:$0xff]
    %v817 = vld [vmem:[#allocation10 + $0x10] sm:$0xff]
    %v818 = vld [vmem:[#allocation10 + $0x18] sm:$0xff]
    %v819 = vld [vmem:[#allocation10 + $0x20] sm:$0xff]
    %v820 = vld [vmem:[#allocation10 + $0x28] sm:$0xff]
    %v821 = vld [vmem:[#allocation10 + $0x30] sm:$0xff]
    %v822 = vld [vmem:[#allocation10 + $0x38] sm:$0xff]
    %v823 = vld [vmem:[#allocation10 + $0x40] sm:$0xff]
    %v824 = vld [vmem:[#allocation10 + $0x48] sm:$0xff]
    %v825 = vld [vmem:[#allocation10 + $0x50] sm:$0xff]
    %v826 = vld [vmem:[#allocation10 + $0x58] sm:$0xff]
    %v827 = vld [vmem:[#allocation10 + $0x60] sm:$0xff]
    %v828 = vld [vmem:[#allocation10 + $0x68] sm:$0xff]
    %v829 = vld [vmem:[#allocation10 + $0x70] sm:$0xff]
    %v830 = vld [vmem:[#allocation10 + $0x78] sm:$0xff]
    %v831 = vld [vmem:[#allocation10 + $0x80] sm:$0xff]
    %v832 = vld [vmem:[#allocation10 + $0x88] sm:$0xff]
    %v833 = vld [vmem:[#allocation10 + $0x90] sm:$0xff]
    %v834 = vld [vmem:[#allocation10 + $0x98] sm:$0xff]
    %v835 = vld [vmem:[#allocation10 + $0xa0] sm:$0xff]
    %v836 = vld [vmem:[#allocation10 + $0xa8] sm:$0xff]
    %v837 = vld [vmem:[#allocation10 + $0xb0] sm:$0xff]
    %v838 = vld [vmem:[#allocation10 + $0xb8] sm:$0xff]
    %v839 = vld [vmem:[#allocation10 + $0xc0] sm:$0xff]
    %v840 = vld [vmem:[#allocation10 + $0xc8] sm:$0xff]
    %v841 = vld [vmem:[#allocation10 + $0xd0] sm:$0xff]
    %v842 = vld [vmem:[#allocation10 + $0xd8] sm:$0xff]
    %v843 = vld [vmem:[#allocation10 + $0xe0] sm:$0xff]
    %v844 = vld [vmem:[#allocation10 + $0xe8] sm:$0xff]
    %v845 = vld [vmem:[#allocation10 + $0xf0] sm:$0xff]
    %v846 = vld [vmem:[#allocation10 + $0xf8] sm:$0xff]
    %v847 = vld [vmem:[#allocation10 + $0x100] sm:$0xff]
    %v848 = vld [vmem:[#allocation10 + $0x108] sm:$0xff]
    %v849 = vld [vmem:[#allocation10 + $0x110] sm:$0xff]
    %v850 = vld [vmem:[#allocation10 + $0x118] sm:$0xff]
    %v851 = vld [vmem:[#allocation10 + $0x120] sm:$0xff]
    %v852 = vld [vmem:[#allocation10 + $0x128] sm:$0xff]
    %v853 = vld [vmem:[#allocation10 + $0x130] sm:$0xff]
    %v854 = vld [vmem:[#allocation10 + $0x138] sm:$0xff]
    %v855 = vld [vmem:[#allocation10 + $0x140] sm:$0xff]
    %v856 = vld [vmem:[#allocation10 + $0x148] sm:$0xff]
    %v857 = vld [vmem:[#allocation10 + $0x150] sm:$0xff]
    %v858 = vld [vmem:[#allocation10 + $0x158] sm:$0xff]
    %v859 = vld [vmem:[#allocation10 + $0x160] sm:$0xff]
    %v860 = vld [vmem:[#allocation10 + $0x168] sm:$0xff]
    %v861 = vld [vmem:[#allocation10 + $0x170] sm:$0xff]
    %v862 = vld [vmem:[#allocation10 + $0x178] sm:$0xff]
    %v863 = vld [vmem:[#allocation10 + $0x180] sm:$0xff]
    %v864 = vld [vmem:[#allocation10 + $0x188] sm:$0xff]
    %v865 = vld [vmem:[#allocation10 + $0x190] sm:$0xff]
    %v866 = vld [vmem:[#allocation10 + $0x198] sm:$0xff]
    %v867 = vld [vmem:[#allocation10 + $0x1a0] sm:$0xff]
    %v868 = vld [vmem:[#allocation10 + $0x1a8] sm:$0xff]
    %v869 = vld [vmem:[#allocation10 + $0x1b0] sm:$0xff]
    %v870 = vld [vmem:[#allocation10 + $0x1b8] sm:$0xff]
    %v871 = vld [vmem:[#allocation10 + $0x1c0] sm:$0xff]
    %v872 = vld [vmem:[#allocation10 + $0x1c8] sm:$0xff]
    %v873 = vld [vmem:[#allocation10 + $0x1d0] sm:$0xff]
    %v874 = vld [vmem:[#allocation10 + $0x1d8] sm:$0xff]
    %v875 = vld [vmem:[#allocation10 + $0x1e0] sm:$0xff]
    %v876 = vld [vmem:[#allocation10 + $0x1e8] sm:$0xff]
    %v877 = vld [vmem:[#allocation10 + $0x1f0] sm:$0xff]
    %v878 = vld [vmem:[#allocation10 + $0x1f8] sm:$0xff]
    %v879 = vld [vmem:[#allocation3] sm:$0x80]
    %v880 = vld [vmem:[#allocation3 + $0x8] sm:$0x80]
    %v881 = vld [vmem:[#allocation3 + $0x20] sm:$0x7f]
    %v882 = vld [vmem:[#allocation3 + $0x28] sm:$0x7f]
    %v883 = vld [vmem:[#allocation3 + $0x40] sm:$0x80]
    %v884 = vld [vmem:[#allocation3 + $0x48] sm:$0x80]
    %v885 = vld [vmem:[#allocation3 + $0x60] sm:$0x7f]
    %v886 = vld [vmem:[#allocation3 + $0x68] sm:$0x7f]
    %vm895 = vcmask 1040384
    %v896 = vrot.slane %v879, 7
    %v897 = vrot.slane %v764, 7
    %v898 = vsel %vm895, %v896, %v897
    %v899 = vrot.slane %v880, 7
    %v900 = vrot.slane %v765, 7
    %v901 = vsel %vm895, %v899, %v900
    %v902 = vrot.slane %v881, 7
    %v903 = vsel %vm895, %v897, %v902
    %v904 = vrot.slane %v882, 7
    %v905 = vsel %vm895, %v900, %v904
    %v906 = vrot.slane %v883, 7
    %v907 = vrot.slane %v770, 7
    %v908 = vsel %vm895, %v906, %v907
    %v909 = vrot.slane %v884, 7
    %v910 = vrot.slane %v771, 7
    %v911 = vsel %vm895, %v909, %v910
    %v912 = vrot.slane %v885, 7
    %v913 = vsel %vm895, %v907, %v912
    %v914 = vrot.slane %v886, 7
    %v915 = vsel %vm895, %v910, %v914
    %s924 = scalar_lea.vmem [#allocation10], 512
    %v925 = vld [vmem:[%s924] sm:$0xff]
    %v926 = vld [vmem:[%s924 + $0x8] sm:$0xff]
    %v927 = vld [vmem:[%s924 + $0x10] sm:$0xff]
    %v928 = vld [vmem:[%s924 + $0x18] sm:$0xff]
    %v929 = vld [vmem:[%s924 + $0x20] sm:$0xff]
    %v930 = vld [vmem:[%s924 + $0x28] sm:$0xff]
    %v931 = vld [vmem:[%s924 + $0x30] sm:$0xff]
    %v932 = vld [vmem:[%s924 + $0x38] sm:$0xff]
    %v933 = vld [vmem:[%s924 + $0x40] sm:$0xff]
    %v934 = vld [vmem:[%s924 + $0x48] sm:$0xff]
    %v935 = vld [vmem:[%s924 + $0x50] sm:$0xff]
    %v936 = vld [vmem:[%s924 + $0x58] sm:$0xff]
    %v937 = vld [vmem:[%s924 + $0x60] sm:$0xff]
    %v938 = vld [vmem:[%s924 + $0x68] sm:$0xff]
    %v939 = vld [vmem:[%s924 + $0x70] sm:$0xff]
    %v940 = vld [vmem:[%s924 + $0x78] sm:$0xff]
    %v941 = vld [vmem:[%s924 + $0x80] sm:$0xff]
    %v942 = vld [vmem:[%s924 + $0x88] sm:$0xff]
    %v943 = vld [vmem:[%s924 + $0x90] sm:$0xff]
    %v944 = vld [vmem:[%s924 + $0x98] sm:$0xff]
    %v945 = vld [vmem:[%s924 + $0xa0] sm:$0xff]
    %v946 = vld [vmem:[%s924 + $0xa8] sm:$0xff]
    %v947 = vld [vmem:[%s924 + $0xb0] sm:$0xff]
    %v948 = vld [vmem:[%s924 + $0xb8] sm:$0xff]
    %v949 = vld [vmem:[%s924 + $0xc0] sm:$0xff]
    %v950 = vld [vmem:[%s924 + $0xc8] sm:$0xff]
    %v951 = vld [vmem:[%s924 + $0xd0] sm:$0xff]
    %v952 = vld [vmem:[%s924 + $0xd8] sm:$0xff]
    %v953 = vld [vmem:[%s924 + $0xe0] sm:$0xff]
    %v954 = vld [vmem:[%s924 + $0xe8] sm:$0xff]
    %v955 = vld [vmem:[%s924 + $0xf0] sm:$0xff]
    %v956 = vld [vmem:[%s924 + $0xf8] sm:$0xff]
    %v957 = vld [vmem:[%s924 + $0x100] sm:$0xff]
    %v958 = vld [vmem:[%s924 + $0x108] sm:$0xff]
    %v959 = vld [vmem:[%s924 + $0x110] sm:$0xff]
    %v960 = vld [vmem:[%s924 + $0x118] sm:$0xff]
    %v961 = vld [vmem:[%s924 + $0x120] sm:$0xff]
    %v962 = vld [vmem:[%s924 + $0x128] sm:$0xff]
    %v963 = vld [vmem:[%s924 + $0x130] sm:$0xff]
    %v964 = vld [vmem:[%s924 + $0x138] sm:$0xff]
    %v965 = vld [vmem:[%s924 + $0x140] sm:$0xff]
    %v966 = vld [vmem:[%s924 + $0x148] sm:$0xff]
    %v967 = vld [vmem:[%s924 + $0x150] sm:$0xff]
    %v968 = vld [vmem:[%s924 + $0x158] sm:$0xff]
    %v969 = vld [vmem:[%s924 + $0x160] sm:$0xff]
    %v970 = vld [vmem:[%s924 + $0x168] sm:$0xff]
    %v971 = vld [vmem:[%s924 + $0x170] sm:$0xff]
    %v972 = vld [vmem:[%s924 + $0x178] sm:$0xff]
    %v973 = vld [vmem:[%s924 + $0x180] sm:$0xff]
    %v974 = vld [vmem:[%s924 + $0x188] sm:$0xff]
    %v975 = vld [vmem:[%s924 + $0x190] sm:$0xff]
    %v976 = vld [vmem:[%s924 + $0x198] sm:$0xff]
    %v977 = vld [vmem:[%s924 + $0x1a0] sm:$0xff]
    %v978 = vld [vmem:[%s924 + $0x1a8] sm:$0xff]
    %v979 = vld [vmem:[%s924 + $0x1b0] sm:$0xff]
    %v980 = vld [vmem:[%s924 + $0x1b8] sm:$0xff]
    %v981 = vld [vmem:[%s924 + $0x1c0] sm:$0xff]
    %v982 = vld [vmem:[%s924 + $0x1c8] sm:$0xff]
    %v983 = vld [vmem:[%s924 + $0x1d0] sm:$0xff]
    %v984 = vld [vmem:[%s924 + $0x1d8] sm:$0xff]
    %v985 = vld [vmem:[%s924 + $0x1e0] sm:$0xff]
    %v986 = vld [vmem:[%s924 + $0x1e8] sm:$0xff]
    %v987 = vld [vmem:[%s924 + $0x1f0] sm:$0xff]
    %v988 = vld [vmem:[%s924 + $0x1f8] sm:$0xff]
    %989 = vmatprep.subr.mxu0 %v926
    %990 = vmatpush1.msra.mxu0 %v925
    %991 = vmatprep.subr.mxu0 %v928
    %992 = vmatpush1.msra.mxu0 %v927
    %993 = vmatprep.subr.mxu0 %v930
    %994 = vmatpush1.msra.mxu0 %v929
    %995 = vmatprep.subr.mxu0 %v932
    %996 = vmatpush1.msra.mxu0 %v931
    %997 = vmatprep.subr.mxu0 %v934
    %998 = vmatpush1.msra.mxu0 %v933
    %999 = vmatprep.subr.mxu0 %v936
    %1000 = vmatpush1.msra.mxu0 %v935
    %1001 = vmatprep.subr.mxu0 %v938
    %1002 = vmatpush1.msra.mxu0 %v937
    %1003 = vmatprep.subr.mxu0 %v940
    %1004 = vmatpush1.msra.mxu0 %v939
    %1005 = vmatprep.subr.mxu0 %v942
    %1006 = vmatpush1.msra.mxu0 %v941
    %1007 = vmatprep.subr.mxu0 %v944
    %1008 = vmatpush1.msra.mxu0 %v943
    %1009 = vmatprep.subr.mxu0 %v946
    %1010 = vmatpush1.msra.mxu0 %v945
    %1011 = vmatprep.subr.mxu0 %v948
    %1012 = vmatpush1.msra.mxu0 %v947
    %1013 = vmatprep.subr.mxu0 %v950
    %1014 = vmatpush1.msra.mxu0 %v949
    %1015 = vmatprep.subr.mxu0 %v952
    %1016 = vmatpush1.msra.mxu0 %v951
    %1017 = vmatprep.subr.mxu0 %v954
    %1018 = vmatpush1.msra.mxu0 %v953
    %1019 = vmatprep.subr.mxu0 %v956
    %1020 = vmatpush1.msra.mxu0 %v955
    %1021 = vmatprep.subr.mxu0 %v958
    %1022 = vmatpush1.msra.mxu0 %v957
    %1023 = vmatprep.subr.mxu0 %v960
    %1024 = vmatpush1.msra.mxu0 %v959
    %1025 = vmatprep.subr.mxu0 %v962
    %1026 = vmatpush1.msra.mxu0 %v961
    %1027 = vmatprep.subr.mxu0 %v964
    %1028 = vmatpush1.msra.mxu0 %v963
    %1029 = vmatprep.subr.mxu0 %v966
    %1030 = vmatpush1.msra.mxu0 %v965
    %1031 = vmatprep.subr.mxu0 %v968
    %1032 = vmatpush1.msra.mxu0 %v967
    %1033 = vmatprep.subr.mxu0 %v970
    %1034 = vmatpush1.msra.mxu0 %v969
    %1035 = vmatprep.subr.mxu0 %v972
    %1036 = vmatpush1.msra.mxu0 %v971
    %1037 = vmatprep.subr.mxu0 %v974
    %1038 = vmatpush1.msra.mxu0 %v973
    %1039 = vmatprep.subr.mxu0 %v976
    %1040 = vmatpush1.msra.mxu0 %v975
    %1041 = vmatprep.subr.mxu0 %v978
    %1042 = vmatpush1.msra.mxu0 %v977
    %1043 = vmatprep.subr.mxu0 %v980
    %1044 = vmatpush1.msra.mxu0 %v979
    %1045 = vmatprep.subr.mxu0 %v982
    %1046 = vmatpush1.msra.mxu0 %v981
    %1047 = vmatprep.subr.mxu0 %v984
    %1048 = vmatpush1.msra.mxu0 %v983
    %1049 = vmatprep.subr.mxu0 %v986
    %1050 = vmatpush1.msra.mxu0 %v985
    %1051 = vmatprep.subr.mxu0 %v988
    %1052 = vmatpush1.msra.mxu0 %v987
    %1053 = vmatprep.mubr.f32.mxu0 %v901
    %1054 = vmatmul.mubr.f32.gmra.mrb[0].mxu0 %v898
    %v1055 = vpop.f32.mrb[0].mxu0
    %v1056 = vadd.f32 0.0, %v1055
    %v1057 = vpop.f32.mrb[0].mxu0
    %v1058 = vadd.f32 0.0, %v1057
    %1059 = vmatprep.mubr.f32.mxu0 %v905
    %1060 = vmatmul.mubr.f32.gmra.mrb[0].mxu0 %v903
    %v1061 = vpop.f32.mrb[0].mxu0
    %v1062 = vadd.f32 0.0, %v1061
    %v1063 = vpop.f32.mrb[0].mxu0
    %v1064 = vadd.f32 0.0, %v1063
    %1065 = vmatprep.mubr.f32.mxu0 %v911
    %1066 = vmatmul.mubr.f32.gmra.mrb[0].mxu0 %v908
    %v1067 = vpop.f32.mrb[0].mxu0
    %v1068 = vadd.f32 0.0, %v1067
    %v1069 = vpop.f32.mrb[0].mxu0
    %v1070 = vadd.f32 0.0, %v1069
    %1071 = vmatprep.mubr.f32.mxu0 %v915
    %1072 = vmatmul.mubr.f32.gmra.mrb[0].mxu0 %v913
    %v1073 = vpop.f32.mrb[0].mxu0
    %v1074 = vadd.f32 0.0, %v1073
    %v1075 = vpop.f32.mrb[0].mxu0
    %v1076 = vadd.f32 0.0, %v1075
    %1077 = vdwg.mxu0
    %1078 = vmatprep.subr.mxu0 %v816
    %1079 = vmatpush1.msra.mxu0 %v815
    %1080 = vmatprep.subr.mxu0 %v818
    %1081 = vmatpush1.msra.mxu0 %v817
    %1082 = vmatprep.subr.mxu0 %v820
    %1083 = vmatpush1.msra.mxu0 %v819
    %1084 = vmatprep.subr.mxu0 %v822
    %1085 = vmatpush1.msra.mxu0 %v821
    %1086 = vmatprep.subr.mxu0 %v824
    %1087 = vmatpush1.msra.mxu0 %v823
    %1088 = vmatprep.subr.mxu0 %v826
    %1089 = vmatpush1.msra.mxu0 %v825
    %1090 = vmatprep.subr.mxu0 %v828
    %1091 = vmatpush1.msra.mxu0 %v827
    %1092 = vmatprep.subr.mxu0 %v830
    %1093 = vmatpush1.msra.mxu0 %v829
    %1094 = vmatprep.subr.mxu0 %v832
    %1095 = vmatpush1.msra.mxu0 %v831
    %1096 = vmatprep.subr.mxu0 %v834
    %1097 = vmatpush1.msra.mxu0 %v833
    %1098 = vmatprep.subr.mxu0 %v836
    %1099 = vmatpush1.msra.mxu0 %v835
    %1100 = vmatprep.subr.mxu0 %v838
    %1101 = vmatpush1.msra.mxu0 %v837
    %1102 = vmatprep.subr.mxu0 %v840
    %1103 = vmatpush1.msra.mxu0 %v839
    %1104 = vmatprep.subr.mxu0 %v842
    %1105 = vmatpush1.msra.mxu0 %v841
    %1106 = vmatprep.subr.mxu0 %v844
    %1107 = vmatpush1.msra.mxu0 %v843
    %1108 = vmatprep.subr.mxu0 %v846
    %1109 = vmatpush1.msra.mxu0 %v845
    %1110 = vmatprep.subr.mxu0 %v848
    %1111 = vmatpush1.msra.mxu0 %v847
    %1112 = vmatprep.subr.mxu0 %v850
    %1113 = vmatpush1.msra.mxu0 %v849
    %1114 = vmatprep.subr.mxu0 %v852
    %1115 = vmatpush1.msra.mxu0 %v851
    %1116 = vmatprep.subr.mxu0 %v854
    %1117 = vmatpush1.msra.mxu0 %v853
    %1118 = vmatprep.subr.mxu0 %v856
    %1119 = vmatpush1.msra.mxu0 %v855
    %1120 = vmatprep.subr.mxu0 %v858
    %1121 = vmatpush1.msra.mxu0 %v857
    %1122 = vmatprep.subr.mxu0 %v860
    %1123 = vmatpush1.msra.mxu0 %v859
    %1124 = vmatprep.subr.mxu0 %v862
    %1125 = vmatpush1.msra.mxu0 %v861
    %1126 = vmatprep.subr.mxu0 %v864
    %1127 = vmatpush1.msra.mxu0 %v863
    %1128 = vmatprep.subr.mxu0 %v866
    %1129 = vmatpush1.msra.mxu0 %v865
    %1130 = vmatprep.subr.mxu0 %v868
    %1131 = vmatpush1.msra.mxu0 %v867
    %1132 = vmatprep.subr.mxu0 %v870
    %1133 = vmatpush1.msra.mxu0 %v869
    %1134 = vmatprep.subr.mxu0 %v872
    %1135 = vmatpush1.msra.mxu0 %v871
    %1136 = vmatprep.subr.mxu0 %v874
    %1137 = vmatpush1.msra.mxu0 %v873
    %1138 = vmatprep.subr.mxu0 %v876
    %1139 = vmatpush1.msra.mxu0 %v875
    %1140 = vmatprep.subr.mxu0 %v878
    %1141 = vmatpush1.msra.mxu0 %v877
    %1142 = vmatprep.mubr.f32.mxu0 %v792
    %1143 = vmatmul.mubr.f32.gmra.mrb[0].mxu0 %v789
    %v1144 = vpop.f32.mrb[0].mxu0
    %v1145 = vadd.f32 %v1056, %v1144
    %v1146 = vpop.f32.mrb[0].mxu0
    %v1147 = vadd.f32 %v1058, %v1146
    %1148 = vmatprep.mubr.f32.mxu0 %v796
    %1149 = vmatmul.mubr.f32.gmra.mrb[0].mxu0 %v794
    %v1150 = vpop.f32.mrb[0].mxu0
    %v1151 = vadd.f32 %v1062, %v1150
    %v1152 = vpop.f32.mrb[0].mxu0
    %v1153 = vadd.f32 %v1064, %v1152
    %1154 = vmatprep.mubr.f32.mxu0 %v802
    %1155 = vmatmul.mubr.f32.gmra.mrb[0].mxu0 %v799
    %v1156 = vpop.f32.mrb[0].mxu0
    %v1157 = vadd.f32 %v1068, %v1156
    %v1158 = vpop.f32.mrb[0].mxu0
    %v1159 = vadd.f32 %v1070, %v1158
    %1160 = vmatprep.mubr.f32.mxu0 %v806
    %1161 = vmatmul.mubr.f32.gmra.mrb[0].mxu0 %v804
    %v1162 = vpop.f32.mrb[0].mxu0
    %v1163 = vadd.f32 %v1074, %v1162
    %v1164 = vpop.f32.mrb[0].mxu0
    %v1165 = vadd.f32 %v1076, %v1164
    %1166 = vdwg.mxu0
    %v1167 = vld [vmem:[#allocation3 + $0x20] sm:$0xff]
    %v1168 = vld [vmem:[#allocation3 + $0x28] sm:$0xff]
    %v1169 = vld [vmem:[#allocation3 + $0x60] sm:$0xff]
    %v1170 = vld [vmem:[#allocation3 + $0x68] sm:$0xff]
    %s1171 = scalar_lea.vmem [#allocation10], 1024
    %v1172 = vld [vmem:[%s1171] sm:$0xff]
    %v1173 = vld [vmem:[%s1171 + $0x8] sm:$0xff]
    %v1174 = vld [vmem:[%s1171 + $0x10] sm:$0xff]
    %v1175 = vld [vmem:[%s1171 + $0x18] sm:$0xff]
    %v1176 = vld [vmem:[%s1171 + $0x20] sm:$0xff]
    %v1177 = vld [vmem:[%s1171 + $0x28] sm:$0xff]
    %v1178 = vld [vmem:[%s1171 + $0x30] sm:$0xff]
    %v1179 = vld [vmem:[%s1171 + $0x38] sm:$0xff]
    %v1180 = vld [vmem:[%s1171 + $0x40] sm:$0xff]
    %v1181 = vld [vmem:[%s1171 + $0x48] sm:$0xff]
    %v1182 = vld [vmem:[%s1171 + $0x50] sm:$0xff]
    %v1183 = vld [vmem:[%s1171 + $0x58] sm:$0xff]
    %v1184 = vld [vmem:[%s1171 + $0x60] sm:$0xff]
    %v1185 = vld [vmem:[%s1171 + $0x68] sm:$0xff]
    %v1186 = vld [vmem:[%s1171 + $0x70] sm:$0xff]
    %v1187 = vld [vmem:[%s1171 + $0x78] sm:$0xff]
    %v1188 = vld [vmem:[%s1171 + $0x80] sm:$0xff]
    %v1189 = vld [vmem:[%s1171 + $0x88] sm:$0xff]
    %v1190 = vld [vmem:[%s1171 + $0x90] sm:$0xff]
    %v1191 = vld [vmem:[%s1171 + $0x98] sm:$0xff]
    %v1192 = vld [vmem:[%s1171 + $0xa0] sm:$0xff]
    %v1193 = vld [vmem:[%s1171 + $0xa8] sm:$0xff]
    %v1194 = vld [vmem:[%s1171 + $0xb0] sm:$0xff]
    %v1195 = vld [vmem:[%s1171 + $0xb8] sm:$0xff]
    %v1196 = vld [vmem:[%s1171 + $0xc0] sm:$0xff]
    %v1197 = vld [vmem:[%s1171 + $0xc8] sm:$0xff]
    %v1198 = vld [vmem:[%s1171 + $0xd0] sm:$0xff]
    %v1199 = vld [vmem:[%s1171 + $0xd8] sm:$0xff]
    %v1200 = vld [vmem:[%s1171 + $0xe0] sm:$0xff]
    %v1201 = vld [vmem:[%s1171 + $0xe8] sm:$0xff]
    %v1202 = vld [vmem:[%s1171 + $0xf0] sm:$0xff]
    %v1203 = vld [vmem:[%s1171 + $0xf8] sm:$0xff]
    %v1204 = vld [vmem:[%s1171 + $0x100] sm:$0xff]
    %v1205 = vld [vmem:[%s1171 + $0x108] sm:$0xff]
    %v1206 = vld [vmem:[%s1171 + $0x110] sm:$0xff]
    %v1207 = vld [vmem:[%s1171 + $0x118] sm:$0xff]
    %v1208 = vld [vmem:[%s1171 + $0x120] sm:$0xff]
    %v1209 = vld [vmem:[%s1171 + $0x128] sm:$0xff]
    %v1210 = vld [vmem:[%s1171 + $0x130] sm:$0xff]
    %v1211 = vld [vmem:[%s1171 + $0x138] sm:$0xff]
    %v1212 = vld [vmem:[%s1171 + $0x140] sm:$0xff]
    %v1213 = vld [vmem:[%s1171 + $0x148] sm:$0xff]
    %v1214 = vld [vmem:[%s1171 + $0x150] sm:$0xff]
    %v1215 = vld [vmem:[%s1171 + $0x158] sm:$0xff]
    %v1216 = vld [vmem:[%s1171 + $0x160] sm:$0xff]
    %v1217 = vld [vmem:[%s1171 + $0x168] sm:$0xff]
    %v1218 = vld [vmem:[%s1171 + $0x170] sm:$0xff]
    %v1219 = vld [vmem:[%s1171 + $0x178] sm:$0xff]
    %v1220 = vld [vmem:[%s1171 + $0x180] sm:$0xff]
    %v1221 = vld [vmem:[%s1171 + $0x188] sm:$0xff]
    %v1222 = vld [vmem:[%s1171 + $0x190] sm:$0xff]
    %v1223 = vld [vmem:[%s1171 + $0x198] sm:$0xff]
    %v1224 = vld [vmem:[%s1171 + $0x1a0] sm:$0xff]
    %v1225 = vld [vmem:[%s1171 + $0x1a8] sm:$0xff]
    %v1226 = vld [vmem:[%s1171 + $0x1b0] sm:$0xff]
    %v1227 = vld [vmem:[%s1171 + $0x1b8] sm:$0xff]
    %v1228 = vld [vmem:[%s1171 + $0x1c0] sm:$0xff]
    %v1229 = vld [vmem:[%s1171 + $0x1c8] sm:$0xff]
    %v1230 = vld [vmem:[%s1171 + $0x1d0] sm:$0xff]
    %v1231 = vld [vmem:[%s1171 + $0x1d8] sm:$0xff]
    %v1232 = vld [vmem:[%s1171 + $0x1e0] sm:$0xff]
    %v1233 = vld [vmem:[%s1171 + $0x1e8] sm:$0xff]
    %v1234 = vld [vmem:[%s1171 + $0x1f0] sm:$0xff]
    %v1235 = vld [vmem:[%s1171 + $0x1f8] sm:$0xff]
    %1236 = vmatprep.subr.mxu0 %v1173
    %1237 = vmatpush1.msra.mxu0 %v1172
    %1238 = vmatprep.subr.mxu0 %v1175
    %1239 = vmatpush1.msra.mxu0 %v1174
    %1240 = vmatprep.subr.mxu0 %v1177
    %1241 = vmatpush1.msra.mxu0 %v1176
    %1242 = vmatprep.subr.mxu0 %v1179
    %1243 = vmatpush1.msra.mxu0 %v1178
    %1244 = vmatprep.subr.mxu0 %v1181
    %1245 = vmatpush1.msra.mxu0 %v1180
    %1246 = vmatprep.subr.mxu0 %v1183
    %1247 = vmatpush1.msra.mxu0 %v1182
    %1248 = vmatprep.subr.mxu0 %v1185
    %1249 = vmatpush1.msra.mxu0 %v1184
    %1250 = vmatprep.subr.mxu0 %v1187
    %1251 = vmatpush1.msra.mxu0 %v1186
    %1252 = vmatprep.subr.mxu0 %v1189
    %1253 = vmatpush1.msra.mxu0 %v1188
    %1254 = vmatprep.subr.mxu0 %v1191
    %1255 = vmatpush1.msra.mxu0 %v1190
    %1256 = vmatprep.subr.mxu0 %v1193
    %1257 = vmatpush1.msra.mxu0 %v1192
    %1258 = vmatprep.subr.mxu0 %v1195
    %1259 = vmatpush1.msra.mxu0 %v1194
    %1260 = vmatprep.subr.mxu0 %v1197
    %1261 = vmatpush1.msra.mxu0 %v1196
    %1262 = vmatprep.subr.mxu0 %v1199
    %1263 = vmatpush1.msra.mxu0 %v1198
    %1264 = vmatprep.subr.mxu0 %v1201
    %1265 = vmatpush1.msra.mxu0 %v1200
    %1266 = vmatprep.subr.mxu0 %v1203
    %1267 = vmatpush1.msra.mxu0 %v1202
    %1268 = vmatprep.subr.mxu0 %v1205
    %1269 = vmatpush1.msra.mxu0 %v1204
    %1270 = vmatprep.subr.mxu0 %v1207
    %1271 = vmatpush1.msra.mxu0 %v1206
    %1272 = vmatprep.subr.mxu0 %v1209
    %1273 = vmatpush1.msra.mxu0 %v1208
    %1274 = vmatprep.subr.mxu0 %v1211
    %1275 = vmatpush1.msra.mxu0 %v1210
    %1276 = vmatprep.subr.mxu0 %v1213
    %1277 = vmatpush1.msra.mxu0 %v1212
    %1278 = vmatprep.subr.mxu0 %v1215
    %1279 = vmatpush1.msra.mxu0 %v1214
    %1280 = vmatprep.subr.mxu0 %v1217
    %1281 = vmatpush1.msra.mxu0 %v1216
    %1282 = vmatprep.subr.mxu0 %v1219
    %1283 = vmatpush1.msra.mxu0 %v1218
    %1284 = vmatprep.subr.mxu0 %v1221
    %1285 = vmatpush1.msra.mxu0 %v1220
    %1286 = vmatprep.subr.mxu0 %v1223
    %1287 = vmatpush1.msra.mxu0 %v1222
    %1288 = vmatprep.subr.mxu0 %v1225
    %1289 = vmatpush1.msra.mxu0 %v1224
    %1290 = vmatprep.subr.mxu0 %v1227
    %1291 = vmatpush1.msra.mxu0 %v1226
    %1292 = vmatprep.subr.mxu0 %v1229
    %1293 = vmatpush1.msra.mxu0 %v1228
    %1294 = vmatprep.subr.mxu0 %v1231
    %1295 = vmatpush1.msra.mxu0 %v1230
    %1296 = vmatprep.subr.mxu0 %v1233
    %1297 = vmatpush1.msra.mxu0 %v1232
    %1298 = vmatprep.subr.mxu0 %v1235
    %1299 = vmatpush1.msra.mxu0 %v1234
    %1300 = vmatprep.mubr.f32.mxu0 %v765
    %1301 = vmatmul.mubr.f32.gmra.mrb[0].mxu0 %v764
    %v1302 = vpop.f32.mrb[0].mxu0
    %v1303 = vadd.f32 0.0, %v1302
    %v1304 = vpop.f32.mrb[0].mxu0
    %v1305 = vadd.f32 0.0, %v1304
    %1306 = vmatprep.mubr.f32.mxu0 %v1168
    %1307 = vmatmul.mubr.f32.gmra.mrb[0].mxu0 %v1167
    %v1308 = vpop.f32.mrb[0].mxu0
    %v1309 = vadd.f32 0.0, %v1308
    %v1310 = vpop.f32.mrb[0].mxu0
    %v1311 = vadd.f32 0.0, %v1310
    %1312 = vmatprep.mubr.f32.mxu0 %v771
    %1313 = vmatmul.mubr.f32.gmra.mrb[0].mxu0 %v770
    %v1314 = vpop.f32.mrb[0].mxu0
    %v1315 = vadd.f32 0.0, %v1314
    %v1316 = vpop.f32.mrb[0].mxu0
    %v1317 = vadd.f32 0.0, %v1316
    %1318 = vmatprep.mubr.f32.mxu0 %v1170
    %1319 = vmatmul.mubr.f32.gmra.mrb[0].mxu0 %v1169
    %v1320 = vpop.f32.mrb[0].mxu0
    %v1321 = vadd.f32 0.0, %v1320
    %v1322 = vpop.f32.mrb[0].mxu0
    %v1323 = vadd.f32 0.0, %v1322
    %1324 = vdwg.mxu0
    %v1325 = vadd.f32 %v1145, %v1303
    %v1326 = vadd.f32 %v1147, %v1305
    %v1327 = vadd.f32 %v1151, %v1309
    %v1328 = vadd.f32 %v1153, %v1311
    %v1329 = vadd.f32 %v1157, %v1315
    %v1330 = vadd.f32 %v1159, %v1317
    %v1331 = vadd.f32 %v1163, %v1321
    %v1332 = vadd.f32 %v1165, %v1323
    %v1333 = vld [vmem:[#allocation3 + $0x10] sm:$0xfe]
    %v1334 = vld [vmem:[#allocation3 + $0x18] sm:$0xfe]
    %v1335 = vld [vmem:[#allocation3 + $0x20] sm:$0xff]
    %v1336 = vld [vmem:[#allocation3 + $0x28] sm:$0xff]
    %v1337 = vld [vmem:[#allocation3 + $0x30] sm:$0x1]
    %v1338 = vld [vmem:[#allocation3 + $0x38] sm:$0x1]
    %v1339 = vld [vmem:[#allocation3 + $0x50] sm:$0xfe]
    %v1340 = vld [vmem:[#allocation3 + $0x58] sm:$0xfe]
    %v1341 = vld [vmem:[#allocation3 + $0x60] sm:$0xff]
    %v1342 = vld [vmem:[#allocation3 + $0x68] sm:$0xff]
    %v1343 = vld [vmem:[#allocation3 + $0x70] sm:$0x1]
    %v1344 = vld [vmem:[#allocation3 + $0x78] sm:$0x1]
    %vm1357 = vcmask 1046528
    %v1358 = vrot.slane %v1333, 1
    %v1359 = vrot.slane %v1335, 1
    %v1360 = vsel %vm1357, %v1358, %v1359
    %v1361 = vrot.slane %v1334, 1
    %v1362 = vrot.slane %v1336, 1
    %v1363 = vsel %vm1357, %v1361, %v1362
    %v1364 = vrot.slane %v1337, 1
    %v1365 = vsel %vm1357, %v1359, %v1364
    %v1366 = vrot.slane %v1338, 1
    %v1367 = vsel %vm1357, %v1362, %v1366
    %v1368 = vrot.slane %v1339, 1
    %v1369 = vrot.slane %v1341, 1
    %v1370 = vsel %vm1357, %v1368, %v1369
    %v1371 = vrot.slane %v1340, 1
    %v1372 = vrot.slane %v1342, 1
    %v1373 = vsel %vm1357, %v1371, %v1372
    %v1374 = vrot.slane %v1343, 1
    %v1375 = vsel %vm1357, %v1369, %v1374
    %v1376 = vrot.slane %v1344, 1
    %v1377 = vsel %vm1357, %v1372, %v1376
    %s1386 = scalar_lea.vmem [#allocation10], 1536
    %v1387 = vld [vmem:[%s1386] sm:$0xff]
    %v1388 = vld [vmem:[%s1386 + $0x8] sm:$0xff]
    %v1389 = vld [vmem:[%s1386 + $0x10] sm:$0xff]
    %v1390 = vld [vmem:[%s1386 + $0x18] sm:$0xff]
    %v1391 = vld [vmem:[%s1386 + $0x20] sm:$0xff]
    %v1392 = vld [vmem:[%s1386 + $0x28] sm:$0xff]
    %v1393 = vld [vmem:[%s1386 + $0x30] sm:$0xff]
    %v1394 = vld [vmem:[%s1386 + $0x38] sm:$0xff]
    %v1395 = vld [vmem:[%s1386 + $0x40] sm:$0xff]
    %v1396 = vld [vmem:[%s1386 + $0x48] sm:$0xff]
    %v1397 = vld [vmem:[%s1386 + $0x50] sm:$0xff]
    %v1398 = vld [vmem:[%s1386 + $0x58] sm:$0xff]
    %v1399 = vld [vmem:[%s1386 + $0x60] sm:$0xff]
    %v1400 = vld [vmem:[%s1386 + $0x68] sm:$0xff]
    %v1401 = vld [vmem:[%s1386 + $0x70] sm:$0xff]
    %v1402 = vld [vmem:[%s1386 + $0x78] sm:$0xff]
    %v1403 = vld [vmem:[%s1386 + $0x80] sm:$0xff]
    %v1404 = vld [vmem:[%s1386 + $0x88] sm:$0xff]
    %v1405 = vld [vmem:[%s1386 + $0x90] sm:$0xff]
    %v1406 = vld [vmem:[%s1386 + $0x98] sm:$0xff]
    %v1407 = vld [vmem:[%s1386 + $0xa0] sm:$0xff]
    %v1408 = vld [vmem:[%s1386 + $0xa8] sm:$0xff]
    %v1409 = vld [vmem:[%s1386 + $0xb0] sm:$0xff]
    %v1410 = vld [vmem:[%s1386 + $0xb8] sm:$0xff]
    %v1411 = vld [vmem:[%s1386 + $0xc0] sm:$0xff]
    %v1412 = vld [vmem:[%s1386 + $0xc8] sm:$0xff]
    %v1413 = vld [vmem:[%s1386 + $0xd0] sm:$0xff]
    %v1414 = vld [vmem:[%s1386 + $0xd8] sm:$0xff]
    %v1415 = vld [vmem:[%s1386 + $0xe0] sm:$0xff]
    %v1416 = vld [vmem:[%s1386 + $0xe8] sm:$0xff]
    %v1417 = vld [vmem:[%s1386 + $0xf0] sm:$0xff]
    %v1418 = vld [vmem:[%s1386 + $0xf8] sm:$0xff]
    %v1419 = vld [vmem:[%s1386 + $0x100] sm:$0xff]
    %v1420 = vld [vmem:[%s1386 + $0x108] sm:$0xff]
    %v1421 = vld [vmem:[%s1386 + $0x110] sm:$0xff]
    %v1422 = vld [vmem:[%s1386 + $0x118] sm:$0xff]
    %v1423 = vld [vmem:[%s1386 + $0x120] sm:$0xff]
    %v1424 = vld [vmem:[%s1386 + $0x128] sm:$0xff]
    %v1425 = vld [vmem:[%s1386 + $0x130] sm:$0xff]
    %v1426 = vld [vmem:[%s1386 + $0x138] sm:$0xff]
    %v1427 = vld [vmem:[%s1386 + $0x140] sm:$0xff]
    %v1428 = vld [vmem:[%s1386 + $0x148] sm:$0xff]
    %v1429 = vld [vmem:[%s1386 + $0x150] sm:$0xff]
    %v1430 = vld [vmem:[%s1386 + $0x158] sm:$0xff]
    %v1431 = vld [vmem:[%s1386 + $0x160] sm:$0xff]
    %v1432 = vld [vmem:[%s1386 + $0x168] sm:$0xff]
    %v1433 = vld [vmem:[%s1386 + $0x170] sm:$0xff]
    %v1434 = vld [vmem:[%s1386 + $0x178] sm:$0xff]
    %v1435 = vld [vmem:[%s1386 + $0x180] sm:$0xff]
    %v1436 = vld [vmem:[%s1386 + $0x188] sm:$0xff]
    %v1437 = vld [vmem:[%s1386 + $0x190] sm:$0xff]
    %v1438 = vld [vmem:[%s1386 + $0x198] sm:$0xff]
    %v1439 = vld [vmem:[%s1386 + $0x1a0] sm:$0xff]
    %v1440 = vld [vmem:[%s1386 + $0x1a8] sm:$0xff]
    %v1441 = vld [vmem:[%s1386 + $0x1b0] sm:$0xff]
    %v1442 = vld [vmem:[%s1386 + $0x1b8] sm:$0xff]
    %v1443 = vld [vmem:[%s1386 + $0x1c0] sm:$0xff]
    %v1444 = vld [vmem:[%s1386 + $0x1c8] sm:$0xff]
    %v1445 = vld [vmem:[%s1386 + $0x1d0] sm:$0xff]
    %v1446 = vld [vmem:[%s1386 + $0x1d8] sm:$0xff]
    %v1447 = vld [vmem:[%s1386 + $0x1e0] sm:$0xff]
    %v1448 = vld [vmem:[%s1386 + $0x1e8] sm:$0xff]
    %v1449 = vld [vmem:[%s1386 + $0x1f0] sm:$0xff]
    %v1450 = vld [vmem:[%s1386 + $0x1f8] sm:$0xff]
    %1451 = vmatprep.subr.mxu0 %v1388
    %1452 = vmatpush1.msra.mxu0 %v1387
    %1453 = vmatprep.subr.mxu0 %v1390
    %1454 = vmatpush1.msra.mxu0 %v1389
    %1455 = vmatprep.subr.mxu0 %v1392
    %1456 = vmatpush1.msra.mxu0 %v1391
    %1457 = vmatprep.subr.mxu0 %v1394
    %1458 = vmatpush1.msra.mxu0 %v1393
    %1459 = vmatprep.subr.mxu0 %v1396
    %1460 = vmatpush1.msra.mxu0 %v1395
    %1461 = vmatprep.subr.mxu0 %v1398
    %1462 = vmatpush1.msra.mxu0 %v1397
    %1463 = vmatprep.subr.mxu0 %v1400
    %1464 = vmatpush1.msra.mxu0 %v1399
    %1465 = vmatprep.subr.mxu0 %v1402
    %1466 = vmatpush1.msra.mxu0 %v1401
    %1467 = vmatprep.subr.mxu0 %v1404
    %1468 = vmatpush1.msra.mxu0 %v1403
    %1469 = vmatprep.subr.mxu0 %v1406
    %1470 = vmatpush1.msra.mxu0 %v1405
    %1471 = vmatprep.subr.mxu0 %v1408
    %1472 = vmatpush1.msra.mxu0 %v1407
    %1473 = vmatprep.subr.mxu0 %v1410
    %1474 = vmatpush1.msra.mxu0 %v1409
    %1475 = vmatprep.subr.mxu0 %v1412
    %1476 = vmatpush1.msra.mxu0 %v1411
    %1477 = vmatprep.subr.mxu0 %v1414
    %1478 = vmatpush1.msra.mxu0 %v1413
    %1479 = vmatprep.subr.mxu0 %v1416
    %1480 = vmatpush1.msra.mxu0 %v1415
    %1481 = vmatprep.subr.mxu0 %v1418
    %1482 = vmatpush1.msra.mxu0 %v1417
    %1483 = vmatprep.subr.mxu0 %v1420
    %1484 = vmatpush1.msra.mxu0 %v1419
    %1485 = vmatprep.subr.mxu0 %v1422
    %1486 = vmatpush1.msra.mxu0 %v1421
    %1487 = vmatprep.subr.mxu0 %v1424
    %1488 = vmatpush1.msra.mxu0 %v1423
    %1489 = vmatprep.subr.mxu0 %v1426
    %1490 = vmatpush1.msra.mxu0 %v1425
    %1491 = vmatprep.subr.mxu0 %v1428
    %1492 = vmatpush1.msra.mxu0 %v1427
    %1493 = vmatprep.subr.mxu0 %v1430
    %1494 = vmatpush1.msra.mxu0 %v1429
    %1495 = vmatprep.subr.mxu0 %v1432
    %1496 = vmatpush1.msra.mxu0 %v1431
    %1497 = vmatprep.subr.mxu0 %v1434
    %1498 = vmatpush1.msra.mxu0 %v1433
    %1499 = vmatprep.subr.mxu0 %v1436
    %1500 = vmatpush1.msra.mxu0 %v1435
    %1501 = vmatprep.subr.mxu0 %v1438
    %1502 = vmatpush1.msra.mxu0 %v1437
    %1503 = vmatprep.subr.mxu0 %v1440
    %1504 = vmatpush1.msra.mxu0 %v1439
    %1505 = vmatprep.subr.mxu0 %v1442
    %1506 = vmatpush1.msra.mxu0 %v1441
    %1507 = vmatprep.subr.mxu0 %v1444
    %1508 = vmatpush1.msra.mxu0 %v1443
    %1509 = vmatprep.subr.mxu0 %v1446
    %1510 = vmatpush1.msra.mxu0 %v1445
    %1511 = vmatprep.subr.mxu0 %v1448
    %1512 = vmatpush1.msra.mxu0 %v1447
    %1513 = vmatprep.subr.mxu0 %v1450
    %1514 = vmatpush1.msra.mxu0 %v1449
    %1515 = vmatprep.mubr.f32.mxu0 %v1363
    %1516 = vmatmul.mubr.f32.gmra.mrb[0].mxu0 %v1360
    %v1517 = vpop.f32.mrb[0].mxu0
    %v1518 = vadd.f32 0.0, %v1517
    %v1519 = vpop.f32.mrb[0].mxu0
    %v1520 = vadd.f32 0.0, %v1519
    %1521 = vmatprep.mubr.f32.mxu0 %v1367
    %1522 = vmatmul.mubr.f32.gmra.mrb[0].mxu0 %v1365
    %v1523 = vpop.f32.mrb[0].mxu0
    %v1524 = vadd.f32 0.0, %v1523
    %v1525 = vpop.f32.mrb[0].mxu0
    %v1526 = vadd.f32 0.0, %v1525
    %1527 = vmatprep.mubr.f32.mxu0 %v1373
    %1528 = vmatmul.mubr.f32.gmra.mrb[0].mxu0 %v1370
    %v1529 = vpop.f32.mrb[0].mxu0
    %v1530 = vadd.f32 0.0, %v1529
    %v1531 = vpop.f32.mrb[0].mxu0
    %v1532 = vadd.f32 0.0, %v1531
    %1533 = vmatprep.mubr.f32.mxu0 %v1377
    %1534 = vmatmul.mubr.f32.gmra.mrb[0].mxu0 %v1375
    %v1535 = vpop.f32.mrb[0].mxu0
    %v1536 = vadd.f32 0.0, %v1535
    %v1537 = vpop.f32.mrb[0].mxu0
    %v1538 = vadd.f32 0.0, %v1537
    %1539 = vdwg.mxu0
    %v1540 = vadd.f32 %v1325, %v1518
    %v1541 = vadd.f32 %v1326, %v1520
    %v1542 = vadd.f32 %v1327, %v1524
    %v1543 = vadd.f32 %v1328, %v1526
    %v1544 = vadd.f32 %v1329, %v1530
    %v1545 = vadd.f32 %v1330, %v1532
    %v1546 = vadd.f32 %v1331, %v1536
    %v1547 = vadd.f32 %v1332, %v1538
    %v1548 = vld [vmem:[#allocation3 + $0x10] sm:$0xfc]
    %v1549 = vld [vmem:[#allocation3 + $0x18] sm:$0xfc]
    %v1550 = vld [vmem:[#allocation3 + $0x30] sm:$0x3]
    %v1551 = vld [vmem:[#allocation3 + $0x38] sm:$0x3]
    %v1552 = vld [vmem:[#allocation3 + $0x50] sm:$0xfc]
    %v1553 = vld [vmem:[#allocation3 + $0x58] sm:$0xfc]
    %v1554 = vld [vmem:[#allocation3 + $0x70] sm:$0x3]
    %v1555 = vld [vmem:[#allocation3 + $0x78] sm:$0x3]
    %vm1564 = vcmask 1045504
    %v1565 = vrot.slane %v1548, 2
    %v1566 = vrot.slane %v1335, 2
    %v1567 = vsel %vm1564, %v1565, %v1566
    %v1568 = vrot.slane %v1549, 2
    %v1569 = vrot.slane %v1336, 2
    %v1570 = vsel %vm1564, %v1568, %v1569
    %v1571 = vrot.slane %v1550, 2
    %v1572 = vsel %vm1564, %v1566, %v1571
    %v1573 = vrot.slane %v1551, 2
    %v1574 = vsel %vm1564, %v1569, %v1573
    %v1575 = vrot.slane %v1552, 2
    %v1576 = vrot.slane %v1341, 2
    %v1577 = vsel %vm1564, %v1575, %v1576
    %v1578 = vrot.slane %v1553, 2
    %v1579 = vrot.slane %v1342, 2
    %v1580 = vsel %vm1564, %v1578, %v1579
    %v1581 = vrot.slane %v1554, 2
    %v1582 = vsel %vm1564, %v1576, %v1581
    %v1583 = vrot.slane %v1555, 2
    %v1584 = vsel %vm1564, %v1579, %v1583
    %s1593 = scalar_lea.vmem [#allocation10], 2048
    %v1594 = vld [vmem:[%s1593] sm:$0xff]
    %v1595 = vld [vmem:[%s1593 + $0x8] sm:$0xff]
    %v1596 = vld [vmem:[%s1593 + $0x10] sm:$0xff]
    %v1597 = vld [vmem:[%s1593 + $0x18] sm:$0xff]
    %v1598 = vld [vmem:[%s1593 + $0x20] sm:$0xff]
    %v1599 = vld [vmem:[%s1593 + $0x28] sm:$0xff]
    %v1600 = vld [vmem:[%s1593 + $0x30] sm:$0xff]
    %v1601 = vld [vmem:[%s1593 + $0x38] sm:$0xff]
    %v1602 = vld [vmem:[%s1593 + $0x40] sm:$0xff]
    %v1603 = vld [vmem:[%s1593 + $0x48] sm:$0xff]
    %v1604 = vld [vmem:[%s1593 + $0x50] sm:$0xff]
    %v1605 = vld [vmem:[%s1593 + $0x58] sm:$0xff]
    %v1606 = vld [vmem:[%s1593 + $0x60] sm:$0xff]
    %v1607 = vld [vmem:[%s1593 + $0x68] sm:$0xff]
    %v1608 = vld [vmem:[%s1593 + $0x70] sm:$0xff]
    %v1609 = vld [vmem:[%s1593 + $0x78] sm:$0xff]
    %v1610 = vld [vmem:[%s1593 + $0x80] sm:$0xff]
    %v1611 = vld [vmem:[%s1593 + $0x88] sm:$0xff]
    %v1612 = vld [vmem:[%s1593 + $0x90] sm:$0xff]
    %v1613 = vld [vmem:[%s1593 + $0x98] sm:$0xff]
    %v1614 = vld [vmem:[%s1593 + $0xa0] sm:$0xff]
    %v1615 = vld [vmem:[%s1593 + $0xa8] sm:$0xff]
    %v1616 = vld [vmem:[%s1593 + $0xb0] sm:$0xff]
    %v1617 = vld [vmem:[%s1593 + $0xb8] sm:$0xff]
    %v1618 = vld [vmem:[%s1593 + $0xc0] sm:$0xff]
    %v1619 = vld [vmem:[%s1593 + $0xc8] sm:$0xff]
    %v1620 = vld [vmem:[%s1593 + $0xd0] sm:$0xff]
    %v1621 = vld [vmem:[%s1593 + $0xd8] sm:$0xff]
    %v1622 = vld [vmem:[%s1593 + $0xe0] sm:$0xff]
    %v1623 = vld [vmem:[%s1593 + $0xe8] sm:$0xff]
    %v1624 = vld [vmem:[%s1593 + $0xf0] sm:$0xff]
    %v1625 = vld [vmem:[%s1593 + $0xf8] sm:$0xff]
    %v1626 = vld [vmem:[%s1593 + $0x100] sm:$0xff]
    %v1627 = vld [vmem:[%s1593 + $0x108] sm:$0xff]
    %v1628 = vld [vmem:[%s1593 + $0x110] sm:$0xff]
    %v1629 = vld [vmem:[%s1593 + $0x118] sm:$0xff]
    %v1630 = vld [vmem:[%s1593 + $0x120] sm:$0xff]
    %v1631 = vld [vmem:[%s1593 + $0x128] sm:$0xff]
    %v1632 = vld [vmem:[%s1593 + $0x130] sm:$0xff]
    %v1633 = vld [vmem:[%s1593 + $0x138] sm:$0xff]
    %v1634 = vld [vmem:[%s1593 + $0x140] sm:$0xff]
    %v1635 = vld [vmem:[%s1593 + $0x148] sm:$0xff]
    %v1636 = vld [vmem:[%s1593 + $0x150] sm:$0xff]
    %v1637 = vld [vmem:[%s1593 + $0x158] sm:$0xff]
    %v1638 = vld [vmem:[%s1593 + $0x160] sm:$0xff]
    %v1639 = vld [vmem:[%s1593 + $0x168] sm:$0xff]
    %v1640 = vld [vmem:[%s1593 + $0x170] sm:$0xff]
    %v1641 = vld [vmem:[%s1593 + $0x178] sm:$0xff]
    %v1642 = vld [vmem:[%s1593 + $0x180] sm:$0xff]
    %v1643 = vld [vmem:[%s1593 + $0x188] sm:$0xff]
    %v1644 = vld [vmem:[%s1593 + $0x190] sm:$0xff]
    %v1645 = vld [vmem:[%s1593 + $0x198] sm:$0xff]
    %v1646 = vld [vmem:[%s1593 + $0x1a0] sm:$0xff]
    %v1647 = vld [vmem:[%s1593 + $0x1a8] sm:$0xff]
    %v1648 = vld [vmem:[%s1593 + $0x1b0] sm:$0xff]
    %v1649 = vld [vmem:[%s1593 + $0x1b8] sm:$0xff]
    %v1650 = vld [vmem:[%s1593 + $0x1c0] sm:$0xff]
    %v1651 = vld [vmem:[%s1593 + $0x1c8] sm:$0xff]
    %v1652 = vld [vmem:[%s1593 + $0x1d0] sm:$0xff]
    %v1653 = vld [vmem:[%s1593 + $0x1d8] sm:$0xff]
    %v1654 = vld [vmem:[%s1593 + $0x1e0] sm:$0xff]
    %v1655 = vld [vmem:[%s1593 + $0x1e8] sm:$0xff]
    %v1656 = vld [vmem:[%s1593 + $0x1f0] sm:$0xff]
    %v1657 = vld [vmem:[%s1593 + $0x1f8] sm:$0xff]
    %1658 = vmatprep.subr.mxu0 %v1595
    %1659 = vmatpush1.msra.mxu0 %v1594
    %1660 = vmatprep.subr.mxu0 %v1597
    %1661 = vmatpush1.msra.mxu0 %v1596
    %1662 = vmatprep.subr.mxu0 %v1599
    %1663 = vmatpush1.msra.mxu0 %v1598
    %1664 = vmatprep.subr.mxu0 %v1601
    %1665 = vmatpush1.msra.mxu0 %v1600
    %1666 = vmatprep.subr.mxu0 %v1603
    %1667 = vmatpush1.msra.mxu0 %v1602
    %1668 = vmatprep.subr.mxu0 %v1605
    %1669 = vmatpush1.msra.mxu0 %v1604
    %1670 = vmatprep.subr.mxu0 %v1607
    %1671 = vmatpush1.msra.mxu0 %v1606
    %1672 = vmatprep.subr.mxu0 %v1609
    %1673 = vmatpush1.msra.mxu0 %v1608
    %1674 = vmatprep.subr.mxu0 %v1611
    %1675 = vmatpush1.msra.mxu0 %v1610
    %1676 = vmatprep.subr.mxu0 %v1613
    %1677 = vmatpush1.msra.mxu0 %v1612
    %1678 = vmatprep.subr.mxu0 %v1615
    %1679 = vmatpush1.msra.mxu0 %v1614
    %1680 = vmatprep.subr.mxu0 %v1617
    %1681 = vmatpush1.msra.mxu0 %v1616
    %1682 = vmatprep.subr.mxu0 %v1619
    %1683 = vmatpush1.msra.mxu0 %v1618
    %1684 = vmatprep.subr.mxu0 %v1621
    %1685 = vmatpush1.msra.mxu0 %v1620
    %1686 = vmatprep.subr.mxu0 %v1623
    %1687 = vmatpush1.msra.mxu0 %v1622
    %1688 = vmatprep.subr.mxu0 %v1625
    %1689 = vmatpush1.msra.mxu0 %v1624
    %1690 = vmatprep.subr.mxu0 %v1627
    %1691 = vmatpush1.msra.mxu0 %v1626
    %1692 = vmatprep.subr.mxu0 %v1629
    %1693 = vmatpush1.msra.mxu0 %v1628
    %1694 = vmatprep.subr.mxu0 %v1631
    %1695 = vmatpush1.msra.mxu0 %v1630
    %1696 = vmatprep.subr.mxu0 %v1633
    %1697 = vmatpush1.msra.mxu0 %v1632
    %1698 = vmatprep.subr.mxu0 %v1635
    %1699 = vmatpush1.msra.mxu0 %v1634
    %1700 = vmatprep.subr.mxu0 %v1637
    %1701 = vmatpush1.msra.mxu0 %v1636
    %1702 = vmatprep.subr.mxu0 %v1639
    %1703 = vmatpush1.msra.mxu0 %v1638
    %1704 = vmatprep.subr.mxu0 %v1641
    %1705 = vmatpush1.msra.mxu0 %v1640
    %1706 = vmatprep.subr.mxu0 %v1643
    %1707 = vmatpush1.msra.mxu0 %v1642
    %1708 = vmatprep.subr.mxu0 %v1645
    %1709 = vmatpush1.msra.mxu0 %v1644
    %1710 = vmatprep.subr.mxu0 %v1647
    %1711 = vmatpush1.msra.mxu0 %v1646
    %1712 = vmatprep.subr.mxu0 %v1649
    %1713 = vmatpush1.msra.mxu0 %v1648
    %1714 = vmatprep.subr.mxu0 %v1651
    %1715 = vmatpush1.msra.mxu0 %v1650
    %1716 = vmatprep.subr.mxu0 %v1653
    %1717 = vmatpush1.msra.mxu0 %v1652
    %1718 = vmatprep.subr.mxu0 %v1655
    %1719 = vmatpush1.msra.mxu0 %v1654
    %1720 = vmatprep.subr.mxu0 %v1657
    %1721 = vmatpush1.msra.mxu0 %v1656
    %1722 = vmatprep.mubr.f32.mxu0 %v1570
    %1723 = vmatmul.mubr.f32.gmra.mrb[0].mxu0 %v1567
    %v1724 = vpop.f32.mrb[0].mxu0
    %v1725 = vadd.f32 0.0, %v1724
    %v1726 = vpop.f32.mrb[0].mxu0
    %v1727 = vadd.f32 0.0, %v1726
    %1728 = vmatprep.mubr.f32.mxu0 %v1574
    %1729 = vmatmul.mubr.f32.gmra.mrb[0].mxu0 %v1572
    %v1730 = vpop.f32.mrb[0].mxu0
    %v1731 = vadd.f32 0.0, %v1730
    %v1732 = vpop.f32.mrb[0].mxu0
    %v1733 = vadd.f32 0.0, %v1732
    %1734 = vmatprep.mubr.f32.mxu0 %v1580
    %1735 = vmatmul.mubr.f32.gmra.mrb[0].mxu0 %v1577
    %v1736 = vpop.f32.mrb[0].mxu0
    %v1737 = vadd.f32 0.0, %v1736
    %v1738 = vpop.f32.mrb[0].mxu0
    %v1739 = vadd.f32 0.0, %v1738
    %1740 = vmatprep.mubr.f32.mxu0 %v1584
    %1741 = vmatmul.mubr.f32.gmra.mrb[0].mxu0 %v1582
    %v1742 = vpop.f32.mrb[0].mxu0
    %v1743 = vadd.f32 0.0, %v1742
    %v1744 = vpop.f32.mrb[0].mxu0
    %v1745 = vadd.f32 0.0, %v1744
    %1746 = vdwg.mxu0
    %v1747 = vadd.f32 %v1540, %v1725
    %v1748 = vadd.f32 %v1541, %v1727
    %v1749 = vadd.f32 %v1542, %v1731
    %v1750 = vadd.f32 %v1543, %v1733
    %v1751 = vadd.f32 %v1544, %v1737
    %v1752 = vadd.f32 %v1545, %v1739
    %v1753 = vadd.f32 %v1546, %v1743
    %v1754 = vadd.f32 %v1547, %v1745
    %v1755 = vld [vmem:[#allocation12] sm:$0x3]
    %v1757 = vlaneseq
    %v1758 = vshrl.u32 %v1757, 7
    %v1759 = vsub.s32 0, %v1758
    %v1760 = vrot.slane %v1755, %v1759
    %v1761 = vlaneseq
    %v1762 = vshrl.u32 %v1761, 7
    %v1763 = vsub.s32 1, %v1762
    %v1764 = vrot.slane %v1755, %v1763
    %v1767 = vadd.f32 %v1747, %v1760
    %v1768 = vadd.f32 %v1748, %v1764
    %v1769 = vadd.f32 %v1749, %v1760
    %v1770 = vadd.f32 %v1750, %v1764
    %v1771 = vadd.f32 %v1751, %v1760
    %v1772 = vadd.f32 %v1752, %v1764
    %v1773 = vadd.f32 %v1753, %v1760
    %v1774 = vadd.f32 %v1754, %v1764
    %v1775 = vmax.f32 %v1767, 0.0
    %v1776 = vmax.f32 %v1768, 0.0
    %v1777 = vmax.f32 %v1769, 0.0
    %v1778 = vmax.f32 %v1770, 0.0
    %v1779 = vmax.f32 %v1771, 0.0
    %v1780 = vmax.f32 %v1772, 0.0
    %v1781 = vmax.f32 %v1773, 0.0
    %v1782 = vmax.f32 %v1774, 0.0
    %1783 = vst [vmem:[#allocation3 + $0x10] sm:$0xff] %v1775
    %1784 = vst [vmem:[#allocation3 + $0x18] sm:$0xff] %v1776
    %1785 = vst [vmem:[#allocation3 + $0x20] sm:$0xff] %v1777
    %1786 = vst [vmem:[#allocation3 + $0x28] sm:$0xff] %v1778
    %1787 = vst [vmem:[#allocation3 + $0x50] sm:$0xff] %v1779
    %1788 = vst [vmem:[#allocation3 + $0x58] sm:$0xff] %v1780
    %1789 = vst [vmem:[#allocation3 + $0x60] sm:$0xff] %v1781
    %1790 = vst [vmem:[#allocation3 + $0x68] sm:$0xff] %v1782
    %v1791 = vld [vmem:[#allocation3] sm:$0xc0]
    %v1792 = vld [vmem:[#allocation3 + $0x8] sm:$0xc0]
    %v1793 = vld [vmem:[#allocation3 + $0x10] sm:$0xff]
    %v1794 = vld [vmem:[#allocation3 + $0x18] sm:$0xff]
    %v1795 = vld [vmem:[#allocation3 + $0x20] sm:$0x3f]
    %v1796 = vld [vmem:[#allocation3 + $0x28] sm:$0x3f]
    %v1797 = vld [vmem:[#allocation3 + $0x40] sm:$0xc0]
    %v1798 = vld [vmem:[#allocation3 + $0x48] sm:$0xc0]
    %v1799 = vld [vmem:[#allocation3 + $0x50] sm:$0xff]
    %v1800 = vld [vmem:[#allocation3 + $0x58] sm:$0xff]
    %v1801 = vld [vmem:[#allocation3 + $0x60] sm:$0x3f]
    %v1802 = vld [vmem:[#allocation3 + $0x68] sm:$0x3f]
    %v1815 = vrot.slane %v1791, 6
    %v1816 = vrot.slane %v1793, 6
    %v1817 = vsel %vm786, %v1815, %v1816
    %v1818 = vrot.slane %v1792, 6
    %v1819 = vrot.slane %v1794, 6
    %v1820 = vsel %vm786, %v1818, %v1819
    %v1821 = vrot.slane %v1795, 6
    %v1822 = vsel %vm786, %v1816, %v1821
    %v1823 = vrot.slane %v1796, 6
    %v1824 = vsel %vm786, %v1819, %v1823
    %v1825 = vrot.slane %v1797, 6
    %v1826 = vrot.slane %v1799, 6
    %v1827 = vsel %vm786, %v1825, %v1826
    %v1828 = vrot.slane %v1798, 6
    %v1829 = vrot.slane %v1800, 6
    %v1830 = vsel %vm786, %v1828, %v1829
    %v1831 = vrot.slane %v1801, 6
    %v1832 = vsel %vm786, %v1826, %v1831
    %v1833 = vrot.slane %v1802, 6
    %v1834 = vsel %vm786, %v1829, %v1833
    %v1843 = vld [vmem:[#allocation13] sm:$0xff]
    %v1844 = vld [vmem:[#allocation13 + $0x8] sm:$0xff]
    %v1845 = vld [vmem:[#allocation13 + $0x10] sm:$0xff]
    %v1846 = vld [vmem:[#allocation13 + $0x18] sm:$0xff]
    %v1847 = vld [vmem:[#allocation13 + $0x20] sm:$0xff]
    %v1848 = vld [vmem:[#allocation13 + $0x28] sm:$0xff]
    %v1849 = vld [vmem:[#allocation13 + $0x30] sm:$0xff]
    %v1850 = vld [vmem:[#allocation13 + $0x38] sm:$0xff]
    %v1851 = vld [vmem:[#allocation13 + $0x40] sm:$0xff]
    %v1852 = vld [vmem:[#allocation13 + $0x48] sm:$0xff]
    %v1853 = vld [vmem:[#allocation13 + $0x50] sm:$0xff]
    %v1854 = vld [vmem:[#allocation13 + $0x58] sm:$0xff]
    %v1855 = vld [vmem:[#allocation13 + $0x60] sm:$0xff]
    %v1856 = vld [vmem:[#allocation13 + $0x68] sm:$0xff]
    %v1857 = vld [vmem:[#allocation13 + $0x70] sm:$0xff]
    %v1858 = vld [vmem:[#allocation13 + $0x78] sm:$0xff]
    %v1859 = vld [vmem:[#allocation13 + $0x80] sm:$0xff]
    %v1860 = vld [vmem:[#allocation13 + $0x88] sm:$0xff]
    %v1861 = vld [vmem:[#allocation13 + $0x90] sm:$0xff]
    %v1862 = vld [vmem:[#allocation13 + $0x98] sm:$0xff]
    %v1863 = vld [vmem:[#allocation13 + $0xa0] sm:$0xff]
    %v1864 = vld [vmem:[#allocation13 + $0xa8] sm:$0xff]
    %v1865 = vld [vmem:[#allocation13 + $0xb0] sm:$0xff]
    %v1866 = vld [vmem:[#allocation13 + $0xb8] sm:$0xff]
    %v1867 = vld [vmem:[#allocation13 + $0xc0] sm:$0xff]
    %v1868 = vld [vmem:[#allocation13 + $0xc8] sm:$0xff]
    %v1869 = vld [vmem:[#allocation13 + $0xd0] sm:$0xff]
    %v1870 = vld [vmem:[#allocation13 + $0xd8] sm:$0xff]
    %v1871 = vld [vmem:[#allocation13 + $0xe0] sm:$0xff]
    %v1872 = vld [vmem:[#allocation13 + $0xe8] sm:$0xff]
    %v1873 = vld [vmem:[#allocation13 + $0xf0] sm:$0xff]
    %v1874 = vld [vmem:[#allocation13 + $0xf8] sm:$0xff]
    %v1875 = vld [vmem:[#allocation13 + $0x100] sm:$0xff]
    %v1876 = vld [vmem:[#allocation13 + $0x108] sm:$0xff]
    %v1877 = vld [vmem:[#allocation13 + $0x110] sm:$0xff]
    %v1878 = vld [vmem:[#allocation13 + $0x118] sm:$0xff]
    %v1879 = vld [vmem:[#allocation13 + $0x120] sm:$0xff]
    %v1880 = vld [vmem:[#allocation13 + $0x128] sm:$0xff]
    %v1881 = vld [vmem:[#allocation13 + $0x130] sm:$0xff]
    %v1882 = vld [vmem:[#allocation13 + $0x138] sm:$0xff]
    %v1883 = vld [vmem:[#allocation13 + $0x140] sm:$0xff]
    %v1884 = vld [vmem:[#allocation13 + $0x148] sm:$0xff]
    %v1885 = vld [vmem:[#allocation13 + $0x150] sm:$0xff]
    %v1886 = vld [vmem:[#allocation13 + $0x158] sm:$0xff]
    %v1887 = vld [vmem:[#allocation13 + $0x160] sm:$0xff]
    %v1888 = vld [vmem:[#allocation13 + $0x168] sm:$0xff]
    %v1889 = vld [vmem:[#allocation13 + $0x170] sm:$0xff]
    %v1890 = vld [vmem:[#allocation13 + $0x178] sm:$0xff]
    %v1891 = vld [vmem:[#allocation13 + $0x180] sm:$0xff]
    %v1892 = vld [vmem:[#allocation13 + $0x188] sm:$0xff]
    %v1893 = vld [vmem:[#allocation13 + $0x190] sm:$0xff]
    %v1894 = vld [vmem:[#allocation13 + $0x198] sm:$0xff]
    %v1895 = vld [vmem:[#allocation13 + $0x1a0] sm:$0xff]
    %v1896 = vld [vmem:[#allocation13 + $0x1a8] sm:$0xff]
    %v1897 = vld [vmem:[#allocation13 + $0x1b0] sm:$0xff]
    %v1898 = vld [vmem:[#allocation13 + $0x1b8] sm:$0xff]
    %v1899 = vld [vmem:[#allocation13 + $0x1c0] sm:$0xff]
    %v1900 = vld [vmem:[#allocation13 + $0x1c8] sm:$0xff]
    %v1901 = vld [vmem:[#allocation13 + $0x1d0] sm:$0xff]
    %v1902 = vld [vmem:[#allocation13 + $0x1d8] sm:$0xff]
    %v1903 = vld [vmem:[#allocation13 + $0x1e0] sm:$0xff]
    %v1904 = vld [vmem:[#allocation13 + $0x1e8] sm:$0xff]
    %v1905 = vld [vmem:[#allocation13 + $0x1f0] sm:$0xff]
    %v1906 = vld [vmem:[#allocation13 + $0x1f8] sm:$0xff]
    %v1907 = vld [vmem:[#allocation3] sm:$0x80]
    %v1908 = vld [vmem:[#allocation3 + $0x8] sm:$0x80]
    %v1909 = vld [vmem:[#allocation3 + $0x20] sm:$0x7f]
    %v1910 = vld [vmem:[#allocation3 + $0x28] sm:$0x7f]
    %v1911 = vld [vmem:[#allocation3 + $0x40] sm:$0x80]
    %v1912 = vld [vmem:[#allocation3 + $0x48] sm:$0x80]
    %v1913 = vld [vmem:[#allocation3 + $0x60] sm:$0x7f]
    %v1914 = vld [vmem:[#allocation3 + $0x68] sm:$0x7f]
    %v1923 = vrot.slane %v1907, 7
    %v1924 = vrot.slane %v1793, 7
    %v1925 = vsel %vm895, %v1923, %v1924
    %v1926 = vrot.slane %v1908, 7
    %v1927 = vrot.slane %v1794, 7
    %v1928 = vsel %vm895, %v1926, %v1927
    %v1929 = vrot.slane %v1909, 7
    %v1930 = vsel %vm895, %v1924, %v1929
    %v1931 = vrot.slane %v1910, 7
    %v1932 = vsel %vm895, %v1927, %v1931
    %v1933 = vrot.slane %v1911, 7
    %v1934 = vrot.slane %v1799, 7
    %v1935 = vsel %vm895, %v1933, %v1934
    %v1936 = vrot.slane %v1912, 7
    %v1937 = vrot.slane %v1800, 7
    %v1938 = vsel %vm895, %v1936, %v1937
    %v1939 = vrot.slane %v1913, 7
    %v1940 = vsel %vm895, %v1934, %v1939
    %v1941 = vrot.slane %v1914, 7
    %v1942 = vsel %vm895, %v1937, %v1941
    %s1951 = scalar_lea.vmem [#allocation13], 512
    %v1952 = vld [vmem:[%s1951] sm:$0xff]
    %v1953 = vld [vmem:[%s1951 + $0x8] sm:$0xff]
    %v1954 = vld [vmem:[%s1951 + $0x10] sm:$0xff]
    %v1955 = vld [vmem:[%s1951 + $0x18] sm:$0xff]
    %v1956 = vld [vmem:[%s1951 + $0x20] sm:$0xff]
    %v1957 = vld [vmem:[%s1951 + $0x28] sm:$0xff]
    %v1958 = vld [vmem:[%s1951 + $0x30] sm:$0xff]
    %v1959 = vld [vmem:[%s1951 + $0x38] sm:$0xff]
    %v1960 = vld [vmem:[%s1951 + $0x40] sm:$0xff]
    %v1961 = vld [vmem:[%s1951 + $0x48] sm:$0xff]
    %v1962 = vld [vmem:[%s1951 + $0x50] sm:$0xff]
    %v1963 = vld [vmem:[%s1951 + $0x58] sm:$0xff]
    %v1964 = vld [vmem:[%s1951 + $0x60] sm:$0xff]
    %v1965 = vld [vmem:[%s1951 + $0x68] sm:$0xff]
    %v1966 = vld [vmem:[%s1951 + $0x70] sm:$0xff]
    %v1967 = vld [vmem:[%s1951 + $0x78] sm:$0xff]
    %v1968 = vld [vmem:[%s1951 + $0x80] sm:$0xff]
    %v1969 = vld [vmem:[%s1951 + $0x88] sm:$0xff]
    %v1970 = vld [vmem:[%s1951 + $0x90] sm:$0xff]
    %v1971 = vld [vmem:[%s1951 + $0x98] sm:$0xff]
    %v1972 = vld [vmem:[%s1951 + $0xa0] sm:$0xff]
    %v1973 = vld [vmem:[%s1951 + $0xa8] sm:$0xff]
    %v1974 = vld [vmem:[%s1951 + $0xb0] sm:$0xff]
    %v1975 = vld [vmem:[%s1951 + $0xb8] sm:$0xff]
    %v1976 = vld [vmem:[%s1951 + $0xc0] sm:$0xff]
    %v1977 = vld [vmem:[%s1951 + $0xc8] sm:$0xff]
    %v1978 = vld [vmem:[%s1951 + $0xd0] sm:$0xff]
    %v1979 = vld [vmem:[%s1951 + $0xd8] sm:$0xff]
    %v1980 = vld [vmem:[%s1951 + $0xe0] sm:$0xff]
    %v1981 = vld [vmem:[%s1951 + $0xe8] sm:$0xff]
    %v1982 = vld [vmem:[%s1951 + $0xf0] sm:$0xff]
    %v1983 = vld [vmem:[%s1951 + $0xf8] sm:$0xff]
    %v1984 = vld [vmem:[%s1951 + $0x100] sm:$0xff]
    %v1985 = vld [vmem:[%s1951 + $0x108] sm:$0xff]
    %v1986 = vld [vmem:[%s1951 + $0x110] sm:$0xff]
    %v1987 = vld [vmem:[%s1951 + $0x118] sm:$0xff]
    %v1988 = vld [vmem:[%s1951 + $0x120] sm:$0xff]
    %v1989 = vld [vmem:[%s1951 + $0x128] sm:$0xff]
    %v1990 = vld [vmem:[%s1951 + $0x130] sm:$0xff]
    %v1991 = vld [vmem:[%s1951 + $0x138] sm:$0xff]
    %v1992 = vld [vmem:[%s1951 + $0x140] sm:$0xff]
    %v1993 = vld [vmem:[%s1951 + $0x148] sm:$0xff]
    %v1994 = vld [vmem:[%s1951 + $0x150] sm:$0xff]
    %v1995 = vld [vmem:[%s1951 + $0x158] sm:$0xff]
    %v1996 = vld [vmem:[%s1951 + $0x160] sm:$0xff]
    %v1997 = vld [vmem:[%s1951 + $0x168] sm:$0xff]
    %v1998 = vld [vmem:[%s1951 + $0x170] sm:$0xff]
    %v1999 = vld [vmem:[%s1951 + $0x178] sm:$0xff]
    %v2000 = vld [vmem:[%s1951 + $0x180] sm:$0xff]
    %v2001 = vld [vmem:[%s1951 + $0x188] sm:$0xff]
    %v2002 = vld [vmem:[%s1951 + $0x190] sm:$0xff]
    %v2003 = vld [vmem:[%s1951 + $0x198] sm:$0xff]
    %v2004 = vld [vmem:[%s1951 + $0x1a0] sm:$0xff]
    %v2005 = vld [vmem:[%s1951 + $0x1a8] sm:$0xff]
    %v2006 = vld [vmem:[%s1951 + $0x1b0] sm:$0xff]
    %v2007 = vld [vmem:[%s1951 + $0x1b8] sm:$0xff]
    %v2008 = vld [vmem:[%s1951 + $0x1c0] sm:$0xff]
    %v2009 = vld [vmem:[%s1951 + $0x1c8] sm:$0xff]
    %v2010 = vld [vmem:[%s1951 + $0x1d0] sm:$0xff]
    %v2011 = vld [vmem:[%s1951 + $0x1d8] sm:$0xff]
    %v2012 = vld [vmem:[%s1951 + $0x1e0] sm:$0xff]
    %v2013 = vld [vmem:[%s1951 + $0x1e8] sm:$0xff]
    %v2014 = vld [vmem:[%s1951 + $0x1f0] sm:$0xff]
    %v2015 = vld [vmem:[%s1951 + $0x1f8] sm:$0xff]
    %2016 = vmatprep.subr.mxu0 %v1953
    %2017 = vmatpush1.msra.mxu0 %v1952
    %2018 = vmatprep.subr.mxu0 %v1955
    %2019 = vmatpush1.msra.mxu0 %v1954
    %2020 = vmatprep.subr.mxu0 %v1957
    %2021 = vmatpush1.msra.mxu0 %v1956
    %2022 = vmatprep.subr.mxu0 %v1959
    %2023 = vmatpush1.msra.mxu0 %v1958
    %2024 = vmatprep.subr.mxu0 %v1961
    %2025 = vmatpush1.msra.mxu0 %v1960
    %2026 = vmatprep.subr.mxu0 %v1963
    %2027 = vmatpush1.msra.mxu0 %v1962
    %2028 = vmatprep.subr.mxu0 %v1965
    %2029 = vmatpush1.msra.mxu0 %v1964
    %2030 = vmatprep.subr.mxu0 %v1967
    %2031 = vmatpush1.msra.mxu0 %v1966
    %2032 = vmatprep.subr.mxu0 %v1969
    %2033 = vmatpush1.msra.mxu0 %v1968
    %2034 = vmatprep.subr.mxu0 %v1971
    %2035 = vmatpush1.msra.mxu0 %v1970
    %2036 = vmatprep.subr.mxu0 %v1973
    %2037 = vmatpush1.msra.mxu0 %v1972
    %2038 = vmatprep.subr.mxu0 %v1975
    %2039 = vmatpush1.msra.mxu0 %v1974
    %2040 = vmatprep.subr.mxu0 %v1977
    %2041 = vmatpush1.msra.mxu0 %v1976
    %2042 = vmatprep.subr.mxu0 %v1979
    %2043 = vmatpush1.msra.mxu0 %v1978
    %2044 = vmatprep.subr.mxu0 %v1981
    %2045 = vmatpush1.msra.mxu0 %v1980
    %2046 = vmatprep.subr.mxu0 %v1983
    %2047 = vmatpush1.msra.mxu0 %v1982
    %2048 = vmatprep.subr.mxu0 %v1985
    %2049 = vmatpush1.msra.mxu0 %v1984
    %2050 = vmatprep.subr.mxu0 %v1987
    %2051 = vmatpush1.msra.mxu0 %v1986
    %2052 = vmatprep.subr.mxu0 %v1989
    %2053 = vmatpush1.msra.mxu0 %v1988
    %2054 = vmatprep.subr.mxu0 %v1991
    %2055 = vmatpush1.msra.mxu0 %v1990
    %2056 = vmatprep.subr.mxu0 %v1993
    %2057 = vmatpush1.msra.mxu0 %v1992
    %2058 = vmatprep.subr.mxu0 %v1995
    %2059 = vmatpush1.msra.mxu0 %v1994
    %2060 = vmatprep.subr.mxu0 %v1997
    %2061 = vmatpush1.msra.mxu0 %v1996
    %2062 = vmatprep.subr.mxu0 %v1999
    %2063 = vmatpush1.msra.mxu0 %v1998
    %2064 = vmatprep.subr.mxu0 %v2001
    %2065 = vmatpush1.msra.mxu0 %v2000
    %2066 = vmatprep.subr.mxu0 %v2003
    %2067 = vmatpush1.msra.mxu0 %v2002
    %2068 = vmatprep.subr.mxu0 %v2005
    %2069 = vmatpush1.msra.mxu0 %v2004
    %2070 = vmatprep.subr.mxu0 %v2007
    %2071 = vmatpush1.msra.mxu0 %v2006
    %2072 = vmatprep.subr.mxu0 %v2009
    %2073 = vmatpush1.msra.mxu0 %v2008
    %2074 = vmatprep.subr.mxu0 %v2011
    %2075 = vmatpush1.msra.mxu0 %v2010
    %2076 = vmatprep.subr.mxu0 %v2013
    %2077 = vmatpush1.msra.mxu0 %v2012
    %2078 = vmatprep.subr.mxu0 %v2015
    %2079 = vmatpush1.msra.mxu0 %v2014
    %2080 = vmatprep.mubr.f32.mxu0 %v1928
    %2081 = vmatmul.mubr.f32.gmra.mrb[0].mxu0 %v1925
    %v2082 = vpop.f32.mrb[0].mxu0
    %v2083 = vadd.f32 0.0, %v2082
    %v2084 = vpop.f32.mrb[0].mxu0
    %v2085 = vadd.f32 0.0, %v2084
    %2086 = vmatprep.mubr.f32.mxu0 %v1932
    %2087 = vmatmul.mubr.f32.gmra.mrb[0].mxu0 %v1930
    %v2088 = vpop.f32.mrb[0].mxu0
    %v2089 = vadd.f32 0.0, %v2088
    %v2090 = vpop.f32.mrb[0].mxu0
    %v2091 = vadd.f32 0.0, %v2090
    %2092 = vmatprep.mubr.f32.mxu0 %v1938
    %2093 = vmatmul.mubr.f32.gmra.mrb[0].mxu0 %v1935
    %v2094 = vpop.f32.mrb[0].mxu0
    %v2095 = vadd.f32 0.0, %v2094
    %v2096 = vpop.f32.mrb[0].mxu0
    %v2097 = vadd.f32 0.0, %v2096
    %2098 = vmatprep.mubr.f32.mxu0 %v1942
    %2099 = vmatmul.mubr.f32.gmra.mrb[0].mxu0 %v1940
    %v2100 = vpop.f32.mrb[0].mxu0
    %v2101 = vadd.f32 0.0, %v2100
    %v2102 = vpop.f32.mrb[0].mxu0
    %v2103 = vadd.f32 0.0, %v2102
    %2104 = vdwg.mxu0
    %2105 = vmatprep.subr.mxu0 %v1844
    %2106 = vmatpush1.msra.mxu0 %v1843
    %2107 = vmatprep.subr.mxu0 %v1846
    %2108 = vmatpush1.msra.mxu0 %v1845
    %2109 = vmatprep.subr.mxu0 %v1848
    %2110 = vmatpush1.msra.mxu0 %v1847
    %2111 = vmatprep.subr.mxu0 %v1850
    %2112 = vmatpush1.msra.mxu0 %v1849
    %2113 = vmatprep.subr.mxu0 %v1852
    %2114 = vmatpush1.msra.mxu0 %v1851
    %2115 = vmatprep.subr.mxu0 %v1854
    %2116 = vmatpush1.msra.mxu0 %v1853
    %2117 = vmatprep.subr.mxu0 %v1856
    %2118 = vmatpush1.msra.mxu0 %v1855
    %2119 = vmatprep.subr.mxu0 %v1858
    %2120 = vmatpush1.msra.mxu0 %v1857
    %2121 = vmatprep.subr.mxu0 %v1860
    %2122 = vmatpush1.msra.mxu0 %v1859
    %2123 = vmatprep.subr.mxu0 %v1862
    %2124 = vmatpush1.msra.mxu0 %v1861
    %2125 = vmatprep.subr.mxu0 %v1864
    %2126 = vmatpush1.msra.mxu0 %v1863
    %2127 = vmatprep.subr.mxu0 %v1866
    %2128 = vmatpush1.msra.mxu0 %v1865
    %2129 = vmatprep.subr.mxu0 %v1868
    %2130 = vmatpush1.msra.mxu0 %v1867
    %2131 = vmatprep.subr.mxu0 %v1870
    %2132 = vmatpush1.msra.mxu0 %v1869
    %2133 = vmatprep.subr.mxu0 %v1872
    %2134 = vmatpush1.msra.mxu0 %v1871
    %2135 = vmatprep.subr.mxu0 %v1874
    %2136 = vmatpush1.msra.mxu0 %v1873
    %2137 = vmatprep.subr.mxu0 %v1876
    %2138 = vmatpush1.msra.mxu0 %v1875
    %2139 = vmatprep.subr.mxu0 %v1878
    %2140 = vmatpush1.msra.mxu0 %v1877
    %2141 = vmatprep.subr.mxu0 %v1880
    %2142 = vmatpush1.msra.mxu0 %v1879
    %2143 = vmatprep.subr.mxu0 %v1882
    %2144 = vmatpush1.msra.mxu0 %v1881
    %2145 = vmatprep.subr.mxu0 %v1884
    %2146 = vmatpush1.msra.mxu0 %v1883
    %2147 = vmatprep.subr.mxu0 %v1886
    %2148 = vmatpush1.msra.mxu0 %v1885
    %2149 = vmatprep.subr.mxu0 %v1888
    %2150 = vmatpush1.msra.mxu0 %v1887
    %2151 = vmatprep.subr.mxu0 %v1890
    %2152 = vmatpush1.msra.mxu0 %v1889
    %2153 = vmatprep.subr.mxu0 %v1892
    %2154 = vmatpush1.msra.mxu0 %v1891
    %2155 = vmatprep.subr.mxu0 %v1894
    %2156 = vmatpush1.msra.mxu0 %v1893
    %2157 = vmatprep.subr.mxu0 %v1896
    %2158 = vmatpush1.msra.mxu0 %v1895
    %2159 = vmatprep.subr.mxu0 %v1898
    %2160 = vmatpush1.msra.mxu0 %v1897
    %2161 = vmatprep.subr.mxu0 %v1900
    %2162 = vmatpush1.msra.mxu0 %v1899
    %2163 = vmatprep.subr.mxu0 %v1902
    %2164 = vmatpush1.msra.mxu0 %v1901
    %2165 = vmatprep.subr.mxu0 %v1904
    %2166 = vmatpush1.msra.mxu0 %v1903
    %2167 = vmatprep.subr.mxu0 %v1906
    %2168 = vmatpush1.msra.mxu0 %v1905
    %2169 = vmatprep.mubr.f32.mxu0 %v1820
    %2170 = vmatmul.mubr.f32.gmra.mrb[0].mxu0 %v1817
    %v2171 = vpop.f32.mrb[0].mxu0
    %v2172 = vadd.f32 %v2083, %v2171
    %v2173 = vpop.f32.mrb[0].mxu0
    %v2174 = vadd.f32 %v2085, %v2173
    %2175 = vmatprep.mubr.f32.mxu0 %v1824
    %2176 = vmatmul.mubr.f32.gmra.mrb[0].mxu0 %v1822
    %v2177 = vpop.f32.mrb[0].mxu0
    %v2178 = vadd.f32 %v2089, %v2177
    %v2179 = vpop.f32.mrb[0].mxu0
    %v2180 = vadd.f32 %v2091, %v2179
    %2181 = vmatprep.mubr.f32.mxu0 %v1830
    %2182 = vmatmul.mubr.f32.gmra.mrb[0].mxu0 %v1827
    %v2183 = vpop.f32.mrb[0].mxu0
    %v2184 = vadd.f32 %v2095, %v2183
    %v2185 = vpop.f32.mrb[0].mxu0
    %v2186 = vadd.f32 %v2097, %v2185
    %2187 = vmatprep.mubr.f32.mxu0 %v1834
    %2188 = vmatmul.mubr.f32.gmra.mrb[0].mxu0 %v1832
    %v2189 = vpop.f32.mrb[0].mxu0
    %v2190 = vadd.f32 %v2101, %v2189
    %v2191 = vpop.f32.mrb[0].mxu0
    %v2192 = vadd.f32 %v2103, %v2191
    %2193 = vdwg.mxu0
    %v2194 = vld [vmem:[#allocation3 + $0x20] sm:$0xff]
    %v2195 = vld [vmem:[#allocation3 + $0x28] sm:$0xff]
    %v2196 = vld [vmem:[#allocation3 + $0x60] sm:$0xff]
    %v2197 = vld [vmem:[#allocation3 + $0x68] sm:$0xff]
    %s2198 = scalar_lea.vmem [#allocation13], 1024
    %v2199 = vld [vmem:[%s2198] sm:$0xff]
    %v2200 = vld [vmem:[%s2198 + $0x8] sm:$0xff]
    %v2201 = vld [vmem:[%s2198 + $0x10] sm:$0xff]
    %v2202 = vld [vmem:[%s2198 + $0x18] sm:$0xff]
    %v2203 = vld [vmem:[%s2198 + $0x20] sm:$0xff]
    %v2204 = vld [vmem:[%s2198 + $0x28] sm:$0xff]
    %v2205 = vld [vmem:[%s2198 + $0x30] sm:$0xff]
    %v2206 = vld [vmem:[%s2198 + $0x38] sm:$0xff]
    %v2207 = vld [vmem:[%s2198 + $0x40] sm:$0xff]
    %v2208 = vld [vmem:[%s2198 + $0x48] sm:$0xff]
    %v2209 = vld [vmem:[%s2198 + $0x50] sm:$0xff]
    %v2210 = vld [vmem:[%s2198 + $0x58] sm:$0xff]
    %v2211 = vld [vmem:[%s2198 + $0x60] sm:$0xff]
    %v2212 = vld [vmem:[%s2198 + $0x68] sm:$0xff]
    %v2213 = vld [vmem:[%s2198 + $0x70] sm:$0xff]
    %v2214 = vld [vmem:[%s2198 + $0x78] sm:$0xff]
    %v2215 = vld [vmem:[%s2198 + $0x80] sm:$0xff]
    %v2216 = vld [vmem:[%s2198 + $0x88] sm:$0xff]
    %v2217 = vld [vmem:[%s2198 + $0x90] sm:$0xff]
    %v2218 = vld [vmem:[%s2198 + $0x98] sm:$0xff]
    %v2219 = vld [vmem:[%s2198 + $0xa0] sm:$0xff]
    %v2220 = vld [vmem:[%s2198 + $0xa8] sm:$0xff]
    %v2221 = vld [vmem:[%s2198 + $0xb0] sm:$0xff]
    %v2222 = vld [vmem:[%s2198 + $0xb8] sm:$0xff]
    %v2223 = vld [vmem:[%s2198 + $0xc0] sm:$0xff]
    %v2224 = vld [vmem:[%s2198 + $0xc8] sm:$0xff]
    %v2225 = vld [vmem:[%s2198 + $0xd0] sm:$0xff]
    %v2226 = vld [vmem:[%s2198 + $0xd8] sm:$0xff]
    %v2227 = vld [vmem:[%s2198 + $0xe0] sm:$0xff]
    %v2228 = vld [vmem:[%s2198 + $0xe8] sm:$0xff]
    %v2229 = vld [vmem:[%s2198 + $0xf0] sm:$0xff]
    %v2230 = vld [vmem:[%s2198 + $0xf8] sm:$0xff]
    %v2231 = vld [vmem:[%s2198 + $0x100] sm:$0xff]
    %v2232 = vld [vmem:[%s2198 + $0x108] sm:$0xff]
    %v2233 = vld [vmem:[%s2198 + $0x110] sm:$0xff]
    %v2234 = vld [vmem:[%s2198 + $0x118] sm:$0xff]
    %v2235 = vld [vmem:[%s2198 + $0x120] sm:$0xff]
    %v2236 = vld [vmem:[%s2198 + $0x128] sm:$0xff]
    %v2237 = vld [vmem:[%s2198 + $0x130] sm:$0xff]
    %v2238 = vld [vmem:[%s2198 + $0x138] sm:$0xff]
    %v2239 = vld [vmem:[%s2198 + $0x140] sm:$0xff]
    %v2240 = vld [vmem:[%s2198 + $0x148] sm:$0xff]
    %v2241 = vld [vmem:[%s2198 + $0x150] sm:$0xff]
    %v2242 = vld [vmem:[%s2198 + $0x158] sm:$0xff]
    %v2243 = vld [vmem:[%s2198 + $0x160] sm:$0xff]
    %v2244 = vld [vmem:[%s2198 + $0x168] sm:$0xff]
    %v2245 = vld [vmem:[%s2198 + $0x170] sm:$0xff]
    %v2246 = vld [vmem:[%s2198 + $0x178] sm:$0xff]
    %v2247 = vld [vmem:[%s2198 + $0x180] sm:$0xff]
    %v2248 = vld [vmem:[%s2198 + $0x188] sm:$0xff]
    %v2249 = vld [vmem:[%s2198 + $0x190] sm:$0xff]
    %v2250 = vld [vmem:[%s2198 + $0x198] sm:$0xff]
    %v2251 = vld [vmem:[%s2198 + $0x1a0] sm:$0xff]
    %v2252 = vld [vmem:[%s2198 + $0x1a8] sm:$0xff]
    %v2253 = vld [vmem:[%s2198 + $0x1b0] sm:$0xff]
    %v2254 = vld [vmem:[%s2198 + $0x1b8] sm:$0xff]
    %v2255 = vld [vmem:[%s2198 + $0x1c0] sm:$0xff]
    %v2256 = vld [vmem:[%s2198 + $0x1c8] sm:$0xff]
    %v2257 = vld [vmem:[%s2198 + $0x1d0] sm:$0xff]
    %v2258 = vld [vmem:[%s2198 + $0x1d8] sm:$0xff]
    %v2259 = vld [vmem:[%s2198 + $0x1e0] sm:$0xff]
    %v2260 = vld [vmem:[%s2198 + $0x1e8] sm:$0xff]
    %v2261 = vld [vmem:[%s2198 + $0x1f0] sm:$0xff]
    %v2262 = vld [vmem:[%s2198 + $0x1f8] sm:$0xff]
    %2263 = vmatprep.subr.mxu0 %v2200
    %2264 = vmatpush1.msra.mxu0 %v2199
    %2265 = vmatprep.subr.mxu0 %v2202
    %2266 = vmatpush1.msra.mxu0 %v2201
    %2267 = vmatprep.subr.mxu0 %v2204
    %2268 = vmatpush1.msra.mxu0 %v2203
    %2269 = vmatprep.subr.mxu0 %v2206
    %2270 = vmatpush1.msra.mxu0 %v2205
    %2271 = vmatprep.subr.mxu0 %v2208
    %2272 = vmatpush1.msra.mxu0 %v2207
    %2273 = vmatprep.subr.mxu0 %v2210
    %2274 = vmatpush1.msra.mxu0 %v2209
    %2275 = vmatprep.subr.mxu0 %v2212
    %2276 = vmatpush1.msra.mxu0 %v2211
    %2277 = vmatprep.subr.mxu0 %v2214
    %2278 = vmatpush1.msra.mxu0 %v2213
    %2279 = vmatprep.subr.mxu0 %v2216
    %2280 = vmatpush1.msra.mxu0 %v2215
    %2281 = vmatprep.subr.mxu0 %v2218
    %2282 = vmatpush1.msra.mxu0 %v2217
    %2283 = vmatprep.subr.mxu0 %v2220
    %2284 = vmatpush1.msra.mxu0 %v2219
    %2285 = vmatprep.subr.mxu0 %v2222
    %2286 = vmatpush1.msra.mxu0 %v2221
    %2287 = vmatprep.subr.mxu0 %v2224
    %2288 = vmatpush1.msra.mxu0 %v2223
    %2289 = vmatprep.subr.mxu0 %v2226
    %2290 = vmatpush1.msra.mxu0 %v2225
    %2291 = vmatprep.subr.mxu0 %v2228
    %2292 = vmatpush1.msra.mxu0 %v2227
    %2293 = vmatprep.subr.mxu0 %v2230
    %2294 = vmatpush1.msra.mxu0 %v2229
    %2295 = vmatprep.subr.mxu0 %v2232
    %2296 = vmatpush1.msra.mxu0 %v2231
    %2297 = vmatprep.subr.mxu0 %v2234
    %2298 = vmatpush1.msra.mxu0 %v2233
    %2299 = vmatprep.subr.mxu0 %v2236
    %2300 = vmatpush1.msra.mxu0 %v2235
    %2301 = vmatprep.subr.mxu0 %v2238
    %2302 = vmatpush1.msra.mxu0 %v2237
    %2303 = vmatprep.subr.mxu0 %v2240
    %2304 = vmatpush1.msra.mxu0 %v2239
    %2305 = vmatprep.subr.mxu0 %v2242
    %2306 = vmatpush1.msra.mxu0 %v2241
    %2307 = vmatprep.subr.mxu0 %v2244
    %2308 = vmatpush1.msra.mxu0 %v2243
    %2309 = vmatprep.subr.mxu0 %v2246
    %2310 = vmatpush1.msra.mxu0 %v2245
    %2311 = vmatprep.subr.mxu0 %v2248
    %2312 = vmatpush1.msra.mxu0 %v2247
    %2313 = vmatprep.subr.mxu0 %v2250
    %2314 = vmatpush1.msra.mxu0 %v2249
    %2315 = vmatprep.subr.mxu0 %v2252
    %2316 = vmatpush1.msra.mxu0 %v2251
    %2317 = vmatprep.subr.mxu0 %v2254
    %2318 = vmatpush1.msra.mxu0 %v2253
    %2319 = vmatprep.subr.mxu0 %v2256
    %2320 = vmatpush1.msra.mxu0 %v2255
    %2321 = vmatprep.subr.mxu0 %v2258
    %2322 = vmatpush1.msra.mxu0 %v2257
    %2323 = vmatprep.subr.mxu0 %v2260
    %2324 = vmatpush1.msra.mxu0 %v2259
    %2325 = vmatprep.subr.mxu0 %v2262
    %2326 = vmatpush1.msra.mxu0 %v2261
    %2327 = vmatprep.mubr.f32.mxu0 %v1794
    %2328 = vmatmul.mubr.f32.gmra.mrb[0].mxu0 %v1793
    %v2329 = vpop.f32.mrb[0].mxu0
    %v2330 = vadd.f32 0.0, %v2329
    %v2331 = vpop.f32.mrb[0].mxu0
    %v2332 = vadd.f32 0.0, %v2331
    %2333 = vmatprep.mubr.f32.mxu0 %v2195
    %2334 = vmatmul.mubr.f32.gmra.mrb[0].mxu0 %v2194
    %v2335 = vpop.f32.mrb[0].mxu0
    %v2336 = vadd.f32 0.0, %v2335
    %v2337 = vpop.f32.mrb[0].mxu0
    %v2338 = vadd.f32 0.0, %v2337
    %2339 = vmatprep.mubr.f32.mxu0 %v1800
    %2340 = vmatmul.mubr.f32.gmra.mrb[0].mxu0 %v1799
    %v2341 = vpop.f32.mrb[0].mxu0
    %v2342 = vadd.f32 0.0, %v2341
    %v2343 = vpop.f32.mrb[0].mxu0
    %v2344 = vadd.f32 0.0, %v2343
    %2345 = vmatprep.mubr.f32.mxu0 %v2197
    %2346 = vmatmul.mubr.f32.gmra.mrb[0].mxu0 %v2196
    %v2347 = vpop.f32.mrb[0].mxu0
    %v2348 = vadd.f32 0.0, %v2347
    %v2349 = vpop.f32.mrb[0].mxu0
    %v2350 = vadd.f32 0.0, %v2349
    %2351 = vdwg.mxu0
    %v2352 = vadd.f32 %v2172, %v2330
    %v2353 = vadd.f32 %v2174, %v2332
    %v2354 = vadd.f32 %v2178, %v2336
    %v2355 = vadd.f32 %v2180, %v2338
    %v2356 = vadd.f32 %v2184, %v2342
    %v2357 = vadd.f32 %v2186, %v2344
    %v2358 = vadd.f32 %v2190, %v2348
    %v2359 = vadd.f32 %v2192, %v2350
    %v2360 = vld [vmem:[#allocation3 + $0x10] sm:$0xfe]
    %v2361 = vld [vmem:[#allocation3 + $0x18] sm:$0xfe]
    %v2362 = vld [vmem:[#allocation3 + $0x20] sm:$0xff]
    %v2363 = vld [vmem:[#allocation3 + $0x28] sm:$0xff]
    %v2364 = vld [vmem:[#allocation3 + $0x30] sm:$0x1]
    %v2365 = vld [vmem:[#allocation3 + $0x38] sm:$0x1]
    %v2366 = vld [vmem:[#allocation3 + $0x50] sm:$0xfe]
    %v2367 = vld [vmem:[#allocation3 + $0x58] sm:$0xfe]
    %v2368 = vld [vmem:[#allocation3 + $0x60] sm:$0xff]
    %v2369 = vld [vmem:[#allocation3 + $0x68] sm:$0xff]
    %v2370 = vld [vmem:[#allocation3 + $0x70] sm:$0x1]
    %v2371 = vld [vmem:[#allocation3 + $0x78] sm:$0x1]
    %v2384 = vrot.slane %v2360, 1
    %v2385 = vrot.slane %v2362, 1
    %v2386 = vsel %vm1357, %v2384, %v2385
    %v2387 = vrot.slane %v2361, 1
    %v2388 = vrot.slane %v2363, 1
    %v2389 = vsel %vm1357, %v2387, %v2388
    %v2390 = vrot.slane %v2364, 1
    %v2391 = vsel %vm1357, %v2385, %v2390
    %v2392 = vrot.slane %v2365, 1
    %v2393 = vsel %vm1357, %v2388, %v2392
    %v2394 = vrot.slane %v2366, 1
    %v2395 = vrot.slane %v2368, 1
    %v2396 = vsel %vm1357, %v2394, %v2395
    %v2397 = vrot.slane %v2367, 1
    %v2398 = vrot.slane %v2369, 1
    %v2399 = vsel %vm1357, %v2397, %v2398
    %v2400 = vrot.slane %v2370, 1
    %v2401 = vsel %vm1357, %v2395, %v2400
    %v2402 = vrot.slane %v2371, 1
    %v2403 = vsel %vm1357, %v2398, %v2402
    %s2412 = scalar_lea.vmem [#allocation13], 1536
    %v2413 = vld [vmem:[%s2412] sm:$0xff]
    %v2414 = vld [vmem:[%s2412 + $0x8] sm:$0xff]
    %v2415 = vld [vmem:[%s2412 + $0x10] sm:$0xff]
    %v2416 = vld [vmem:[%s2412 + $0x18] sm:$0xff]
    %v2417 = vld [vmem:[%s2412 + $0x20] sm:$0xff]
    %v2418 = vld [vmem:[%s2412 + $0x28] sm:$0xff]
    %v2419 = vld [vmem:[%s2412 + $0x30] sm:$0xff]
    %v2420 = vld [vmem:[%s2412 + $0x38] sm:$0xff]
    %v2421 = vld [vmem:[%s2412 + $0x40] sm:$0xff]
    %v2422 = vld [vmem:[%s2412 + $0x48] sm:$0xff]
    %v2423 = vld [vmem:[%s2412 + $0x50] sm:$0xff]
    %v2424 = vld [vmem:[%s2412 + $0x58] sm:$0xff]
    %v2425 = vld [vmem:[%s2412 + $0x60] sm:$0xff]
    %v2426 = vld [vmem:[%s2412 + $0x68] sm:$0xff]
    %v2427 = vld [vmem:[%s2412 + $0x70] sm:$0xff]
    %v2428 = vld [vmem:[%s2412 + $0x78] sm:$0xff]
    %v2429 = vld [vmem:[%s2412 + $0x80] sm:$0xff]
    %v2430 = vld [vmem:[%s2412 + $0x88] sm:$0xff]
    %v2431 = vld [vmem:[%s2412 + $0x90] sm:$0xff]
    %v2432 = vld [vmem:[%s2412 + $0x98] sm:$0xff]
    %v2433 = vld [vmem:[%s2412 + $0xa0] sm:$0xff]
    %v2434 = vld [vmem:[%s2412 + $0xa8] sm:$0xff]
    %v2435 = vld [vmem:[%s2412 + $0xb0] sm:$0xff]
    %v2436 = vld [vmem:[%s2412 + $0xb8] sm:$0xff]
    %v2437 = vld [vmem:[%s2412 + $0xc0] sm:$0xff]
    %v2438 = vld [vmem:[%s2412 + $0xc8] sm:$0xff]
    %v2439 = vld [vmem:[%s2412 + $0xd0] sm:$0xff]
    %v2440 = vld [vmem:[%s2412 + $0xd8] sm:$0xff]
    %v2441 = vld [vmem:[%s2412 + $0xe0] sm:$0xff]
    %v2442 = vld [vmem:[%s2412 + $0xe8] sm:$0xff]
    %v2443 = vld [vmem:[%s2412 + $0xf0] sm:$0xff]
    %v2444 = vld [vmem:[%s2412 + $0xf8] sm:$0xff]
    %v2445 = vld [vmem:[%s2412 + $0x100] sm:$0xff]
    %v2446 = vld [vmem:[%s2412 + $0x108] sm:$0xff]
    %v2447 = vld [vmem:[%s2412 + $0x110] sm:$0xff]
    %v2448 = vld [vmem:[%s2412 + $0x118] sm:$0xff]
    %v2449 = vld [vmem:[%s2412 + $0x120] sm:$0xff]
    %v2450 = vld [vmem:[%s2412 + $0x128] sm:$0xff]
    %v2451 = vld [vmem:[%s2412 + $0x130] sm:$0xff]
    %v2452 = vld [vmem:[%s2412 + $0x138] sm:$0xff]
    %v2453 = vld [vmem:[%s2412 + $0x140] sm:$0xff]
    %v2454 = vld [vmem:[%s2412 + $0x148] sm:$0xff]
    %v2455 = vld [vmem:[%s2412 + $0x150] sm:$0xff]
    %v2456 = vld [vmem:[%s2412 + $0x158] sm:$0xff]
    %v2457 = vld [vmem:[%s2412 + $0x160] sm:$0xff]
    %v2458 = vld [vmem:[%s2412 + $0x168] sm:$0xff]
    %v2459 = vld [vmem:[%s2412 + $0x170] sm:$0xff]
    %v2460 = vld [vmem:[%s2412 + $0x178] sm:$0xff]
    %v2461 = vld [vmem:[%s2412 + $0x180] sm:$0xff]
    %v2462 = vld [vmem:[%s2412 + $0x188] sm:$0xff]
    %v2463 = vld [vmem:[%s2412 + $0x190] sm:$0xff]
    %v2464 = vld [vmem:[%s2412 + $0x198] sm:$0xff]
    %v2465 = vld [vmem:[%s2412 + $0x1a0] sm:$0xff]
    %v2466 = vld [vmem:[%s2412 + $0x1a8] sm:$0xff]
    %v2467 = vld [vmem:[%s2412 + $0x1b0] sm:$0xff]
    %v2468 = vld [vmem:[%s2412 + $0x1b8] sm:$0xff]
    %v2469 = vld [vmem:[%s2412 + $0x1c0] sm:$0xff]
    %v2470 = vld [vmem:[%s2412 + $0x1c8] sm:$0xff]
    %v2471 = vld [vmem:[%s2412 + $0x1d0] sm:$0xff]
    %v2472 = vld [vmem:[%s2412 + $0x1d8] sm:$0xff]
    %v2473 = vld [vmem:[%s2412 + $0x1e0] sm:$0xff]
    %v2474 = vld [vmem:[%s2412 + $0x1e8] sm:$0xff]
    %v2475 = vld [vmem:[%s2412 + $0x1f0] sm:$0xff]
    %v2476 = vld [vmem:[%s2412 + $0x1f8] sm:$0xff]
    %2477 = vmatprep.subr.mxu0 %v2414
    %2478 = vmatpush1.msra.mxu0 %v2413
    %2479 = vmatprep.subr.mxu0 %v2416
    %2480 = vmatpush1.msra.mxu0 %v2415
    %2481 = vmatprep.subr.mxu0 %v2418
    %2482 = vmatpush1.msra.mxu0 %v2417
    %2483 = vmatprep.subr.mxu0 %v2420
    %2484 = vmatpush1.msra.mxu0 %v2419
    %2485 = vmatprep.subr.mxu0 %v2422
    %2486 = vmatpush1.msra.mxu0 %v2421
    %2487 = vmatprep.subr.mxu0 %v2424
    %2488 = vmatpush1.msra.mxu0 %v2423
    %2489 = vmatprep.subr.mxu0 %v2426
    %2490 = vmatpush1.msra.mxu0 %v2425
    %2491 = vmatprep.subr.mxu0 %v2428
    %2492 = vmatpush1.msra.mxu0 %v2427
    %2493 = vmatprep.subr.mxu0 %v2430
    %2494 = vmatpush1.msra.mxu0 %v2429
    %2495 = vmatprep.subr.mxu0 %v2432
    %2496 = vmatpush1.msra.mxu0 %v2431
    %2497 = vmatprep.subr.mxu0 %v2434
    %2498 = vmatpush1.msra.mxu0 %v2433
    %2499 = vmatprep.subr.mxu0 %v2436
    %2500 = vmatpush1.msra.mxu0 %v2435
    %2501 = vmatprep.subr.mxu0 %v2438
    %2502 = vmatpush1.msra.mxu0 %v2437
    %2503 = vmatprep.subr.mxu0 %v2440
    %2504 = vmatpush1.msra.mxu0 %v2439
    %2505 = vmatprep.subr.mxu0 %v2442
    %2506 = vmatpush1.msra.mxu0 %v2441
    %2507 = vmatprep.subr.mxu0 %v2444
    %2508 = vmatpush1.msra.mxu0 %v2443
    %2509 = vmatprep.subr.mxu0 %v2446
    %2510 = vmatpush1.msra.mxu0 %v2445
    %2511 = vmatprep.subr.mxu0 %v2448
    %2512 = vmatpush1.msra.mxu0 %v2447
    %2513 = vmatprep.subr.mxu0 %v2450
    %2514 = vmatpush1.msra.mxu0 %v2449
    %2515 = vmatprep.subr.mxu0 %v2452
    %2516 = vmatpush1.msra.mxu0 %v2451
    %2517 = vmatprep.subr.mxu0 %v2454
    %2518 = vmatpush1.msra.mxu0 %v2453
    %2519 = vmatprep.subr.mxu0 %v2456
    %2520 = vmatpush1.msra.mxu0 %v2455
    %2521 = vmatprep.subr.mxu0 %v2458
    %2522 = vmatpush1.msra.mxu0 %v2457
    %2523 = vmatprep.subr.mxu0 %v2460
    %2524 = vmatpush1.msra.mxu0 %v2459
    %2525 = vmatprep.subr.mxu0 %v2462
    %2526 = vmatpush1.msra.mxu0 %v2461
    %2527 = vmatprep.subr.mxu0 %v2464
    %2528 = vmatpush1.msra.mxu0 %v2463
    %2529 = vmatprep.subr.mxu0 %v2466
    %2530 = vmatpush1.msra.mxu0 %v2465
    %2531 = vmatprep.subr.mxu0 %v2468
    %2532 = vmatpush1.msra.mxu0 %v2467
    %2533 = vmatprep.subr.mxu0 %v2470
    %2534 = vmatpush1.msra.mxu0 %v2469
    %2535 = vmatprep.subr.mxu0 %v2472
    %2536 = vmatpush1.msra.mxu0 %v2471
    %2537 = vmatprep.subr.mxu0 %v2474
    %2538 = vmatpush1.msra.mxu0 %v2473
    %2539 = vmatprep.subr.mxu0 %v2476
    %2540 = vmatpush1.msra.mxu0 %v2475
    %2541 = vmatprep.mubr.f32.mxu0 %v2389
    %2542 = vmatmul.mubr.f32.gmra.mrb[0].mxu0 %v2386
    %v2543 = vpop.f32.mrb[0].mxu0
    %v2544 = vadd.f32 0.0, %v2543
    %v2545 = vpop.f32.mrb[0].mxu0
    %v2546 = vadd.f32 0.0, %v2545
    %2547 = vmatprep.mubr.f32.mxu0 %v2393
    %2548 = vmatmul.mubr.f32.gmra.mrb[0].mxu0 %v2391
    %v2549 = vpop.f32.mrb[0].mxu0
    %v2550 = vadd.f32 0.0, %v2549
    %v2551 = vpop.f32.mrb[0].mxu0
    %v2552 = vadd.f32 0.0, %v2551
    %2553 = vmatprep.mubr.f32.mxu0 %v2399
    %2554 = vmatmul.mubr.f32.gmra.mrb[0].mxu0 %v2396
    %v2555 = vpop.f32.mrb[0].mxu0
    %v2556 = vadd.f32 0.0, %v2555
    %v2557 = vpop.f32.mrb[0].mxu0
    %v2558 = vadd.f32 0.0, %v2557
    %2559 = vmatprep.mubr.f32.mxu0 %v2403
    %2560 = vmatmul.mubr.f32.gmra.mrb[0].mxu0 %v2401
    %v2561 = vpop.f32.mrb[0].mxu0
    %v2562 = vadd.f32 0.0, %v2561
    %v2563 = vpop.f32.mrb[0].mxu0
    %v2564 = vadd.f32 0.0, %v2563
    %2565 = vdwg.mxu0
    %v2566 = vadd.f32 %v2352, %v2544
    %v2567 = vadd.f32 %v2353, %v2546
    %v2568 = vadd.f32 %v2354, %v2550
    %v2569 = vadd.f32 %v2355, %v2552
    %v2570 = vadd.f32 %v2356, %v2556
    %v2571 = vadd.f32 %v2357, %v2558
    %v2572 = vadd.f32 %v2358, %v2562
    %v2573 = vadd.f32 %v2359, %v2564
    %v2574 = vld [vmem:[#allocation3 + $0x10] sm:$0xfc]
    %v2575 = vld [vmem:[#allocation3 + $0x18] sm:$0xfc]
    %v2576 = vld [vmem:[#allocation3 + $0x30] sm:$0x3]
    %v2577 = vld [vmem:[#allocation3 + $0x38] sm:$0x3]
    %v2578 = vld [vmem:[#allocation3 + $0x50] sm:$0xfc]
    %v2579 = vld [vmem:[#allocation3 + $0x58] sm:$0xfc]
    %v2580 = vld [vmem:[#allocation3 + $0x70] sm:$0x3]
    %v2581 = vld [vmem:[#allocation3 + $0x78] sm:$0x3]
    %v2590 = vrot.slane %v2574, 2
    %v2591 = vrot.slane %v2362, 2
    %v2592 = vsel %vm1564, %v2590, %v2591
    %v2593 = vrot.slane %v2575, 2
    %v2594 = vrot.slane %v2363, 2
    %v2595 = vsel %vm1564, %v2593, %v2594
    %v2596 = vrot.slane %v2576, 2
    %v2597 = vsel %vm1564, %v2591, %v2596
    %v2598 = vrot.slane %v2577, 2
    %v2599 = vsel %vm1564, %v2594, %v2598
    %v2600 = vrot.slane %v2578, 2
    %v2601 = vrot.slane %v2368, 2
    %v2602 = vsel %vm1564, %v2600, %v2601
    %v2603 = vrot.slane %v2579, 2
    %v2604 = vrot.slane %v2369, 2
    %v2605 = vsel %vm1564, %v2603, %v2604
    %v2606 = vrot.slane %v2580, 2
    %v2607 = vsel %vm1564, %v2601, %v2606
    %v2608 = vrot.slane %v2581, 2
    %v2609 = vsel %vm1564, %v2604, %v2608
    %s2618 = scalar_lea.vmem [#allocation13], 2048
    %v2619 = vld [vmem:[%s2618] sm:$0xff]
    %v2620 = vld [vmem:[%s2618 + $0x8] sm:$0xff]
    %v2621 = vld [vmem:[%s2618 + $0x10] sm:$0xff]
    %v2622 = vld [vmem:[%s2618 + $0x18] sm:$0xff]
    %v2623 = vld [vmem:[%s2618 + $0x20] sm:$0xff]
    %v2624 = vld [vmem:[%s2618 + $0x28] sm:$0xff]
    %v2625 = vld [vmem:[%s2618 + $0x30] sm:$0xff]
    %v2626 = vld [vmem:[%s2618 + $0x38] sm:$0xff]
    %v2627 = vld [vmem:[%s2618 + $0x40] sm:$0xff]
    %v2628 = vld [vmem:[%s2618 + $0x48] sm:$0xff]
    %v2629 = vld [vmem:[%s2618 + $0x50] sm:$0xff]
    %v2630 = vld [vmem:[%s2618 + $0x58] sm:$0xff]
    %v2631 = vld [vmem:[%s2618 + $0x60] sm:$0xff]
    %v2632 = vld [vmem:[%s2618 + $0x68] sm:$0xff]
    %v2633 = vld [vmem:[%s2618 + $0x70] sm:$0xff]
    %v2634 = vld [vmem:[%s2618 + $0x78] sm:$0xff]
    %v2635 = vld [vmem:[%s2618 + $0x80] sm:$0xff]
    %v2636 = vld [vmem:[%s2618 + $0x88] sm:$0xff]
    %v2637 = vld [vmem:[%s2618 + $0x90] sm:$0xff]
    %v2638 = vld [vmem:[%s2618 + $0x98] sm:$0xff]
    %v2639 = vld [vmem:[%s2618 + $0xa0] sm:$0xff]
    %v2640 = vld [vmem:[%s2618 + $0xa8] sm:$0xff]
    %v2641 = vld [vmem:[%s2618 + $0xb0] sm:$0xff]
    %v2642 = vld [vmem:[%s2618 + $0xb8] sm:$0xff]
    %v2643 = vld [vmem:[%s2618 + $0xc0] sm:$0xff]
    %v2644 = vld [vmem:[%s2618 + $0xc8] sm:$0xff]
    %v2645 = vld [vmem:[%s2618 + $0xd0] sm:$0xff]
    %v2646 = vld [vmem:[%s2618 + $0xd8] sm:$0xff]
    %v2647 = vld [vmem:[%s2618 + $0xe0] sm:$0xff]
    %v2648 = vld [vmem:[%s2618 + $0xe8] sm:$0xff]
    %v2649 = vld [vmem:[%s2618 + $0xf0] sm:$0xff]
    %v2650 = vld [vmem:[%s2618 + $0xf8] sm:$0xff]
    %v2651 = vld [vmem:[%s2618 + $0x100] sm:$0xff]
    %v2652 = vld [vmem:[%s2618 + $0x108] sm:$0xff]
    %v2653 = vld [vmem:[%s2618 + $0x110] sm:$0xff]
    %v2654 = vld [vmem:[%s2618 + $0x118] sm:$0xff]
    %v2655 = vld [vmem:[%s2618 + $0x120] sm:$0xff]
    %v2656 = vld [vmem:[%s2618 + $0x128] sm:$0xff]
    %v2657 = vld [vmem:[%s2618 + $0x130] sm:$0xff]
    %v2658 = vld [vmem:[%s2618 + $0x138] sm:$0xff]
    %v2659 = vld [vmem:[%s2618 + $0x140] sm:$0xff]
    %v2660 = vld [vmem:[%s2618 + $0x148] sm:$0xff]
    %v2661 = vld [vmem:[%s2618 + $0x150] sm:$0xff]
    %v2662 = vld [vmem:[%s2618 + $0x158] sm:$0xff]
    %v2663 = vld [vmem:[%s2618 + $0x160] sm:$0xff]
    %v2664 = vld [vmem:[%s2618 + $0x168] sm:$0xff]
    %v2665 = vld [vmem:[%s2618 + $0x170] sm:$0xff]
    %v2666 = vld [vmem:[%s2618 + $0x178] sm:$0xff]
    %v2667 = vld [vmem:[%s2618 + $0x180] sm:$0xff]
    %v2668 = vld [vmem:[%s2618 + $0x188] sm:$0xff]
    %v2669 = vld [vmem:[%s2618 + $0x190] sm:$0xff]
    %v2670 = vld [vmem:[%s2618 + $0x198] sm:$0xff]
    %v2671 = vld [vmem:[%s2618 + $0x1a0] sm:$0xff]
    %v2672 = vld [vmem:[%s2618 + $0x1a8] sm:$0xff]
    %v2673 = vld [vmem:[%s2618 + $0x1b0] sm:$0xff]
    %v2674 = vld [vmem:[%s2618 + $0x1b8] sm:$0xff]
    %v2675 = vld [vmem:[%s2618 + $0x1c0] sm:$0xff]
    %v2676 = vld [vmem:[%s2618 + $0x1c8] sm:$0xff]
    %v2677 = vld [vmem:[%s2618 + $0x1d0] sm:$0xff]
    %v2678 = vld [vmem:[%s2618 + $0x1d8] sm:$0xff]
    %v2679 = vld [vmem:[%s2618 + $0x1e0] sm:$0xff]
    %v2680 = vld [vmem:[%s2618 + $0x1e8] sm:$0xff]
    %v2681 = vld [vmem:[%s2618 + $0x1f0] sm:$0xff]
    %v2682 = vld [vmem:[%s2618 + $0x1f8] sm:$0xff]
    %2683 = vmatprep.subr.mxu0 %v2620
    %2684 = vmatpush1.msra.mxu0 %v2619
    %2685 = vmatprep.subr.mxu0 %v2622
    %2686 = vmatpush1.msra.mxu0 %v2621
    %2687 = vmatprep.subr.mxu0 %v2624
    %2688 = vmatpush1.msra.mxu0 %v2623
    %2689 = vmatprep.subr.mxu0 %v2626
    %2690 = vmatpush1.msra.mxu0 %v2625
    %2691 = vmatprep.subr.mxu0 %v2628
    %2692 = vmatpush1.msra.mxu0 %v2627
    %2693 = vmatprep.subr.mxu0 %v2630
    %2694 = vmatpush1.msra.mxu0 %v2629
    %2695 = vmatprep.subr.mxu0 %v2632
    %2696 = vmatpush1.msra.mxu0 %v2631
    %2697 = vmatprep.subr.mxu0 %v2634
    %2698 = vmatpush1.msra.mxu0 %v2633
    %2699 = vmatprep.subr.mxu0 %v2636
    %2700 = vmatpush1.msra.mxu0 %v2635
    %2701 = vmatprep.subr.mxu0 %v2638
    %2702 = vmatpush1.msra.mxu0 %v2637
    %2703 = vmatprep.subr.mxu0 %v2640
    %2704 = vmatpush1.msra.mxu0 %v2639
    %2705 = vmatprep.subr.mxu0 %v2642
    %2706 = vmatpush1.msra.mxu0 %v2641
    %2707 = vmatprep.subr.mxu0 %v2644
    %2708 = vmatpush1.msra.mxu0 %v2643
    %2709 = vmatprep.subr.mxu0 %v2646
    %2710 = vmatpush1.msra.mxu0 %v2645
    %2711 = vmatprep.subr.mxu0 %v2648
    %2712 = vmatpush1.msra.mxu0 %v2647
    %2713 = vmatprep.subr.mxu0 %v2650
    %2714 = vmatpush1.msra.mxu0 %v2649
    %2715 = vmatprep.subr.mxu0 %v2652
    %2716 = vmatpush1.msra.mxu0 %v2651
    %2717 = vmatprep.subr.mxu0 %v2654
    %2718 = vmatpush1.msra.mxu0 %v2653
    %2719 = vmatprep.subr.mxu0 %v2656
    %2720 = vmatpush1.msra.mxu0 %v2655
    %2721 = vmatprep.subr.mxu0 %v2658
    %2722 = vmatpush1.msra.mxu0 %v2657
    %2723 = vmatprep.subr.mxu0 %v2660
    %2724 = vmatpush1.msra.mxu0 %v2659
    %2725 = vmatprep.subr.mxu0 %v2662
    %2726 = vmatpush1.msra.mxu0 %v2661
    %2727 = vmatprep.subr.mxu0 %v2664
    %2728 = vmatpush1.msra.mxu0 %v2663
    %2729 = vmatprep.subr.mxu0 %v2666
    %2730 = vmatpush1.msra.mxu0 %v2665
    %2731 = vmatprep.subr.mxu0 %v2668
    %2732 = vmatpush1.msra.mxu0 %v2667
    %2733 = vmatprep.subr.mxu0 %v2670
    %2734 = vmatpush1.msra.mxu0 %v2669
    %2735 = vmatprep.subr.mxu0 %v2672
    %2736 = vmatpush1.msra.mxu0 %v2671
    %2737 = vmatprep.subr.mxu0 %v2674
    %2738 = vmatpush1.msra.mxu0 %v2673
    %2739 = vmatprep.subr.mxu0 %v2676
    %2740 = vmatpush1.msra.mxu0 %v2675
    %2741 = vmatprep.subr.mxu0 %v2678
    %2742 = vmatpush1.msra.mxu0 %v2677
    %2743 = vmatprep.subr.mxu0 %v2680
    %2744 = vmatpush1.msra.mxu0 %v2679
    %2745 = vmatprep.subr.mxu0 %v2682
    %2746 = vmatpush1.msra.mxu0 %v2681
    %2747 = vmatprep.mubr.f32.mxu0 %v2595
    %2748 = vmatmul.mubr.f32.gmra.mrb[0].mxu0 %v2592
    %v2749 = vpop.f32.mrb[0].mxu0
    %v2750 = vadd.f32 0.0, %v2749
    %v2751 = vpop.f32.mrb[0].mxu0
    %v2752 = vadd.f32 0.0, %v2751
    %2753 = vmatprep.mubr.f32.mxu0 %v2599
    %2754 = vmatmul.mubr.f32.gmra.mrb[0].mxu0 %v2597
    %v2755 = vpop.f32.mrb[0].mxu0
    %v2756 = vadd.f32 0.0, %v2755
    %v2757 = vpop.f32.mrb[0].mxu0
    %v2758 = vadd.f32 0.0, %v2757
    %2759 = vmatprep.mubr.f32.mxu0 %v2605
    %2760 = vmatmul.mubr.f32.gmra.mrb[0].mxu0 %v2602
    %v2761 = vpop.f32.mrb[0].mxu0
    %v2762 = vadd.f32 0.0, %v2761
    %v2763 = vpop.f32.mrb[0].mxu0
    %v2764 = vadd.f32 0.0, %v2763
    %2765 = vmatprep.mubr.f32.mxu0 %v2609
    %2766 = vmatmul.mubr.f32.gmra.mrb[0].mxu0 %v2607
    %v2767 = vpop.f32.mrb[0].mxu0
    %v2768 = vadd.f32 0.0, %v2767
    %v2769 = vpop.f32.mrb[0].mxu0
    %v2770 = vadd.f32 0.0, %v2769
    %2771 = vdwg.mxu0
    %v2772 = vadd.f32 %v2566, %v2750
    %v2773 = vadd.f32 %v2567, %v2752
    %v2774 = vadd.f32 %v2568, %v2756
    %v2775 = vadd.f32 %v2569, %v2758
    %v2776 = vadd.f32 %v2570, %v2762
    %v2777 = vadd.f32 %v2571, %v2764
    %v2778 = vadd.f32 %v2572, %v2768
    %v2779 = vadd.f32 %v2573, %v2770
    %v2780 = vld [vmem:[#allocation15] sm:$0x3]
    %v2782 = vlaneseq
    %v2783 = vshrl.u32 %v2782, 7
    %v2784 = vsub.s32 0, %v2783
    %v2785 = vrot.slane %v2780, %v2784
    %v2786 = vlaneseq
    %v2787 = vshrl.u32 %v2786, 7
    %v2788 = vsub.s32 1, %v2787
    %v2789 = vrot.slane %v2780, %v2788
    %v2792 = vadd.f32 %v2772, %v2785
    %v2793 = vadd.f32 %v2773, %v2789
    %v2794 = vadd.f32 %v2774, %v2785
    %v2795 = vadd.f32 %v2775, %v2789
    %v2796 = vadd.f32 %v2776, %v2785
    %v2797 = vadd.f32 %v2777, %v2789
    %v2798 = vadd.f32 %v2778, %v2785
    %v2799 = vadd.f32 %v2779, %v2789
    %v2800 = vmax.f32 %v2792, 0.0
    %v2801 = vmax.f32 %v2793, 0.0
    %v2802 = vmax.f32 %v2794, 0.0
    %v2803 = vmax.f32 %v2795, 0.0
    %v2804 = vmax.f32 %v2796, 0.0
    %v2805 = vmax.f32 %v2797, 0.0
    %v2806 = vmax.f32 %v2798, 0.0
    %v2807 = vmax.f32 %v2799, 0.0
    %v2808 = vld [vmem:[%s7] sm:$0xff]
    %v2809 = vld [vmem:[%s7 + $0x8] sm:$0xff]
    %v2810 = vld [vmem:[%s7 + $0x10] sm:$0xff]
    %v2811 = vld [vmem:[%s7 + $0x18] sm:$0xff]
    %v2812 = vld [vmem:[%s7 + $0x20] sm:$0xff]
    %v2813 = vld [vmem:[%s7 + $0x28] sm:$0xff]
    %v2814 = vld [vmem:[%s7 + $0x30] sm:$0xff]
    %v2815 = vld [vmem:[%s7 + $0x38] sm:$0xff]
    %v2816 = vld [vmem:[%s7 + $0x40] sm:$0xff]
    %v2817 = vld [vmem:[%s7 + $0x48] sm:$0xff]
    %v2818 = vld [vmem:[%s7 + $0x50] sm:$0xff]
    %v2819 = vld [vmem:[%s7 + $0x58] sm:$0xff]
    %v2820 = vld [vmem:[%s7 + $0x60] sm:$0xff]
    %v2821 = vld [vmem:[%s7 + $0x68] sm:$0xff]
    %v2822 = vld [vmem:[%s7 + $0x70] sm:$0xff]
    %v2823 = vld [vmem:[%s7 + $0x78] sm:$0xff]
    %v2824 = vld [vmem:[%s7 + $0x80] sm:$0xff]
    %v2825 = vld [vmem:[%s7 + $0x88] sm:$0xff]
    %v2826 = vld [vmem:[%s7 + $0x90] sm:$0xff]
    %v2827 = vld [vmem:[%s7 + $0x98] sm:$0xff]
    %v2828 = vld [vmem:[%s7 + $0xa0] sm:$0xff]
    %v2829 = vld [vmem:[%s7 + $0xa8] sm:$0xff]
    %v2830 = vld [vmem:[%s7 + $0xb0] sm:$0xff]
    %v2831 = vld [vmem:[%s7 + $0xb8] sm:$0xff]
    %v2832 = vld [vmem:[%s7 + $0xc0] sm:$0xff]
    %v2833 = vld [vmem:[%s7 + $0xc8] sm:$0xff]
    %v2834 = vld [vmem:[%s7 + $0xd0] sm:$0xff]
    %v2835 = vld [vmem:[%s7 + $0xd8] sm:$0xff]
    %v2836 = vld [vmem:[%s7 + $0xe0] sm:$0xff]
    %v2837 = vld [vmem:[%s7 + $0xe8] sm:$0xff]
    %v2838 = vld [vmem:[%s7 + $0xf0] sm:$0xff]
    %v2839 = vld [vmem:[%s7 + $0xf8] sm:$0xff]
    %2840 = vmatprep.subr.mxu0 0.0
    %2841 = vmatpush1.msra.mxu0 %v2808
    %2842 = vmatprep.subr.mxu0 0.0
    %2843 = vmatpush1.msra.mxu0 %v2809
    %2844 = vmatprep.subr.mxu0 0.0
    %2845 = vmatpush1.msra.mxu0 %v2810
    %2846 = vmatprep.subr.mxu0 0.0
    %2847 = vmatpush1.msra.mxu0 %v2811
    %2848 = vmatprep.subr.mxu0 0.0
    %2849 = vmatpush1.msra.mxu0 %v2812
    %2850 = vmatprep.subr.mxu0 0.0
    %2851 = vmatpush1.msra.mxu0 %v2813
    %2852 = vmatprep.subr.mxu0 0.0
    %2853 = vmatpush1.msra.mxu0 %v2814
    %2854 = vmatprep.subr.mxu0 0.0
    %2855 = vmatpush1.msra.mxu0 %v2815
    %2856 = vmatprep.subr.mxu0 0.0
    %2857 = vmatpush1.msra.mxu0 %v2816
    %2858 = vmatprep.subr.mxu0 0.0
    %2859 = vmatpush1.msra.mxu0 %v2817
    %2860 = vmatprep.subr.mxu0 0.0
    %2861 = vmatpush1.msra.mxu0 %v2818
    %2862 = vmatprep.subr.mxu0 0.0
    %2863 = vmatpush1.msra.mxu0 %v2819
    %2864 = vmatprep.subr.mxu0 0.0
    %2865 = vmatpush1.msra.mxu0 %v2820
    %2866 = vmatprep.subr.mxu0 0.0
    %2867 = vmatpush1.msra.mxu0 %v2821
    %2868 = vmatprep.subr.mxu0 0.0
    %2869 = vmatpush1.msra.mxu0 %v2822
    %2870 = vmatprep.subr.mxu0 0.0
    %2871 = vmatpush1.msra.mxu0 %v2823
    %2872 = vmatprep.subr.mxu0 0.0
    %2873 = vmatpush1.msra.mxu0 %v2824
    %2874 = vmatprep.subr.mxu0 0.0
    %2875 = vmatpush1.msra.mxu0 %v2825
    %2876 = vmatprep.subr.mxu0 0.0
    %2877 = vmatpush1.msra.mxu0 %v2826
    %2878 = vmatprep.subr.mxu0 0.0
    %2879 = vmatpush1.msra.mxu0 %v2827
    %2880 = vmatprep.subr.mxu0 0.0
    %2881 = vmatpush1.msra.mxu0 %v2828
    %2882 = vmatprep.subr.mxu0 0.0
    %2883 = vmatpush1.msra.mxu0 %v2829
    %2884 = vmatprep.subr.mxu0 0.0
    %2885 = vmatpush1.msra.mxu0 %v2830
    %2886 = vmatprep.subr.mxu0 0.0
    %2887 = vmatpush1.msra.mxu0 %v2831
    %2888 = vmatprep.subr.mxu0 0.0
    %2889 = vmatpush1.msra.mxu0 %v2832
    %2890 = vmatprep.subr.mxu0 0.0
    %2891 = vmatpush1.msra.mxu0 %v2833
    %2892 = vmatprep.subr.mxu0 0.0
    %2893 = vmatpush1.msra.mxu0 %v2834
    %2894 = vmatprep.subr.mxu0 0.0
    %2895 = vmatpush1.msra.mxu0 %v2835
    %2896 = vmatprep.subr.mxu0 0.0
    %2897 = vmatpush1.msra.mxu0 %v2836
    %2898 = vmatprep.subr.mxu0 0.0
    %2899 = vmatpush1.msra.mxu0 %v2837
    %2900 = vmatprep.subr.mxu0 0.0
    %2901 = vmatpush1.msra.mxu0 %v2838
    %2902 = vmatprep.subr.mxu0 0.0
    %2903 = vmatpush1.msra.mxu0 %v2839
    %2904 = vmatprep.mubr.f32.mxu0 %v2801
    %2905 = vmatmul.mubr.f32.gmra.mrb[0].mxu0 %v2800
    %v2906 = vpop.f32.mrb[0].mxu0
    %v2907 = vadd.f32 0.0, %v2906
    %v2908 = vpop.f32.mrb[0].mxu0
    %2909 = vmatprep.mubr.f32.mxu0 %v2803
    %2910 = vmatmul.mubr.f32.gmra.mrb[0].mxu0 %v2802
    %v2911 = vpop.f32.mrb[0].mxu0
    %v2912 = vadd.f32 0.0, %v2911
    %v2913 = vpop.f32.mrb[0].mxu0
    %2914 = vmatprep.mubr.f32.mxu0 %v2805
    %2915 = vmatmul.mubr.f32.gmra.mrb[0].mxu0 %v2804
    %v2916 = vpop.f32.mrb[0].mxu0
    %v2917 = vadd.f32 0.0, %v2916
    %v2918 = vpop.f32.mrb[0].mxu0
    %2919 = vmatprep.mubr.f32.mxu0 %v2807
    %2920 = vmatmul.mubr.f32.gmra.mrb[0].mxu0 %v2806
    %v2921 = vpop.f32.mrb[0].mxu0
    %v2922 = vadd.f32 0.0, %v2921
    %v2923 = vpop.f32.mrb[0].mxu0
    %2924 = vdwg.mxu0
    %2925 = vst.msk [vmem:[#allocation16] sm:$0xff] %vm119, %v2907
    %2926 = vst.msk [vmem:[#allocation16 + $0x8] sm:$0xff] %vm119, %v2912
    %2927 = vst.msk [vmem:[#allocation16 + $0x10] sm:$0xff] %vm119, %v2917
    %2928 = vst.msk [vmem:[#allocation16 + $0x18] sm:$0xff] %vm119, %v2922
    // Predicated region
    $region62: #{cnn_regularization_forward.1} parent=1 // pred_check
      _
    $region63: #{cnn_regularization_forward.1} parent=1 // pred_check_branch
      %2930 = sbr.rel (0) target = $region65
    $region64: #{cnn_regularization_forward.1} parent=1 // pred_region
      %s2932 = ssub.s32 512, 512
      %2933 = vsyncadd [#allocation6], %s2932
      %s2934 = sshll.u32 [#allocation16], 4
      %s2935 = int_to_ptr.vmem [resolvable:$true] %s2934
      %2940 = dma.vmem_to_hbm [thread:$0]  %s2935, 512, %s8, [#allocation6], 128, 128, 8
    $region65: #{cnn_regularization_forward.1} parent=1 // pred_fallthru
      _
    // Predicated region
    $region66: #{cnn_regularization_forward.1} parent=1 // pred_check
      _
    $region67: #{cnn_regularization_forward.1} parent=1 // pred_check_branch
      %2942 = sbr.rel (0) target = $region69
    $region68: #{cnn_regularization_forward.1} parent=1 // pred_region
      %2943 = dma.done [#allocation6], 512
    $region69: #{cnn_regularization_forward.1} parent=1 // pred_fallthru
      _
    %2944 = vsyncpa [#allocation5], 1
    %2945 = vsyncpa [#allocation8], 1
    %2946 = vsyncpa [#allocation11], 1
    %2947 = vsyncpa [#allocation14], 1
    %2948 = vsyncpa [#allocation6], 1

</llo_original>
